<compile_context>
chip_gen: v7x
topology: tpu7x:2x2x1
jax: 0.10.0
libtpu: 0.0.40
codegen_flags: <defaults>
</compile_context>

<pallas_src>
import functools

import jax
import jax.numpy as jnp
from jax.experimental import pallas as pl
from jax.experimental.pallas import tpu as pltpu


def define_kan_width(input_dim, W, repeat_hid, output_dim):
    return [input_dim] + [W] * repeat_hid + [output_dim]


def _round_up(x, m):
    return ((x + m - 1) // m) * m


# ----------------------------------------------------------------------------
# Pallas kernels
# ----------------------------------------------------------------------------
def _fused_rbfkan_net_kernel(x_ref, grids_ref, *rest, widths, grid_count, inv_h,
                             use_bf16):
    """Whole RBF-KAN network (all layers) for one row tile.

    x_ref:     (TILE_N, widths[0])        input rows for this tile
    grids_ref: (L, G)                     per-layer RBF grid centres
    rest:      w2d_0 ... w2d_{L-1}        per-layer flattened weights (D_l*G, O_l)
               o_ref                      (TILE_N, O_pad) output
               basis_scr                  (TILE_N, max_l D_l*G) VMEM scratch
    """
    num_layers = len(widths) - 1
    w_refs = rest[:num_layers]
    o_ref = rest[num_layers]
    basis_scr = rest[num_layers + 1]

    a = x_ref[...]                                     # (TILE_N, D0) f32
    for l in range(num_layers):
        d_in = widths[l]
        dg = d_in * grid_count
        g_row = grids_ref[l:l + 1, :]                  # (1, G)
        # Assemble the full Gaussian-RBF basis for this layer in VMEM scratch.
        for d in range(d_in):
            z = (a[:, d:d + 1] - g_row) * inv_h        # (TILE_N, G)
            basis_scr[:, d * grid_count:(d + 1) * grid_count] = jnp.exp(-(z * z))
        basis = basis_scr[:, :dg]                      # (TILE_N, D*G)
        w = w_refs[l][...]                             # (D*G, O_l)
        if use_bf16:
            basis = basis.astype(jnp.bfloat16)
            w = w.astype(jnp.bfloat16)
        # Single fused MXU contraction with K = D*G (instead of D matmuls of K=G).
        a = jnp.dot(basis, w, preferred_element_type=jnp.float32)
    o_ref[...] = a                                     # lane-dense (O_pad % 128 == 0)


def rbf_kan_net_forward(x, grids, w2d_list, *, widths, grid_count, min_grid,
                        max_grid, out_pad, tile_n=128, use_bf16_matmul=False,
                        vmem_budget_bytes=32 * 1024 * 1024):
    """Run a full RBF-KAN network in a single fused, row-tiled pallas_call."""
    n, d0 = x.shape
    assert d0 == widths[0]
    inv_h = float((grid_count - 1) / (max_grid - min_grid))
    max_dg = max(widths[:-1]) * grid_count

    weight_bytes = sum(int(w.size) for w in w2d_list) * 4 + int(grids.size) * 4

    def vmem_estimate(tile):
        io = 2 * tile * d0 * 4 + 2 * tile * out_pad * 4      # double-buffered tiles
        scratch = tile * max_dg * 4                          # basis scratch
        act = 4 * tile * max(max(widths), out_pad) * 4       # activations / temps
        return weight_bytes + io + scratch + act

    tile = min(tile_n, _round_up(n, 8))
    while vmem_estimate(tile) > vmem_budget_bytes and tile > 8:
        tile //= 2
    n_pad = _round_up(n, tile)
    if n_pad != n:
        x = jnp.pad(x, ((0, n_pad - n), (0, 0)))

    kernel = functools.partial(
        _fused_rbfkan_net_kernel, widths=tuple(widths), grid_count=grid_count,
        inv_h=inv_h, use_bf16=use_bf16_matmul)

    in_specs = [pl.BlockSpec((tile, d0), lambda i: (i, 0)),
                pl.BlockSpec(grids.shape, lambda i: (0, 0))]
    for w in w2d_list:
        in_specs.append(pl.BlockSpec(w.shape, lambda i: (0, 0)))

    vmem_limit = int(min(max(2 * vmem_estimate(tile), 16 * 1024 * 1024),
                         100 * 1024 * 1024))

    out = pl.pallas_call(
        kernel,
        out_shape=jax.ShapeDtypeStruct((n_pad, out_pad), jnp.float32),
        grid=(n_pad // tile,),
        in_specs=in_specs,
        out_specs=pl.BlockSpec((tile, out_pad), lambda i: (i, 0)),
        scratch_shapes=[pltpu.VMEM((tile, max_dg), jnp.float32)],
        compiler_params=pltpu.CompilerParams(
            dimension_semantics=("parallel",),
            vmem_limit_bytes=vmem_limit),
    )(x, grids, *w2d_list)
    return out[:n]


def _combine_kernel(b_ref, tT_ref, o_ref):
    """Y = y_branch @ y_trunk.T  (trunk pre-transposed in the wrapper)."""
    o_ref[...] = jnp.dot(b_ref[...], tT_ref[...],
                         preferred_element_type=jnp.float32)


def combine(y_branch, y_trunk):
    b, k = y_branch.shape
    n, k2 = y_trunk.shape
    if k != k2:
        raise AssertionError("Output sizes of branch net and trunk net do not match.")
    y_trunk_t = y_trunk.T          # plain-JAX/XLA transpose, outside the kernel
    return pl.pallas_call(
        _combine_kernel,
        out_shape=jax.ShapeDtypeStruct((b, n), jnp.float32),
        in_specs=[pl.BlockSpec((b, k), lambda: (0, 0)),
                  pl.BlockSpec((k, n), lambda: (0, 0))],
        out_specs=pl.BlockSpec((b, n), lambda: (0, 0)),
    )(y_branch, y_trunk_t)


# ----------------------------------------------------------------------------
# Parameter init + network glue (plain JAX)
# ----------------------------------------------------------------------------
def init_rbf_kan(key, widths, *, min_grid, max_grid, grid_count, noise_scale,
                 out_pad):
    num_layers = len(widths) - 1
    w_true, w2d, grid_rows = [], [], []
    for l, (din, dout) in enumerate(zip(widths[:-1], widths[1:])):
        key, wk = jax.random.split(key)
        w = noise_scale * jax.random.normal(
            wk, (din, grid_count, dout), dtype=jnp.float32)
        w_true.append(w)
        w2 = w.reshape(din * grid_count, dout)
        if l == num_layers - 1 and out_pad > dout:
            # Zero-pad the last layer's output columns to a lane-dense width;
            # padded output columns are exactly zero.
            w2 = jnp.pad(w2, ((0, 0), (0, out_pad - dout)))
        w2d.append(w2)
        grid_rows.append(jnp.linspace(min_grid, max_grid, grid_count,
                                      dtype=jnp.float32))
    params = {"w_true": w_true, "w2d": w2d, "grids": jnp.stack(grid_rows)}
    return params, key


def deepokan_forward(branch_params, trunk_params, x_branch, x_trunk, cfg,
                     *, use_bf16_matmul=False):
    y_branch = rbf_kan_net_forward(
        x_branch, branch_params["grids"], branch_params["w2d"],
        widths=cfg["width_branch"], grid_count=cfg["grid_count"],
        min_grid=cfg["branch_min"], max_grid=cfg["branch_max"],
        out_pad=cfg["out_pad"], use_bf16_matmul=use_bf16_matmul)
    y_trunk = rbf_kan_net_forward(
        x_trunk, trunk_params["grids"], trunk_params["w2d"],
        widths=cfg["width_trunk"], grid_count=cfg["grid_count"],
        min_grid=cfg["trunk_min"], max_grid=cfg["trunk_max"],
        out_pad=cfg["out_pad"], use_bf16_matmul=use_bf16_matmul)
    if y_branch.shape[-1] != y_trunk.shape[-1]:
        raise AssertionError("Output sizes of branch net and trunk net do not match.")
    return combine(y_branch, y_trunk)


# pure-JAX reference for a sanity check
def _ref_layer(x, grid_pts, w, inv_h):
    basis = jnp.exp(-(((x[:, :, None] - grid_pts[None, None, :]) * inv_h) ** 2))
    return jnp.einsum("ndg,dgo->no", basis, w)


def _ref_forward(branch_params, trunk_params, xb, xt, cfg):
    inv_hb = (cfg["grid_count"] - 1) / (cfg["branch_max"] - cfg["branch_min"])
    inv_ht = (cfg["grid_count"] - 1) / (cfg["trunk_max"] - cfg["trunk_min"])
    yb, yt = xb, xt
    for w, g in zip(branch_params["w_true"], branch_params["grids"]):
        yb = _ref_layer(yb, g, w, inv_hb)
    for w, g in zip(trunk_params["w_true"], trunk_params["grids"]):
        yt = _ref_layer(yt, g, w, inv_ht)
    return jnp.einsum("bk,nk->bn", yb, yt)


if __name__ == "__main__":
    key = jax.random.PRNGKey(0)

    # small but structurally faithful hyper-params
    grid_count = 8          # (30 in the original)
    noise_scale = 0.01
    HD = 16                 # (40)
    hid = 16                # (50)
    num_layer = 2

    B = 64                  # branch samples  (rows of c_train)
    in_dim_branch = 8       # c_train.shape[1]
    N = 256                 # trunk evaluation points
    in_dim_trunk = 1        # x.shape[1]

    key, kb, kt = jax.random.split(key, 3)
    x_branch = jax.random.normal(kb, (B, in_dim_branch), dtype=jnp.float32)
    x_trunk = jax.random.uniform(kt, (N, in_dim_trunk), dtype=jnp.float32)

    width_branch = define_kan_width(in_dim_branch, hid, num_layer, HD)
    width_trunk = define_kan_width(in_dim_trunk, hid, num_layer, HD)
    out_pad = _round_up(HD, 128)   # lane-dense final store / combine K axis

    cfg = {
        "grid_count": grid_count,
        "branch_min": float(x_branch.min()),
        "branch_max": float(x_branch.max()),
        "trunk_min": float(x_trunk.min()),
        "trunk_max": float(x_trunk.max()),
        "width_branch": width_branch,
        "width_trunk": width_trunk,
        "out_pad": out_pad,
    }

    branch_params, key = init_rbf_kan(
        key, width_branch, min_grid=cfg["branch_min"], max_grid=cfg["branch_max"],
        grid_count=grid_count, noise_scale=noise_scale, out_pad=out_pad)
    trunk_params, key = init_rbf_kan(
        key, width_trunk, min_grid=cfg["trunk_min"], max_grid=cfg["trunk_max"],
        grid_count=grid_count, noise_scale=noise_scale, out_pad=out_pad)

    Y = deepokan_forward(branch_params, trunk_params, x_branch, x_trunk, cfg)
    Y = jax.block_until_ready(Y)
    assert Y.shape == (B, N)

    Y_ref = _ref_forward(branch_params, trunk_params, x_branch, x_trunk, cfg)
    assert jnp.allclose(Y, Y_ref, rtol=1e-2, atol=1e-5), "mismatch vs reference"

    print("KERNEL_OK")
</pallas_src>

<mosaic_0001>
module attributes {stable_mosaic.version = 11 : i64} {
  func.func @_fused_rbfkan_net_kernel(%arg0: i32, %arg1: memref<64x8xf32, #tpu.memory_space<vmem>>, %arg2: memref<3x8xf32, #tpu.memory_space<vmem>>, %arg3: memref<64x16xf32, #tpu.memory_space<vmem>>, %arg4: memref<128x16xf32, #tpu.memory_space<vmem>>, %arg5: memref<128x128xf32, #tpu.memory_space<vmem>>, %arg6: memref<64x128xf32, #tpu.memory_space<vmem>>, %arg7: memref<64x128xf32, #tpu.memory_space<vmem>>) attributes {dimension_semantics = [#tpu.dimension_semantics<parallel>], iteration_bounds = array<i64: 1>, scalar_prefetch = 0 : i64, scratch_operands = 1 : i64, tpu.core_type = #tpu.core_type<tc>, window_params = [{transform_indices = @transform_0, window_bounds = array<i64: 64, 8>}, {pipeline_mode = #tpu.pipeline_mode<synchronous>, transform_indices = @transform_1, window_bounds = array<i64: 3, 8>}, {pipeline_mode = #tpu.pipeline_mode<synchronous>, transform_indices = @transform_2, window_bounds = array<i64: 64, 16>}, {pipeline_mode = #tpu.pipeline_mode<synchronous>, transform_indices = @transform_3, window_bounds = array<i64: 128, 16>}, {pipeline_mode = #tpu.pipeline_mode<synchronous>, transform_indices = @transform_4, window_bounds = array<i64: 128, 128>}, {transform_indices = @transform_5, window_bounds = array<i64: 64, 128>}]} {
    %c0 = arith.constant 0 : index
    %c0_0 = arith.constant 0 : index
    %0 = vector.load %arg1[%c0, %c0_0] : memref<64x8xf32, #tpu.memory_space<vmem>>, vector<64x8xf32>
    %c0_1 = arith.constant 0 : index
    %c0_2 = arith.constant 0 : index
    %1 = vector.load %arg2[%c0_1, %c0_2] : memref<3x8xf32, #tpu.memory_space<vmem>>, vector<1x8xf32>
    %2 = vector.extract_strided_slice %0 {offsets = [0, 0], sizes = [64, 1], strides = [1, 1]} : vector<64x8xf32> to vector<64x1xf32>
    %3 = vector.broadcast %2 : vector<64x1xf32> to vector<64x8xf32>
    %4 = vector.broadcast %1 : vector<1x8xf32> to vector<64x8xf32>
    %5 = arith.subf %3, %4 : vector<64x8xf32>
    %cst = arith.constant 1.07014894 : f32
    %6 = vector.broadcast %cst : f32 to vector<64x8xf32>
    %7 = arith.mulf %5, %6 : vector<64x8xf32>
    %8 = arith.mulf %7, %7 : vector<64x8xf32>
    %cst_3 = arith.constant 0.000000e+00 : f32
    %9 = vector.broadcast %cst_3 : f32 to vector<64x8xf32>
    %10 = arith.subf %9, %8 : vector<64x8xf32>
    %11 = math.exp %10 : vector<64x8xf32>
    %c0_4 = arith.constant 0 : index
    %c0_5 = arith.constant 0 : index
    %12 = vector.load %arg7[%c0_4, %c0_5] : memref<64x128xf32, #tpu.memory_space<vmem>>, vector<64x8xf32>
    tpu.vector_store %arg7[%c0_4, %c0_5], %11 {strides = array<i32>} : memref<64x128xf32, #tpu.memory_space<vmem>>, vector<64x8xf32>,
    %13 = vector.extract_strided_slice %0 {offsets = [0, 1], sizes = [64, 1], strides = [1, 1]} : vector<64x8xf32> to vector<64x1xf32>
    %14 = vector.broadcast %13 : vector<64x1xf32> to vector<64x8xf32>
    %15 = vector.broadcast %1 : vector<1x8xf32> to vector<64x8xf32>
    %16 = arith.subf %14, %15 : vector<64x8xf32>
    %cst_6 = arith.constant 1.07014894 : f32
    %17 = vector.broadcast %cst_6 : f32 to vector<64x8xf32>
    %18 = arith.mulf %16, %17 : vector<64x8xf32>
    %19 = arith.mulf %18, %18 : vector<64x8xf32>
    %cst_7 = arith.constant 0.000000e+00 : f32
    %20 = vector.broadcast %cst_7 : f32 to vector<64x8xf32>
    %21 = arith.subf %20, %19 : vector<64x8xf32>
    %22 = math.exp %21 : vector<64x8xf32>
    %c0_8 = arith.constant 0 : index
    %c8 = arith.constant 8 : index
    %23 = vector.load %arg7[%c0_8, %c8] : memref<64x128xf32, #tpu.memory_space<vmem>>, vector<64x8xf32>
    tpu.vector_store %arg7[%c0_8, %c8], %22 {strides = array<i32>} : memref<64x128xf32, #tpu.memory_space<vmem>>, vector<64x8xf32>,
    %24 = vector.extract_strided_slice %0 {offsets = [0, 2], sizes = [64, 1], strides = [1, 1]} : vector<64x8xf32> to vector<64x1xf32>
    %25 = vector.broadcast %24 : vector<64x1xf32> to vector<64x8xf32>
    %26 = vector.broadcast %1 : vector<1x8xf32> to vector<64x8xf32>
    %27 = arith.subf %25, %26 : vector<64x8xf32>
    %cst_9 = arith.constant 1.07014894 : f32
    %28 = vector.broadcast %cst_9 : f32 to vector<64x8xf32>
    %29 = arith.mulf %27, %28 : vector<64x8xf32>
    %30 = arith.mulf %29, %29 : vector<64x8xf32>
    %cst_10 = arith.constant 0.000000e+00 : f32
    %31 = vector.broadcast %cst_10 : f32 to vector<64x8xf32>
    %32 = arith.subf %31, %30 : vector<64x8xf32>
    %33 = math.exp %32 : vector<64x8xf32>
    %c0_11 = arith.constant 0 : index
    %c16 = arith.constant 16 : index
    %34 = vector.load %arg7[%c0_11, %c16] : memref<64x128xf32, #tpu.memory_space<vmem>>, vector<64x8xf32>
    tpu.vector_store %arg7[%c0_11, %c16], %33 {strides = array<i32>} : memref<64x128xf32, #tpu.memory_space<vmem>>, vector<64x8xf32>,
    %35 = vector.extract_strided_slice %0 {offsets = [0, 3], sizes = [64, 1], strides = [1, 1]} : vector<64x8xf32> to vector<64x1xf32>
    %36 = vector.broadcast %35 : vector<64x1xf32> to vector<64x8xf32>
    %37 = vector.broadcast %1 : vector<1x8xf32> to vector<64x8xf32>
    %38 = arith.subf %36, %37 : vector<64x8xf32>
    %cst_12 = arith.constant 1.07014894 : f32
    %39 = vector.broadcast %cst_12 : f32 to vector<64x8xf32>
    %40 = arith.mulf %38, %39 : vector<64x8xf32>
    %41 = arith.mulf %40, %40 : vector<64x8xf32>
    %cst_13 = arith.constant 0.000000e+00 : f32
    %42 = vector.broadcast %cst_13 : f32 to vector<64x8xf32>
    %43 = arith.subf %42, %41 : vector<64x8xf32>
    %44 = math.exp %43 : vector<64x8xf32>
    %c0_14 = arith.constant 0 : index
    %c24 = arith.constant 24 : index
    %45 = vector.load %arg7[%c0_14, %c24] : memref<64x128xf32, #tpu.memory_space<vmem>>, vector<64x8xf32>
    tpu.vector_store %arg7[%c0_14, %c24], %44 {strides = array<i32>} : memref<64x128xf32, #tpu.memory_space<vmem>>, vector<64x8xf32>,
    %46 = vector.extract_strided_slice %0 {offsets = [0, 4], sizes = [64, 1], strides = [1, 1]} : vector<64x8xf32> to vector<64x1xf32>
    %47 = vector.broadcast %46 : vector<64x1xf32> to vector<64x8xf32>
    %48 = vector.broadcast %1 : vector<1x8xf32> to vector<64x8xf32>
    %49 = arith.subf %47, %48 : vector<64x8xf32>
    %cst_15 = arith.constant 1.07014894 : f32
    %50 = vector.broadcast %cst_15 : f32 to vector<64x8xf32>
    %51 = arith.mulf %49, %50 : vector<64x8xf32>
    %52 = arith.mulf %51, %51 : vector<64x8xf32>
    %cst_16 = arith.constant 0.000000e+00 : f32
    %53 = vector.broadcast %cst_16 : f32 to vector<64x8xf32>
    %54 = arith.subf %53, %52 : vector<64x8xf32>
    %55 = math.exp %54 : vector<64x8xf32>
    %c0_17 = arith.constant 0 : index
    %c32 = arith.constant 32 : index
    %56 = vector.load %arg7[%c0_17, %c32] : memref<64x128xf32, #tpu.memory_space<vmem>>, vector<64x8xf32>
    tpu.vector_store %arg7[%c0_17, %c32], %55 {strides = array<i32>} : memref<64x128xf32, #tpu.memory_space<vmem>>, vector<64x8xf32>,
    %57 = vector.extract_strided_slice %0 {offsets = [0, 5], sizes = [64, 1], strides = [1, 1]} : vector<64x8xf32> to vector<64x1xf32>
    %58 = vector.broadcast %57 : vector<64x1xf32> to vector<64x8xf32>
    %59 = vector.broadcast %1 : vector<1x8xf32> to vector<64x8xf32>
    %60 = arith.subf %58, %59 : vector<64x8xf32>
    %cst_18 = arith.constant 1.07014894 : f32
    %61 = vector.broadcast %cst_18 : f32 to vector<64x8xf32>
    %62 = arith.mulf %60, %61 : vector<64x8xf32>
    %63 = arith.mulf %62, %62 : vector<64x8xf32>
    %cst_19 = arith.constant 0.000000e+00 : f32
    %64 = vector.broadcast %cst_19 : f32 to vector<64x8xf32>
    %65 = arith.subf %64, %63 : vector<64x8xf32>
    %66 = math.exp %65 : vector<64x8xf32>
    %c0_20 = arith.constant 0 : index
    %c40 = arith.constant 40 : index
    %67 = vector.load %arg7[%c0_20, %c40] : memref<64x128xf32, #tpu.memory_space<vmem>>, vector<64x8xf32>
    tpu.vector_store %arg7[%c0_20, %c40], %66 {strides = array<i32>} : memref<64x128xf32, #tpu.memory_space<vmem>>, vector<64x8xf32>,
    %68 = vector.extract_strided_slice %0 {offsets = [0, 6], sizes = [64, 1], strides = [1, 1]} : vector<64x8xf32> to vector<64x1xf32>
    %69 = vector.broadcast %68 : vector<64x1xf32> to vector<64x8xf32>
    %70 = vector.broadcast %1 : vector<1x8xf32> to vector<64x8xf32>
    %71 = arith.subf %69, %70 : vector<64x8xf32>
    %cst_21 = arith.constant 1.07014894 : f32
    %72 = vector.broadcast %cst_21 : f32 to vector<64x8xf32>
    %73 = arith.mulf %71, %72 : vector<64x8xf32>
    %74 = arith.mulf %73, %73 : vector<64x8xf32>
    %cst_22 = arith.constant 0.000000e+00 : f32
    %75 = vector.broadcast %cst_22 : f32 to vector<64x8xf32>
    %76 = arith.subf %75, %74 : vector<64x8xf32>
    %77 = math.exp %76 : vector<64x8xf32>
    %c0_23 = arith.constant 0 : index
    %c48 = arith.constant 48 : index
    %78 = vector.load %arg7[%c0_23, %c48] : memref<64x128xf32, #tpu.memory_space<vmem>>, vector<64x8xf32>
    tpu.vector_store %arg7[%c0_23, %c48], %77 {strides = array<i32>} : memref<64x128xf32, #tpu.memory_space<vmem>>, vector<64x8xf32>,
    %79 = vector.extract_strided_slice %0 {offsets = [0, 7], sizes = [64, 1], strides = [1, 1]} : vector<64x8xf32> to vector<64x1xf32>
    %80 = vector.broadcast %79 : vector<64x1xf32> to vector<64x8xf32>
    %81 = vector.broadcast %1 : vector<1x8xf32> to vector<64x8xf32>
    %82 = arith.subf %80, %81 : vector<64x8xf32>
    %cst_24 = arith.constant 1.07014894 : f32
    %83 = vector.broadcast %cst_24 : f32 to vector<64x8xf32>
    %84 = arith.mulf %82, %83 : vector<64x8xf32>
    %85 = arith.mulf %84, %84 : vector<64x8xf32>
    %cst_25 = arith.constant 0.000000e+00 : f32
    %86 = vector.broadcast %cst_25 : f32 to vector<64x8xf32>
    %87 = arith.subf %86, %85 : vector<64x8xf32>
    %88 = math.exp %87 : vector<64x8xf32>
    %c0_26 = arith.constant 0 : index
    %c56 = arith.constant 56 : index
    %89 = vector.load %arg7[%c0_26, %c56] : memref<64x128xf32, #tpu.memory_space<vmem>>, vector<64x8xf32>
    tpu.vector_store %arg7[%c0_26, %c56], %88 {strides = array<i32>} : memref<64x128xf32, #tpu.memory_space<vmem>>, vector<64x8xf32>,
    %c0_27 = arith.constant 0 : index
    %c0_28 = arith.constant 0 : index
    %90 = vector.load %arg7[%c0_27, %c0_28] : memref<64x128xf32, #tpu.memory_space<vmem>>, vector<64x64xf32>
    %c0_29 = arith.constant 0 : index
    %c0_30 = arith.constant 0 : index
    %91 = vector.load %arg3[%c0_29, %c0_30] : memref<64x16xf32, #tpu.memory_space<vmem>>, vector<64x16xf32>
    %cst_31 = arith.constant dense<0.000000e+00> : vector<64x16xf32>
    %92 = tpu.matmul %90, %91, %cst_31 {dimension_numbers = #tpu.dot_dimension_numbers<[1], [0], [0], [1], [0, 0, 1, 1], [], []>} : vector<64x64xf32>, vector<64x16xf32>, vector<64x16xf32> -> vector<64x16xf32>
    %c1 = arith.constant 1 : index
    %c0_32 = arith.constant 0 : index
    %93 = vector.load %arg2[%c1, %c0_32] : memref<3x8xf32, #tpu.memory_space<vmem>>, vector<1x8xf32>
    %94 = vector.extract_strided_slice %92 {offsets = [0, 0], sizes = [64, 1], strides = [1, 1]} : vector<64x16xf32> to vector<64x1xf32>
    %95 = vector.broadcast %94 : vector<64x1xf32> to vector<64x8xf32>
    %96 = vector.broadcast %93 : vector<1x8xf32> to vector<64x8xf32>
    %97 = arith.subf %95, %96 : vector<64x8xf32>
    %cst_33 = arith.constant 1.07014894 : f32
    %98 = vector.broadcast %cst_33 : f32 to vector<64x8xf32>
    %99 = arith.mulf %97, %98 : vector<64x8xf32>
    %100 = arith.mulf %99, %99 : vector<64x8xf32>
    %cst_34 = arith.constant 0.000000e+00 : f32
    %101 = vector.broadcast %cst_34 : f32 to vector<64x8xf32>
    %102 = arith.subf %101, %100 : vector<64x8xf32>
    %103 = math.exp %102 : vector<64x8xf32>
    %c0_35 = arith.constant 0 : index
    %c0_36 = arith.constant 0 : index
    %104 = vector.load %arg7[%c0_35, %c0_36] : memref<64x128xf32, #tpu.memory_space<vmem>>, vector<64x8xf32>
    tpu.vector_store %arg7[%c0_35, %c0_36], %103 {strides = array<i32>} : memref<64x128xf32, #tpu.memory_space<vmem>>, vector<64x8xf32>,
    %105 = vector.extract_strided_slice %92 {offsets = [0, 1], sizes = [64, 1], strides = [1, 1]} : vector<64x16xf32> to vector<64x1xf32>
    %106 = vector.broadcast %105 : vector<64x1xf32> to vector<64x8xf32>
    %107 = vector.broadcast %93 : vector<1x8xf32> to vector<64x8xf32>
    %108 = arith.subf %106, %107 : vector<64x8xf32>
    %cst_37 = arith.constant 1.07014894 : f32
    %109 = vector.broadcast %cst_37 : f32 to vector<64x8xf32>
    %110 = arith.mulf %108, %109 : vector<64x8xf32>
    %111 = arith.mulf %110, %110 : vector<64x8xf32>
    %cst_38 = arith.constant 0.000000e+00 : f32
    %112 = vector.broadcast %cst_38 : f32 to vector<64x8xf32>
    %113 = arith.subf %112, %111 : vector<64x8xf32>
    %114 = math.exp %113 : vector<64x8xf32>
    %c0_39 = arith.constant 0 : index
    %c8_40 = arith.constant 8 : index
    %115 = vector.load %arg7[%c0_39, %c8_40] : memref<64x128xf32, #tpu.memory_space<vmem>>, vector<64x8xf32>
    tpu.vector_store %arg7[%c0_39, %c8_40], %114 {strides = array<i32>} : memref<64x128xf32, #tpu.memory_space<vmem>>, vector<64x8xf32>,
    %116 = vector.extract_strided_slice %92 {offsets = [0, 2], sizes = [64, 1], strides = [1, 1]} : vector<64x16xf32> to vector<64x1xf32>
    %117 = vector.broadcast %116 : vector<64x1xf32> to vector<64x8xf32>
    %118 = vector.broadcast %93 : vector<1x8xf32> to vector<64x8xf32>
    %119 = arith.subf %117, %118 : vector<64x8xf32>
    %cst_41 = arith.constant 1.07014894 : f32
    %120 = vector.broadcast %cst_41 : f32 to vector<64x8xf32>
    %121 = arith.mulf %119, %120 : vector<64x8xf32>
    %122 = arith.mulf %121, %121 : vector<64x8xf32>
    %cst_42 = arith.constant 0.000000e+00 : f32
    %123 = vector.broadcast %cst_42 : f32 to vector<64x8xf32>
    %124 = arith.subf %123, %122 : vector<64x8xf32>
    %125 = math.exp %124 : vector<64x8xf32>
    %c0_43 = arith.constant 0 : index
    %c16_44 = arith.constant 16 : index
    %126 = vector.load %arg7[%c0_43, %c16_44] : memref<64x128xf32, #tpu.memory_space<vmem>>, vector<64x8xf32>
    tpu.vector_store %arg7[%c0_43, %c16_44], %125 {strides = array<i32>} : memref<64x128xf32, #tpu.memory_space<vmem>>, vector<64x8xf32>,
    %127 = vector.extract_strided_slice %92 {offsets = [0, 3], sizes = [64, 1], strides = [1, 1]} : vector<64x16xf32> to vector<64x1xf32>
    %128 = vector.broadcast %127 : vector<64x1xf32> to vector<64x8xf32>
    %129 = vector.broadcast %93 : vector<1x8xf32> to vector<64x8xf32>
    %130 = arith.subf %128, %129 : vector<64x8xf32>
    %cst_45 = arith.constant 1.07014894 : f32
    %131 = vector.broadcast %cst_45 : f32 to vector<64x8xf32>
    %132 = arith.mulf %130, %131 : vector<64x8xf32>
    %133 = arith.mulf %132, %132 : vector<64x8xf32>
    %cst_46 = arith.constant 0.000000e+00 : f32
    %134 = vector.broadcast %cst_46 : f32 to vector<64x8xf32>
    %135 = arith.subf %134, %133 : vector<64x8xf32>
    %136 = math.exp %135 : vector<64x8xf32>
    %c0_47 = arith.constant 0 : index
    %c24_48 = arith.constant 24 : index
    %137 = vector.load %arg7[%c0_47, %c24_48] : memref<64x128xf32, #tpu.memory_space<vmem>>, vector<64x8xf32>
    tpu.vector_store %arg7[%c0_47, %c24_48], %136 {strides = array<i32>} : memref<64x128xf32, #tpu.memory_space<vmem>>, vector<64x8xf32>,
    %138 = vector.extract_strided_slice %92 {offsets = [0, 4], sizes = [64, 1], strides = [1, 1]} : vector<64x16xf32> to vector<64x1xf32>
    %139 = vector.broadcast %138 : vector<64x1xf32> to vector<64x8xf32>
    %140 = vector.broadcast %93 : vector<1x8xf32> to vector<64x8xf32>
    %141 = arith.subf %139, %140 : vector<64x8xf32>
    %cst_49 = arith.constant 1.07014894 : f32
    %142 = vector.broadcast %cst_49 : f32 to vector<64x8xf32>
    %143 = arith.mulf %141, %142 : vector<64x8xf32>
    %144 = arith.mulf %143, %143 : vector<64x8xf32>
    %cst_50 = arith.constant 0.000000e+00 : f32
    %145 = vector.broadcast %cst_50 : f32 to vector<64x8xf32>
    %146 = arith.subf %145, %144 : vector<64x8xf32>
    %147 = math.exp %146 : vector<64x8xf32>
    %c0_51 = arith.constant 0 : index
    %c32_52 = arith.constant 32 : index
    %148 = vector.load %arg7[%c0_51, %c32_52] : memref<64x128xf32, #tpu.memory_space<vmem>>, vector<64x8xf32>
    tpu.vector_store %arg7[%c0_51, %c32_52], %147 {strides = array<i32>} : memref<64x128xf32, #tpu.memory_space<vmem>>, vector<64x8xf32>,
    %149 = vector.extract_strided_slice %92 {offsets = [0, 5], sizes = [64, 1], strides = [1, 1]} : vector<64x16xf32> to vector<64x1xf32>
    %150 = vector.broadcast %149 : vector<64x1xf32> to vector<64x8xf32>
    %151 = vector.broadcast %93 : vector<1x8xf32> to vector<64x8xf32>
    %152 = arith.subf %150, %151 : vector<64x8xf32>
    %cst_53 = arith.constant 1.07014894 : f32
    %153 = vector.broadcast %cst_53 : f32 to vector<64x8xf32>
    %154 = arith.mulf %152, %153 : vector<64x8xf32>
    %155 = arith.mulf %154, %154 : vector<64x8xf32>
    %cst_54 = arith.constant 0.000000e+00 : f32
    %156 = vector.broadcast %cst_54 : f32 to vector<64x8xf32>
    %157 = arith.subf %156, %155 : vector<64x8xf32>
    %158 = math.exp %157 : vector<64x8xf32>
    %c0_55 = arith.constant 0 : index
    %c40_56 = arith.constant 40 : index
    %159 = vector.load %arg7[%c0_55, %c40_56] : memref<64x128xf32, #tpu.memory_space<vmem>>, vector<64x8xf32>
    tpu.vector_store %arg7[%c0_55, %c40_56], %158 {strides = array<i32>} : memref<64x128xf32, #tpu.memory_space<vmem>>, vector<64x8xf32>,
    %160 = vector.extract_strided_slice %92 {offsets = [0, 6], sizes = [64, 1], strides = [1, 1]} : vector<64x16xf32> to vector<64x1xf32>
    %161 = vector.broadcast %160 : vector<64x1xf32> to vector<64x8xf32>
    %162 = vector.broadcast %93 : vector<1x8xf32> to vector<64x8xf32>
    %163 = arith.subf %161, %162 : vector<64x8xf32>
    %cst_57 = arith.constant 1.07014894 : f32
    %164 = vector.broadcast %cst_57 : f32 to vector<64x8xf32>
    %165 = arith.mulf %163, %164 : vector<64x8xf32>
    %166 = arith.mulf %165, %165 : vector<64x8xf32>
    %cst_58 = arith.constant 0.000000e+00 : f32
    %167 = vector.broadcast %cst_58 : f32 to vector<64x8xf32>
    %168 = arith.subf %167, %166 : vector<64x8xf32>
    %169 = math.exp %168 : vector<64x8xf32>
    %c0_59 = arith.constant 0 : index
    %c48_60 = arith.constant 48 : index
    %170 = vector.load %arg7[%c0_59, %c48_60] : memref<64x128xf32, #tpu.memory_space<vmem>>, vector<64x8xf32>
    tpu.vector_store %arg7[%c0_59, %c48_60], %169 {strides = array<i32>} : memref<64x128xf32, #tpu.memory_space<vmem>>, vector<64x8xf32>,
    %171 = vector.extract_strided_slice %92 {offsets = [0, 7], sizes = [64, 1], strides = [1, 1]} : vector<64x16xf32> to vector<64x1xf32>
    %172 = vector.broadcast %171 : vector<64x1xf32> to vector<64x8xf32>
    %173 = vector.broadcast %93 : vector<1x8xf32> to vector<64x8xf32>
    %174 = arith.subf %172, %173 : vector<64x8xf32>
    %cst_61 = arith.constant 1.07014894 : f32
    %175 = vector.broadcast %cst_61 : f32 to vector<64x8xf32>
    %176 = arith.mulf %174, %175 : vector<64x8xf32>
    %177 = arith.mulf %176, %176 : vector<64x8xf32>
    %cst_62 = arith.constant 0.000000e+00 : f32
    %178 = vector.broadcast %cst_62 : f32 to vector<64x8xf32>
    %179 = arith.subf %178, %177 : vector<64x8xf32>
    %180 = math.exp %179 : vector<64x8xf32>
    %c0_63 = arith.constant 0 : index
    %c56_64 = arith.constant 56 : index
    %181 = vector.load %arg7[%c0_63, %c56_64] : memref<64x128xf32, #tpu.memory_space<vmem>>, vector<64x8xf32>
    tpu.vector_store %arg7[%c0_63, %c56_64], %180 {strides = array<i32>} : memref<64x128xf32, #tpu.memory_space<vmem>>, vector<64x8xf32>,
    %182 = vector.extract_strided_slice %92 {offsets = [0, 8], sizes = [64, 1], strides = [1, 1]} : vector<64x16xf32> to vector<64x1xf32>
    %183 = vector.broadcast %182 : vector<64x1xf32> to vector<64x8xf32>
    %184 = vector.broadcast %93 : vector<1x8xf32> to vector<64x8xf32>
    %185 = arith.subf %183, %184 : vector<64x8xf32>
    %cst_65 = arith.constant 1.07014894 : f32
    %186 = vector.broadcast %cst_65 : f32 to vector<64x8xf32>
    %187 = arith.mulf %185, %186 : vector<64x8xf32>
    %188 = arith.mulf %187, %187 : vector<64x8xf32>
    %cst_66 = arith.constant 0.000000e+00 : f32
    %189 = vector.broadcast %cst_66 : f32 to vector<64x8xf32>
    %190 = arith.subf %189, %188 : vector<64x8xf32>
    %191 = math.exp %190 : vector<64x8xf32>
    %c0_67 = arith.constant 0 : index
    %c64 = arith.constant 64 : index
    %192 = vector.load %arg7[%c0_67, %c64] : memref<64x128xf32, #tpu.memory_space<vmem>>, vector<64x8xf32>
    tpu.vector_store %arg7[%c0_67, %c64], %191 {strides = array<i32>} : memref<64x128xf32, #tpu.memory_space<vmem>>, vector<64x8xf32>,
    %193 = vector.extract_strided_slice %92 {offsets = [0, 9], sizes = [64, 1], strides = [1, 1]} : vector<64x16xf32> to vector<64x1xf32>
    %194 = vector.broadcast %193 : vector<64x1xf32> to vector<64x8xf32>
    %195 = vector.broadcast %93 : vector<1x8xf32> to vector<64x8xf32>
    %196 = arith.subf %194, %195 : vector<64x8xf32>
    %cst_68 = arith.constant 1.07014894 : f32
    %197 = vector.broadcast %cst_68 : f32 to vector<64x8xf32>
    %198 = arith.mulf %196, %197 : vector<64x8xf32>
    %199 = arith.mulf %198, %198 : vector<64x8xf32>
    %cst_69 = arith.constant 0.000000e+00 : f32
    %200 = vector.broadcast %cst_69 : f32 to vector<64x8xf32>
    %201 = arith.subf %200, %199 : vector<64x8xf32>
    %202 = math.exp %201 : vector<64x8xf32>
    %c0_70 = arith.constant 0 : index
    %c72 = arith.constant 72 : index
    %203 = vector.load %arg7[%c0_70, %c72] : memref<64x128xf32, #tpu.memory_space<vmem>>, vector<64x8xf32>
    tpu.vector_store %arg7[%c0_70, %c72], %202 {strides = array<i32>} : memref<64x128xf32, #tpu.memory_space<vmem>>, vector<64x8xf32>,
    %204 = vector.extract_strided_slice %92 {offsets = [0, 10], sizes = [64, 1], strides = [1, 1]} : vector<64x16xf32> to vector<64x1xf32>
    %205 = vector.broadcast %204 : vector<64x1xf32> to vector<64x8xf32>
    %206 = vector.broadcast %93 : vector<1x8xf32> to vector<64x8xf32>
    %207 = arith.subf %205, %206 : vector<64x8xf32>
    %cst_71 = arith.constant 1.07014894 : f32
    %208 = vector.broadcast %cst_71 : f32 to vector<64x8xf32>
    %209 = arith.mulf %207, %208 : vector<64x8xf32>
    %210 = arith.mulf %209, %209 : vector<64x8xf32>
    %cst_72 = arith.constant 0.000000e+00 : f32
    %211 = vector.broadcast %cst_72 : f32 to vector<64x8xf32>
    %212 = arith.subf %211, %210 : vector<64x8xf32>
    %213 = math.exp %212 : vector<64x8xf32>
    %c0_73 = arith.constant 0 : index
    %c80 = arith.constant 80 : index
    %214 = vector.load %arg7[%c0_73, %c80] : memref<64x128xf32, #tpu.memory_space<vmem>>, vector<64x8xf32>
    tpu.vector_store %arg7[%c0_73, %c80], %213 {strides = array<i32>} : memref<64x128xf32, #tpu.memory_space<vmem>>, vector<64x8xf32>,
    %215 = vector.extract_strided_slice %92 {offsets = [0, 11], sizes = [64, 1], strides = [1, 1]} : vector<64x16xf32> to vector<64x1xf32>
    %216 = vector.broadcast %215 : vector<64x1xf32> to vector<64x8xf32>
    %217 = vector.broadcast %93 : vector<1x8xf32> to vector<64x8xf32>
    %218 = arith.subf %216, %217 : vector<64x8xf32>
    %cst_74 = arith.constant 1.07014894 : f32
    %219 = vector.broadcast %cst_74 : f32 to vector<64x8xf32>
    %220 = arith.mulf %218, %219 : vector<64x8xf32>
    %221 = arith.mulf %220, %220 : vector<64x8xf32>
    %cst_75 = arith.constant 0.000000e+00 : f32
    %222 = vector.broadcast %cst_75 : f32 to vector<64x8xf32>
    %223 = arith.subf %222, %221 : vector<64x8xf32>
    %224 = math.exp %223 : vector<64x8xf32>
    %c0_76 = arith.constant 0 : index
    %c88 = arith.constant 88 : index
    %225 = vector.load %arg7[%c0_76, %c88] : memref<64x128xf32, #tpu.memory_space<vmem>>, vector<64x8xf32>
    tpu.vector_store %arg7[%c0_76, %c88], %224 {strides = array<i32>} : memref<64x128xf32, #tpu.memory_space<vmem>>, vector<64x8xf32>,
    %226 = vector.extract_strided_slice %92 {offsets = [0, 12], sizes = [64, 1], strides = [1, 1]} : vector<64x16xf32> to vector<64x1xf32>
    %227 = vector.broadcast %226 : vector<64x1xf32> to vector<64x8xf32>
    %228 = vector.broadcast %93 : vector<1x8xf32> to vector<64x8xf32>
    %229 = arith.subf %227, %228 : vector<64x8xf32>
    %cst_77 = arith.constant 1.07014894 : f32
    %230 = vector.broadcast %cst_77 : f32 to vector<64x8xf32>
    %231 = arith.mulf %229, %230 : vector<64x8xf32>
    %232 = arith.mulf %231, %231 : vector<64x8xf32>
    %cst_78 = arith.constant 0.000000e+00 : f32
    %233 = vector.broadcast %cst_78 : f32 to vector<64x8xf32>
    %234 = arith.subf %233, %232 : vector<64x8xf32>
    %235 = math.exp %234 : vector<64x8xf32>
    %c0_79 = arith.constant 0 : index
    %c96 = arith.constant 96 : index
    %236 = vector.load %arg7[%c0_79, %c96] : memref<64x128xf32, #tpu.memory_space<vmem>>, vector<64x8xf32>
    tpu.vector_store %arg7[%c0_79, %c96], %235 {strides = array<i32>} : memref<64x128xf32, #tpu.memory_space<vmem>>, vector<64x8xf32>,
    %237 = vector.extract_strided_slice %92 {offsets = [0, 13], sizes = [64, 1], strides = [1, 1]} : vector<64x16xf32> to vector<64x1xf32>
    %238 = vector.broadcast %237 : vector<64x1xf32> to vector<64x8xf32>
    %239 = vector.broadcast %93 : vector<1x8xf32> to vector<64x8xf32>
    %240 = arith.subf %238, %239 : vector<64x8xf32>
    %cst_80 = arith.constant 1.07014894 : f32
    %241 = vector.broadcast %cst_80 : f32 to vector<64x8xf32>
    %242 = arith.mulf %240, %241 : vector<64x8xf32>
    %243 = arith.mulf %242, %242 : vector<64x8xf32>
    %cst_81 = arith.constant 0.000000e+00 : f32
    %244 = vector.broadcast %cst_81 : f32 to vector<64x8xf32>
    %245 = arith.subf %244, %243 : vector<64x8xf32>
    %246 = math.exp %245 : vector<64x8xf32>
    %c0_82 = arith.constant 0 : index
    %c104 = arith.constant 104 : index
    %247 = vector.load %arg7[%c0_82, %c104] : memref<64x128xf32, #tpu.memory_space<vmem>>, vector<64x8xf32>
    tpu.vector_store %arg7[%c0_82, %c104], %246 {strides = array<i32>} : memref<64x128xf32, #tpu.memory_space<vmem>>, vector<64x8xf32>,
    %248 = vector.extract_strided_slice %92 {offsets = [0, 14], sizes = [64, 1], strides = [1, 1]} : vector<64x16xf32> to vector<64x1xf32>
    %249 = vector.broadcast %248 : vector<64x1xf32> to vector<64x8xf32>
    %250 = vector.broadcast %93 : vector<1x8xf32> to vector<64x8xf32>
    %251 = arith.subf %249, %250 : vector<64x8xf32>
    %cst_83 = arith.constant 1.07014894 : f32
    %252 = vector.broadcast %cst_83 : f32 to vector<64x8xf32>
    %253 = arith.mulf %251, %252 : vector<64x8xf32>
    %254 = arith.mulf %253, %253 : vector<64x8xf32>
    %cst_84 = arith.constant 0.000000e+00 : f32
    %255 = vector.broadcast %cst_84 : f32 to vector<64x8xf32>
    %256 = arith.subf %255, %254 : vector<64x8xf32>
    %257 = math.exp %256 : vector<64x8xf32>
    %c0_85 = arith.constant 0 : index
    %c112 = arith.constant 112 : index
    %258 = vector.load %arg7[%c0_85, %c112] : memref<64x128xf32, #tpu.memory_space<vmem>>, vector<64x8xf32>
    tpu.vector_store %arg7[%c0_85, %c112], %257 {strides = array<i32>} : memref<64x128xf32, #tpu.memory_space<vmem>>, vector<64x8xf32>,
    %259 = vector.extract_strided_slice %92 {offsets = [0, 15], sizes = [64, 1], strides = [1, 1]} : vector<64x16xf32> to vector<64x1xf32>
    %260 = vector.broadcast %259 : vector<64x1xf32> to vector<64x8xf32>
    %261 = vector.broadcast %93 : vector<1x8xf32> to vector<64x8xf32>
    %262 = arith.subf %260, %261 : vector<64x8xf32>
    %cst_86 = arith.constant 1.07014894 : f32
    %263 = vector.broadcast %cst_86 : f32 to vector<64x8xf32>
    %264 = arith.mulf %262, %263 : vector<64x8xf32>
    %265 = arith.mulf %264, %264 : vector<64x8xf32>
    %cst_87 = arith.constant 0.000000e+00 : f32
    %266 = vector.broadcast %cst_87 : f32 to vector<64x8xf32>
    %267 = arith.subf %266, %265 : vector<64x8xf32>
    %268 = math.exp %267 : vector<64x8xf32>
    %c0_88 = arith.constant 0 : index
    %c120 = arith.constant 120 : index
    %269 = vector.load %arg7[%c0_88, %c120] : memref<64x128xf32, #tpu.memory_space<vmem>>, vector<64x8xf32>
    tpu.vector_store %arg7[%c0_88, %c120], %268 {strides = array<i32>} : memref<64x128xf32, #tpu.memory_space<vmem>>, vector<64x8xf32>,
    %c0_89 = arith.constant 0 : index
    %c0_90 = arith.constant 0 : index
    %270 = vector.load %arg7[%c0_89, %c0_90] : memref<64x128xf32, #tpu.memory_space<vmem>>, vector<64x128xf32>
    %c0_91 = arith.constant 0 : index
    %c0_92 = arith.constant 0 : index
    %271 = vector.load %arg4[%c0_91, %c0_92] : memref<128x16xf32, #tpu.memory_space<vmem>>, vector<128x16xf32>
    %cst_93 = arith.constant dense<0.000000e+00> : vector<64x16xf32>
    %272 = tpu.matmul %270, %271, %cst_93 {dimension_numbers = #tpu.dot_dimension_numbers<[1], [0], [0], [1], [0, 0, 1, 1], [], []>} : vector<64x128xf32>, vector<128x16xf32>, vector<64x16xf32> -> vector<64x16xf32>
    %c2 = arith.constant 2 : index
    %c0_94 = arith.constant 0 : index
    %273 = vector.load %arg2[%c2, %c0_94] : memref<3x8xf32, #tpu.memory_space<vmem>>, vector<1x8xf32>
    %274 = vector.extract_strided_slice %272 {offsets = [0, 0], sizes = [64, 1], strides = [1, 1]} : vector<64x16xf32> to vector<64x1xf32>
    %275 = vector.broadcast %274 : vector<64x1xf32> to vector<64x8xf32>
    %276 = vector.broadcast %273 : vector<1x8xf32> to vector<64x8xf32>
    %277 = arith.subf %275, %276 : vector<64x8xf32>
    %cst_95 = arith.constant 1.07014894 : f32
    %278 = vector.broadcast %cst_95 : f32 to vector<64x8xf32>
    %279 = arith.mulf %277, %278 : vector<64x8xf32>
    %280 = arith.mulf %279, %279 : vector<64x8xf32>
    %cst_96 = arith.constant 0.000000e+00 : f32
    %281 = vector.broadcast %cst_96 : f32 to vector<64x8xf32>
    %282 = arith.subf %281, %280 : vector<64x8xf32>
    %283 = math.exp %282 : vector<64x8xf32>
    %c0_97 = arith.constant 0 : index
    %c0_98 = arith.constant 0 : index
    %284 = vector.load %arg7[%c0_97, %c0_98] : memref<64x128xf32, #tpu.memory_space<vmem>>, vector<64x8xf32>
    tpu.vector_store %arg7[%c0_97, %c0_98], %283 {strides = array<i32>} : memref<64x128xf32, #tpu.memory_space<vmem>>, vector<64x8xf32>,
    %285 = vector.extract_strided_slice %272 {offsets = [0, 1], sizes = [64, 1], strides = [1, 1]} : vector<64x16xf32> to vector<64x1xf32>
    %286 = vector.broadcast %285 : vector<64x1xf32> to vector<64x8xf32>
    %287 = vector.broadcast %273 : vector<1x8xf32> to vector<64x8xf32>
    %288 = arith.subf %286, %287 : vector<64x8xf32>
    %cst_99 = arith.constant 1.07014894 : f32
    %289 = vector.broadcast %cst_99 : f32 to vector<64x8xf32>
    %290 = arith.mulf %288, %289 : vector<64x8xf32>
    %291 = arith.mulf %290, %290 : vector<64x8xf32>
    %cst_100 = arith.constant 0.000000e+00 : f32
    %292 = vector.broadcast %cst_100 : f32 to vector<64x8xf32>
    %293 = arith.subf %292, %291 : vector<64x8xf32>
    %294 = math.exp %293 : vector<64x8xf32>
    %c0_101 = arith.constant 0 : index
    %c8_102 = arith.constant 8 : index
    %295 = vector.load %arg7[%c0_101, %c8_102] : memref<64x128xf32, #tpu.memory_space<vmem>>, vector<64x8xf32>
    tpu.vector_store %arg7[%c0_101, %c8_102], %294 {strides = array<i32>} : memref<64x128xf32, #tpu.memory_space<vmem>>, vector<64x8xf32>,
    %296 = vector.extract_strided_slice %272 {offsets = [0, 2], sizes = [64, 1], strides = [1, 1]} : vector<64x16xf32> to vector<64x1xf32>
    %297 = vector.broadcast %296 : vector<64x1xf32> to vector<64x8xf32>
    %298 = vector.broadcast %273 : vector<1x8xf32> to vector<64x8xf32>
    %299 = arith.subf %297, %298 : vector<64x8xf32>
    %cst_103 = arith.constant 1.07014894 : f32
    %300 = vector.broadcast %cst_103 : f32 to vector<64x8xf32>
    %301 = arith.mulf %299, %300 : vector<64x8xf32>
    %302 = arith.mulf %301, %301 : vector<64x8xf32>
    %cst_104 = arith.constant 0.000000e+00 : f32
    %303 = vector.broadcast %cst_104 : f32 to vector<64x8xf32>
    %304 = arith.subf %303, %302 : vector<64x8xf32>
    %305 = math.exp %304 : vector<64x8xf32>
    %c0_105 = arith.constant 0 : index
    %c16_106 = arith.constant 16 : index
    %306 = vector.load %arg7[%c0_105, %c16_106] : memref<64x128xf32, #tpu.memory_space<vmem>>, vector<64x8xf32>
    tpu.vector_store %arg7[%c0_105, %c16_106], %305 {strides = array<i32>} : memref<64x128xf32, #tpu.memory_space<vmem>>, vector<64x8xf32>,
    %307 = vector.extract_strided_slice %272 {offsets = [0, 3], sizes = [64, 1], strides = [1, 1]} : vector<64x16xf32> to vector<64x1xf32>
    %308 = vector.broadcast %307 : vector<64x1xf32> to vector<64x8xf32>
    %309 = vector.broadcast %273 : vector<1x8xf32> to vector<64x8xf32>
    %310 = arith.subf %308, %309 : vector<64x8xf32>
    %cst_107 = arith.constant 1.07014894 : f32
    %311 = vector.broadcast %cst_107 : f32 to vector<64x8xf32>
    %312 = arith.mulf %310, %311 : vector<64x8xf32>
    %313 = arith.mulf %312, %312 : vector<64x8xf32>
    %cst_108 = arith.constant 0.000000e+00 : f32
    %314 = vector.broadcast %cst_108 : f32 to vector<64x8xf32>
    %315 = arith.subf %314, %313 : vector<64x8xf32>
    %316 = math.exp %315 : vector<64x8xf32>
    %c0_109 = arith.constant 0 : index
    %c24_110 = arith.constant 24 : index
    %317 = vector.load %arg7[%c0_109, %c24_110] : memref<64x128xf32, #tpu.memory_space<vmem>>, vector<64x8xf32>
    tpu.vector_store %arg7[%c0_109, %c24_110], %316 {strides = array<i32>} : memref<64x128xf32, #tpu.memory_space<vmem>>, vector<64x8xf32>,
    %318 = vector.extract_strided_slice %272 {offsets = [0, 4], sizes = [64, 1], strides = [1, 1]} : vector<64x16xf32> to vector<64x1xf32>
    %319 = vector.broadcast %318 : vector<64x1xf32> to vector<64x8xf32>
    %320 = vector.broadcast %273 : vector<1x8xf32> to vector<64x8xf32>
    %321 = arith.subf %319, %320 : vector<64x8xf32>
    %cst_111 = arith.constant 1.07014894 : f32
    %322 = vector.broadcast %cst_111 : f32 to vector<64x8xf32>
    %323 = arith.mulf %321, %322 : vector<64x8xf32>
    %324 = arith.mulf %323, %323 : vector<64x8xf32>
    %cst_112 = arith.constant 0.000000e+00 : f32
    %325 = vector.broadcast %cst_112 : f32 to vector<64x8xf32>
    %326 = arith.subf %325, %324 : vector<64x8xf32>
    %327 = math.exp %326 : vector<64x8xf32>
    %c0_113 = arith.constant 0 : index
    %c32_114 = arith.constant 32 : index
    %328 = vector.load %arg7[%c0_113, %c32_114] : memref<64x128xf32, #tpu.memory_space<vmem>>, vector<64x8xf32>
    tpu.vector_store %arg7[%c0_113, %c32_114], %327 {strides = array<i32>} : memref<64x128xf32, #tpu.memory_space<vmem>>, vector<64x8xf32>,
    %329 = vector.extract_strided_slice %272 {offsets = [0, 5], sizes = [64, 1], strides = [1, 1]} : vector<64x16xf32> to vector<64x1xf32>
    %330 = vector.broadcast %329 : vector<64x1xf32> to vector<64x8xf32>
    %331 = vector.broadcast %273 : vector<1x8xf32> to vector<64x8xf32>
    %332 = arith.subf %330, %331 : vector<64x8xf32>
    %cst_115 = arith.constant 1.07014894 : f32
    %333 = vector.broadcast %cst_115 : f32 to vector<64x8xf32>
    %334 = arith.mulf %332, %333 : vector<64x8xf32>
    %335 = arith.mulf %334, %334 : vector<64x8xf32>
    %cst_116 = arith.constant 0.000000e+00 : f32
    %336 = vector.broadcast %cst_116 : f32 to vector<64x8xf32>
    %337 = arith.subf %336, %335 : vector<64x8xf32>
    %338 = math.exp %337 : vector<64x8xf32>
    %c0_117 = arith.constant 0 : index
    %c40_118 = arith.constant 40 : index
    %339 = vector.load %arg7[%c0_117, %c40_118] : memref<64x128xf32, #tpu.memory_space<vmem>>, vector<64x8xf32>
    tpu.vector_store %arg7[%c0_117, %c40_118], %338 {strides = array<i32>} : memref<64x128xf32, #tpu.memory_space<vmem>>, vector<64x8xf32>,
    %340 = vector.extract_strided_slice %272 {offsets = [0, 6], sizes = [64, 1], strides = [1, 1]} : vector<64x16xf32> to vector<64x1xf32>
    %341 = vector.broadcast %340 : vector<64x1xf32> to vector<64x8xf32>
    %342 = vector.broadcast %273 : vector<1x8xf32> to vector<64x8xf32>
    %343 = arith.subf %341, %342 : vector<64x8xf32>
    %cst_119 = arith.constant 1.07014894 : f32
    %344 = vector.broadcast %cst_119 : f32 to vector<64x8xf32>
    %345 = arith.mulf %343, %344 : vector<64x8xf32>
    %346 = arith.mulf %345, %345 : vector<64x8xf32>
    %cst_120 = arith.constant 0.000000e+00 : f32
    %347 = vector.broadcast %cst_120 : f32 to vector<64x8xf32>
    %348 = arith.subf %347, %346 : vector<64x8xf32>
    %349 = math.exp %348 : vector<64x8xf32>
    %c0_121 = arith.constant 0 : index
    %c48_122 = arith.constant 48 : index
    %350 = vector.load %arg7[%c0_121, %c48_122] : memref<64x128xf32, #tpu.memory_space<vmem>>, vector<64x8xf32>
    tpu.vector_store %arg7[%c0_121, %c48_122], %349 {strides = array<i32>} : memref<64x128xf32, #tpu.memory_space<vmem>>, vector<64x8xf32>,
    %351 = vector.extract_strided_slice %272 {offsets = [0, 7], sizes = [64, 1], strides = [1, 1]} : vector<64x16xf32> to vector<64x1xf32>
    %352 = vector.broadcast %351 : vector<64x1xf32> to vector<64x8xf32>
    %353 = vector.broadcast %273 : vector<1x8xf32> to vector<64x8xf32>
    %354 = arith.subf %352, %353 : vector<64x8xf32>
    %cst_123 = arith.constant 1.07014894 : f32
    %355 = vector.broadcast %cst_123 : f32 to vector<64x8xf32>
    %356 = arith.mulf %354, %355 : vector<64x8xf32>
    %357 = arith.mulf %356, %356 : vector<64x8xf32>
    %cst_124 = arith.constant 0.000000e+00 : f32
    %358 = vector.broadcast %cst_124 : f32 to vector<64x8xf32>
    %359 = arith.subf %358, %357 : vector<64x8xf32>
    %360 = math.exp %359 : vector<64x8xf32>
    %c0_125 = arith.constant 0 : index
    %c56_126 = arith.constant 56 : index
    %361 = vector.load %arg7[%c0_125, %c56_126] : memref<64x128xf32, #tpu.memory_space<vmem>>, vector<64x8xf32>
    tpu.vector_store %arg7[%c0_125, %c56_126], %360 {strides = array<i32>} : memref<64x128xf32, #tpu.memory_space<vmem>>, vector<64x8xf32>,
    %362 = vector.extract_strided_slice %272 {offsets = [0, 8], sizes = [64, 1], strides = [1, 1]} : vector<64x16xf32> to vector<64x1xf32>
    %363 = vector.broadcast %362 : vector<64x1xf32> to vector<64x8xf32>
    %364 = vector.broadcast %273 : vector<1x8xf32> to vector<64x8xf32>
    %365 = arith.subf %363, %364 : vector<64x8xf32>
    %cst_127 = arith.constant 1.07014894 : f32
    %366 = vector.broadcast %cst_127 : f32 to vector<64x8xf32>
    %367 = arith.mulf %365, %366 : vector<64x8xf32>
    %368 = arith.mulf %367, %367 : vector<64x8xf32>
    %cst_128 = arith.constant 0.000000e+00 : f32
    %369 = vector.broadcast %cst_128 : f32 to vector<64x8xf32>
    %370 = arith.subf %369, %368 : vector<64x8xf32>
    %371 = math.exp %370 : vector<64x8xf32>
    %c0_129 = arith.constant 0 : index
    %c64_130 = arith.constant 64 : index
    %372 = vector.load %arg7[%c0_129, %c64_130] : memref<64x128xf32, #tpu.memory_space<vmem>>, vector<64x8xf32>
    tpu.vector_store %arg7[%c0_129, %c64_130], %371 {strides = array<i32>} : memref<64x128xf32, #tpu.memory_space<vmem>>, vector<64x8xf32>,
    %373 = vector.extract_strided_slice %272 {offsets = [0, 9], sizes = [64, 1], strides = [1, 1]} : vector<64x16xf32> to vector<64x1xf32>
    %374 = vector.broadcast %373 : vector<64x1xf32> to vector<64x8xf32>
    %375 = vector.broadcast %273 : vector<1x8xf32> to vector<64x8xf32>
    %376 = arith.subf %374, %375 : vector<64x8xf32>
    %cst_131 = arith.constant 1.07014894 : f32
    %377 = vector.broadcast %cst_131 : f32 to vector<64x8xf32>
    %378 = arith.mulf %376, %377 : vector<64x8xf32>
    %379 = arith.mulf %378, %378 : vector<64x8xf32>
    %cst_132 = arith.constant 0.000000e+00 : f32
    %380 = vector.broadcast %cst_132 : f32 to vector<64x8xf32>
    %381 = arith.subf %380, %379 : vector<64x8xf32>
    %382 = math.exp %381 : vector<64x8xf32>
    %c0_133 = arith.constant 0 : index
    %c72_134 = arith.constant 72 : index
    %383 = vector.load %arg7[%c0_133, %c72_134] : memref<64x128xf32, #tpu.memory_space<vmem>>, vector<64x8xf32>
    tpu.vector_store %arg7[%c0_133, %c72_134], %382 {strides = array<i32>} : memref<64x128xf32, #tpu.memory_space<vmem>>, vector<64x8xf32>,
    %384 = vector.extract_strided_slice %272 {offsets = [0, 10], sizes = [64, 1], strides = [1, 1]} : vector<64x16xf32> to vector<64x1xf32>
    %385 = vector.broadcast %384 : vector<64x1xf32> to vector<64x8xf32>
    %386 = vector.broadcast %273 : vector<1x8xf32> to vector<64x8xf32>
    %387 = arith.subf %385, %386 : vector<64x8xf32>
    %cst_135 = arith.constant 1.07014894 : f32
    %388 = vector.broadcast %cst_135 : f32 to vector<64x8xf32>
    %389 = arith.mulf %387, %388 : vector<64x8xf32>
    %390 = arith.mulf %389, %389 : vector<64x8xf32>
    %cst_136 = arith.constant 0.000000e+00 : f32
    %391 = vector.broadcast %cst_136 : f32 to vector<64x8xf32>
    %392 = arith.subf %391, %390 : vector<64x8xf32>
    %393 = math.exp %392 : vector<64x8xf32>
    %c0_137 = arith.constant 0 : index
    %c80_138 = arith.constant 80 : index
    %394 = vector.load %arg7[%c0_137, %c80_138] : memref<64x128xf32, #tpu.memory_space<vmem>>, vector<64x8xf32>
    tpu.vector_store %arg7[%c0_137, %c80_138], %393 {strides = array<i32>} : memref<64x128xf32, #tpu.memory_space<vmem>>, vector<64x8xf32>,
    %395 = vector.extract_strided_slice %272 {offsets = [0, 11], sizes = [64, 1], strides = [1, 1]} : vector<64x16xf32> to vector<64x1xf32>
    %396 = vector.broadcast %395 : vector<64x1xf32> to vector<64x8xf32>
    %397 = vector.broadcast %273 : vector<1x8xf32> to vector<64x8xf32>
    %398 = arith.subf %396, %397 : vector<64x8xf32>
    %cst_139 = arith.constant 1.07014894 : f32
    %399 = vector.broadcast %cst_139 : f32 to vector<64x8xf32>
    %400 = arith.mulf %398, %399 : vector<64x8xf32>
    %401 = arith.mulf %400, %400 : vector<64x8xf32>
    %cst_140 = arith.constant 0.000000e+00 : f32
    %402 = vector.broadcast %cst_140 : f32 to vector<64x8xf32>
    %403 = arith.subf %402, %401 : vector<64x8xf32>
    %404 = math.exp %403 : vector<64x8xf32>
    %c0_141 = arith.constant 0 : index
    %c88_142 = arith.constant 88 : index
    %405 = vector.load %arg7[%c0_141, %c88_142] : memref<64x128xf32, #tpu.memory_space<vmem>>, vector<64x8xf32>
    tpu.vector_store %arg7[%c0_141, %c88_142], %404 {strides = array<i32>} : memref<64x128xf32, #tpu.memory_space<vmem>>, vector<64x8xf32>,
    %406 = vector.extract_strided_slice %272 {offsets = [0, 12], sizes = [64, 1], strides = [1, 1]} : vector<64x16xf32> to vector<64x1xf32>
    %407 = vector.broadcast %406 : vector<64x1xf32> to vector<64x8xf32>
    %408 = vector.broadcast %273 : vector<1x8xf32> to vector<64x8xf32>
    %409 = arith.subf %407, %408 : vector<64x8xf32>
    %cst_143 = arith.constant 1.07014894 : f32
    %410 = vector.broadcast %cst_143 : f32 to vector<64x8xf32>
    %411 = arith.mulf %409, %410 : vector<64x8xf32>
    %412 = arith.mulf %411, %411 : vector<64x8xf32>
    %cst_144 = arith.constant 0.000000e+00 : f32
    %413 = vector.broadcast %cst_144 : f32 to vector<64x8xf32>
    %414 = arith.subf %413, %412 : vector<64x8xf32>
    %415 = math.exp %414 : vector<64x8xf32>
    %c0_145 = arith.constant 0 : index
    %c96_146 = arith.constant 96 : index
    %416 = vector.load %arg7[%c0_145, %c96_146] : memref<64x128xf32, #tpu.memory_space<vmem>>, vector<64x8xf32>
    tpu.vector_store %arg7[%c0_145, %c96_146], %415 {strides = array<i32>} : memref<64x128xf32, #tpu.memory_space<vmem>>, vector<64x8xf32>,
    %417 = vector.extract_strided_slice %272 {offsets = [0, 13], sizes = [64, 1], strides = [1, 1]} : vector<64x16xf32> to vector<64x1xf32>
    %418 = vector.broadcast %417 : vector<64x1xf32> to vector<64x8xf32>
    %419 = vector.broadcast %273 : vector<1x8xf32> to vector<64x8xf32>
    %420 = arith.subf %418, %419 : vector<64x8xf32>
    %cst_147 = arith.constant 1.07014894 : f32
    %421 = vector.broadcast %cst_147 : f32 to vector<64x8xf32>
    %422 = arith.mulf %420, %421 : vector<64x8xf32>
    %423 = arith.mulf %422, %422 : vector<64x8xf32>
    %cst_148 = arith.constant 0.000000e+00 : f32
    %424 = vector.broadcast %cst_148 : f32 to vector<64x8xf32>
    %425 = arith.subf %424, %423 : vector<64x8xf32>
    %426 = math.exp %425 : vector<64x8xf32>
    %c0_149 = arith.constant 0 : index
    %c104_150 = arith.constant 104 : index
    %427 = vector.load %arg7[%c0_149, %c104_150] : memref<64x128xf32, #tpu.memory_space<vmem>>, vector<64x8xf32>
    tpu.vector_store %arg7[%c0_149, %c104_150], %426 {strides = array<i32>} : memref<64x128xf32, #tpu.memory_space<vmem>>, vector<64x8xf32>,
    %428 = vector.extract_strided_slice %272 {offsets = [0, 14], sizes = [64, 1], strides = [1, 1]} : vector<64x16xf32> to vector<64x1xf32>
    %429 = vector.broadcast %428 : vector<64x1xf32> to vector<64x8xf32>
    %430 = vector.broadcast %273 : vector<1x8xf32> to vector<64x8xf32>
    %431 = arith.subf %429, %430 : vector<64x8xf32>
    %cst_151 = arith.constant 1.07014894 : f32
    %432 = vector.broadcast %cst_151 : f32 to vector<64x8xf32>
    %433 = arith.mulf %431, %432 : vector<64x8xf32>
    %434 = arith.mulf %433, %433 : vector<64x8xf32>
    %cst_152 = arith.constant 0.000000e+00 : f32
    %435 = vector.broadcast %cst_152 : f32 to vector<64x8xf32>
    %436 = arith.subf %435, %434 : vector<64x8xf32>
    %437 = math.exp %436 : vector<64x8xf32>
    %c0_153 = arith.constant 0 : index
    %c112_154 = arith.constant 112 : index
    %438 = vector.load %arg7[%c0_153, %c112_154] : memref<64x128xf32, #tpu.memory_space<vmem>>, vector<64x8xf32>
    tpu.vector_store %arg7[%c0_153, %c112_154], %437 {strides = array<i32>} : memref<64x128xf32, #tpu.memory_space<vmem>>, vector<64x8xf32>,
    %439 = vector.extract_strided_slice %272 {offsets = [0, 15], sizes = [64, 1], strides = [1, 1]} : vector<64x16xf32> to vector<64x1xf32>
    %440 = vector.broadcast %439 : vector<64x1xf32> to vector<64x8xf32>
    %441 = vector.broadcast %273 : vector<1x8xf32> to vector<64x8xf32>
    %442 = arith.subf %440, %441 : vector<64x8xf32>
    %cst_155 = arith.constant 1.07014894 : f32
    %443 = vector.broadcast %cst_155 : f32 to vector<64x8xf32>
    %444 = arith.mulf %442, %443 : vector<64x8xf32>
    %445 = arith.mulf %444, %444 : vector<64x8xf32>
    %cst_156 = arith.constant 0.000000e+00 : f32
    %446 = vector.broadcast %cst_156 : f32 to vector<64x8xf32>
    %447 = arith.subf %446, %445 : vector<64x8xf32>
    %448 = math.exp %447 : vector<64x8xf32>
    %c0_157 = arith.constant 0 : index
    %c120_158 = arith.constant 120 : index
    %449 = vector.load %arg7[%c0_157, %c120_158] : memref<64x128xf32, #tpu.memory_space<vmem>>, vector<64x8xf32>
    tpu.vector_store %arg7[%c0_157, %c120_158], %448 {strides = array<i32>} : memref<64x128xf32, #tpu.memory_space<vmem>>, vector<64x8xf32>,
    %c0_159 = arith.constant 0 : index
    %c0_160 = arith.constant 0 : index
    %450 = vector.load %arg7[%c0_159, %c0_160] : memref<64x128xf32, #tpu.memory_space<vmem>>, vector<64x128xf32>
    %c0_161 = arith.constant 0 : index
    %c0_162 = arith.constant 0 : index
    %451 = vector.load %arg5[%c0_161, %c0_162] : memref<128x128xf32, #tpu.memory_space<vmem>>, vector<128x128xf32>
    %cst_163 = arith.constant dense<0.000000e+00> : vector<64x128xf32>
    %452 = tpu.matmul %450, %451, %cst_163 {dimension_numbers = #tpu.dot_dimension_numbers<[1], [0], [0], [1], [0, 0, 1, 1], [], []>} : vector<64x128xf32>, vector<128x128xf32>, vector<64x128xf32> -> vector<64x128xf32>
    %c0_164 = arith.constant 0 : index
    %c0_165 = arith.constant 0 : index
    %453 = vector.load %arg6[%c0_164, %c0_165] : memref<64x128xf32, #tpu.memory_space<vmem>>, vector<64x128xf32>
    tpu.vector_store %arg6[%c0_164, %c0_165], %452 {strides = array<i32>} : memref<64x128xf32, #tpu.memory_space<vmem>>, vector<64x128xf32>,
    return
  }
  func.func @transform_0(%arg0: i32) -> (i32, i32) {
    %c0_i32 = arith.constant 0 : i32
    %c0_i32_0 = arith.constant 0 : i32
    return %arg0, %c0_i32 : i32, i32
  }
  func.func @transform_1(%arg0: i32) -> (i32, i32) {
    %c0_i32 = arith.constant 0 : i32
    %c0_i32_0 = arith.constant 0 : i32
    %c0_i32_1 = arith.constant 0 : i32
    return %c0_i32, %c0_i32_0 : i32, i32
  }
  func.func @transform_2(%arg0: i32) -> (i32, i32) {
    %c0_i32 = arith.constant 0 : i32
    %c0_i32_0 = arith.constant 0 : i32
    %c0_i32_1 = arith.constant 0 : i32
    return %c0_i32, %c0_i32_0 : i32, i32
  }
  func.func @transform_3(%arg0: i32) -> (i32, i32) {
    %c0_i32 = arith.constant 0 : i32
    %c0_i32_0 = arith.constant 0 : i32
    %c0_i32_1 = arith.constant 0 : i32
    return %c0_i32, %c0_i32_0 : i32, i32
  }
  func.func @transform_4(%arg0: i32) -> (i32, i32) {
    %c0_i32 = arith.constant 0 : i32
    %c0_i32_0 = arith.constant 0 : i32
    %c0_i32_1 = arith.constant 0 : i32
    return %c0_i32, %c0_i32_0 : i32, i32
  }
  func.func @transform_5(%arg0: i32) -> (i32, i32) {
    %c0_i32 = arith.constant 0 : i32
    %c0_i32_0 = arith.constant 0 : i32
    return %arg0, %c0_i32 : i32, i32
  }
}

</mosaic_0001>

<llo_original>
// kernel: tpu_custom_call.1
$region0: #{tpu_custom_call.1}
  #allocation0 [shape = 'u32[]', space=smem, size = 0x4, offset = 0x4, fixed_abs, tag = 'smem constant byte address 0x4 - core index']
  #allocation1 [shape = 'u32[144,128]{1,0:T(1,128)}', space=vmem, size = 0x12000, scoped, tag = 'internal scratch']
  #allocation2 [shape = 'f32[64,128]{1,0:T(8,128)}', space=vmem, size = 0x8000, scoped, tag = 'scratch operand']
  %s0 = inlined_call_operand.vmem [shape: f32[64,8], index: 0, kind: input, shape index: {}]
  %s1 = inlined_call_operand.vmem [shape: f32[3,8], index: 1, kind: input, shape index: {}]
  %s2 = inlined_call_operand.vmem [shape: f32[64,16], index: 2, kind: input, shape index: {}]
  %s3 = inlined_call_operand.vmem [shape: f32[128,16], index: 3, kind: input, shape index: {}]
  %s4 = inlined_call_operand.vmem [shape: f32[128,128], index: 4, kind: input, shape index: {}]
  %s5 = inlined_call_operand.hbm [shape: f32[64,128], index: 5, kind: output, shape index: {}]
  %s6 = sld [smem:[#allocation0]]
  $region30: #{tpu_custom_call.1} parent=0
    _
  %s8 = ssub.s32 1, %s6
  %s9 = scalar_select 0, %s8, %s6
  $region1: #{tpu_custom_call.1} parent=0
    #allocation3 [shape = 'u8[32768]{0}', space=vmem, size = 0x8000, scoped, tag = 'output window, operand 0, single buffered']
    #allocation4 [shape = 's32[1]{0}', space=sflag, size = 0x4, scoped, tag = 'scoped memory for tpu_custom_call.1']
    %10 = vsyncpa [#allocation4], 0
    // Predicated region
    $region2: #{tpu_custom_call.1} parent=1 // pred_check
      _
    $region3: #{tpu_custom_call.1} parent=1 // pred_check_branch
      %12 = sbr.rel (0) target = $region5
    $region4: #{tpu_custom_call.1} parent=1 // pred_region
      _
    $region5: #{tpu_custom_call.1} parent=1 // pred_fallthru
      _
    // Predicated region
    $region6: #{tpu_custom_call.1} parent=1 // pred_check
      _
    $region7: #{tpu_custom_call.1} parent=1 // pred_check_branch
      %14 = sbr.rel (0) target = $region9
    $region8: #{tpu_custom_call.1} parent=1 // pred_region
      _
    $region9: #{tpu_custom_call.1} parent=1 // pred_fallthru
      _
    // Predicated region
    $region10: #{tpu_custom_call.1} parent=1 // pred_check
      _
    $region11: #{tpu_custom_call.1} parent=1 // pred_check_branch
      %16 = sbr.rel (0) target = $region13
    $region12: #{tpu_custom_call.1} parent=1 // pred_region
      _
    $region13: #{tpu_custom_call.1} parent=1 // pred_fallthru
      _
    // Predicated region
    $region14: #{tpu_custom_call.1} parent=1 // pred_check
      _
    $region15: #{tpu_custom_call.1} parent=1 // pred_check_branch
      %18 = sbr.rel (0) target = $region17
    $region16: #{tpu_custom_call.1} parent=1 // pred_region
      _
    $region17: #{tpu_custom_call.1} parent=1 // pred_fallthru
      _
    // Predicated region
    $region18: #{tpu_custom_call.1} parent=1 // pred_check
      _
    $region19: #{tpu_custom_call.1} parent=1 // pred_check_branch
      %20 = sbr.rel (0) target = $region21
    $region20: #{tpu_custom_call.1} parent=1 // pred_region
      _
    $region21: #{tpu_custom_call.1} parent=1 // pred_fallthru
      _
    %v21 = vld [vmem:[%s0] sm:$0xff]
    %v22 = vld [vmem:[%s0 + $0x8] sm:$0xff]
    %v23 = vld [vmem:[%s0 + $0x10] sm:$0xff]
    %v24 = vld [vmem:[%s0 + $0x18] sm:$0xff]
    %v25 = vld [vmem:[%s0 + $0x20] sm:$0xff]
    %v26 = vld [vmem:[%s0 + $0x28] sm:$0xff]
    %v27 = vld [vmem:[%s0 + $0x30] sm:$0xff]
    %v28 = vld [vmem:[%s0 + $0x38] sm:$0xff]
    %v29 = vld [vmem:[%s1] sm:$0x1]
    %31 = vset.pattern.permute.xlu0 0
    %32 = vperm.xlu0 %31, %v21
    %v33 = vpop.permute.xlu0 %32
    %36 = vset.pattern.permute.xlu0 0
    %37 = vperm.xlu0 %36, %v22
    %v38 = vpop.permute.xlu0 %37
    %41 = vset.pattern.permute.xlu0 0
    %42 = vperm.xlu0 %41, %v23
    %v43 = vpop.permute.xlu0 %42
    %46 = vset.pattern.permute.xlu0 0
    %47 = vperm.xlu0 %46, %v24
    %v48 = vpop.permute.xlu0 %47
    %51 = vset.pattern.permute.xlu0 0
    %52 = vperm.xlu0 %51, %v25
    %v53 = vpop.permute.xlu0 %52
    %56 = vset.pattern.permute.xlu0 0
    %57 = vperm.xlu0 %56, %v26
    %v58 = vpop.permute.xlu0 %57
    %61 = vset.pattern.permute.xlu0 0
    %62 = vperm.xlu0 %61, %v27
    %v63 = vpop.permute.xlu0 %62
    %66 = vset.pattern.permute.xlu0 0
    %67 = vperm.xlu0 %66, %v28
    %v68 = vpop.permute.xlu0 %67
    %v70 = vlaneseq
    %v71 = vshrl.u32 %v70, 7
    %v72 = vsub.s32 0, %v71
    %v73 = vrot.slane %v29, %v72
    %v74 = vsub.f32 %v33, %v73
    %v75 = vsub.f32 %v38, %v73
    %v76 = vsub.f32 %v43, %v73
    %v77 = vsub.f32 %v48, %v73
    %v78 = vsub.f32 %v53, %v73
    %v79 = vsub.f32 %v58, %v73
    %v80 = vsub.f32 %v63, %v73
    %v81 = vsub.f32 %v68, %v73
    %v82 = vmul.f32 %v74, 1.070149
    %v83 = vmul.f32 %v75, 1.070149
    %v84 = vmul.f32 %v76, 1.070149
    %v85 = vmul.f32 %v77, 1.070149
    %v86 = vmul.f32 %v78, 1.070149
    %v87 = vmul.f32 %v79, 1.070149
    %v88 = vmul.f32 %v80, 1.070149
    %v89 = vmul.f32 %v81, 1.070149
    %v90 = vmul.f32 %v82, %v82
    %v91 = vmul.f32 %v83, %v83
    %v92 = vmul.f32 %v84, %v84
    %v93 = vmul.f32 %v85, %v85
    %v94 = vmul.f32 %v86, %v86
    %v95 = vmul.f32 %v87, %v87
    %v96 = vmul.f32 %v88, %v88
    %v97 = vmul.f32 %v89, %v89
    %v98 = vsub.f32 0.0, %v90
    %v99 = vsub.f32 0.0, %v91
    %v100 = vsub.f32 0.0, %v92
    %v101 = vsub.f32 0.0, %v93
    %v102 = vsub.f32 0.0, %v94
    %v103 = vsub.f32 0.0, %v95
    %v104 = vsub.f32 0.0, %v96
    %v105 = vsub.f32 0.0, %v97
    %v106 = vmul.f32 %v98, 1.442695
    %v107 = vpow.pop %v106
    %v108 = vmul.f32 %v99, 1.442695
    %v109 = vpow.pop %v108
    %v110 = vmul.f32 %v100, 1.442695
    %v111 = vpow.pop %v110
    %v112 = vmul.f32 %v101, 1.442695
    %v113 = vpow.pop %v112
    %v114 = vmul.f32 %v102, 1.442695
    %v115 = vpow.pop %v114
    %v116 = vmul.f32 %v103, 1.442695
    %v117 = vpow.pop %v116
    %v118 = vmul.f32 %v104, 1.442695
    %v119 = vpow.pop %v118
    %v120 = vmul.f32 %v105, 1.442695
    %v121 = vpow.pop %v120
    %vm122 = vcmask 64512
    %123 = vst.msk [vmem:[#allocation2] sm:$0xff] %vm122, %v107
    %124 = vst.msk [vmem:[#allocation2 + $0x8] sm:$0xff] %vm122, %v109
    %125 = vst.msk [vmem:[#allocation2 + $0x10] sm:$0xff] %vm122, %v111
    %126 = vst.msk [vmem:[#allocation2 + $0x18] sm:$0xff] %vm122, %v113
    %127 = vst.msk [vmem:[#allocation2 + $0x20] sm:$0xff] %vm122, %v115
    %128 = vst.msk [vmem:[#allocation2 + $0x28] sm:$0xff] %vm122, %v117
    %129 = vst.msk [vmem:[#allocation2 + $0x30] sm:$0xff] %vm122, %v119
    %130 = vst.msk [vmem:[#allocation2 + $0x38] sm:$0xff] %vm122, %v121
    %131 = vset.pattern.permute.xlu0 1
    %132 = vperm.xlu0 %131, %v21
    %v133 = vpop.permute.xlu0 %132
    %135 = vset.pattern.permute.xlu0 1
    %136 = vperm.xlu0 %135, %v22
    %v137 = vpop.permute.xlu0 %136
    %139 = vset.pattern.permute.xlu0 1
    %140 = vperm.xlu0 %139, %v23
    %v141 = vpop.permute.xlu0 %140
    %143 = vset.pattern.permute.xlu0 1
    %144 = vperm.xlu0 %143, %v24
    %v145 = vpop.permute.xlu0 %144
    %147 = vset.pattern.permute.xlu0 1
    %148 = vperm.xlu0 %147, %v25
    %v149 = vpop.permute.xlu0 %148
    %151 = vset.pattern.permute.xlu0 1
    %152 = vperm.xlu0 %151, %v26
    %v153 = vpop.permute.xlu0 %152
    %155 = vset.pattern.permute.xlu0 1
    %156 = vperm.xlu0 %155, %v27
    %v157 = vpop.permute.xlu0 %156
    %159 = vset.pattern.permute.xlu0 1
    %160 = vperm.xlu0 %159, %v28
    %v161 = vpop.permute.xlu0 %160
    %v163 = vsub.f32 %v133, %v73
    %v164 = vsub.f32 %v137, %v73
    %v165 = vsub.f32 %v141, %v73
    %v166 = vsub.f32 %v145, %v73
    %v167 = vsub.f32 %v149, %v73
    %v168 = vsub.f32 %v153, %v73
    %v169 = vsub.f32 %v157, %v73
    %v170 = vsub.f32 %v161, %v73
    %v171 = vmul.f32 %v163, 1.070149
    %v172 = vmul.f32 %v164, 1.070149
    %v173 = vmul.f32 %v165, 1.070149
    %v174 = vmul.f32 %v166, 1.070149
    %v175 = vmul.f32 %v167, 1.070149
    %v176 = vmul.f32 %v168, 1.070149
    %v177 = vmul.f32 %v169, 1.070149
    %v178 = vmul.f32 %v170, 1.070149
    %v179 = vmul.f32 %v171, %v171
    %v180 = vmul.f32 %v172, %v172
    %v181 = vmul.f32 %v173, %v173
    %v182 = vmul.f32 %v174, %v174
    %v183 = vmul.f32 %v175, %v175
    %v184 = vmul.f32 %v176, %v176
    %v185 = vmul.f32 %v177, %v177
    %v186 = vmul.f32 %v178, %v178
    %v187 = vsub.f32 0.0, %v179
    %v188 = vsub.f32 0.0, %v180
    %v189 = vsub.f32 0.0, %v181
    %v190 = vsub.f32 0.0, %v182
    %v191 = vsub.f32 0.0, %v183
    %v192 = vsub.f32 0.0, %v184
    %v193 = vsub.f32 0.0, %v185
    %v194 = vsub.f32 0.0, %v186
    %v195 = vmul.f32 %v187, 1.442695
    %v196 = vpow.pop %v195
    %v197 = vmul.f32 %v188, 1.442695
    %v198 = vpow.pop %v197
    %v199 = vmul.f32 %v189, 1.442695
    %v200 = vpow.pop %v199
    %v201 = vmul.f32 %v190, 1.442695
    %v202 = vpow.pop %v201
    %v203 = vmul.f32 %v191, 1.442695
    %v204 = vpow.pop %v203
    %v205 = vmul.f32 %v192, 1.442695
    %v206 = vpow.pop %v205
    %v207 = vmul.f32 %v193, 1.442695
    %v208 = vpow.pop %v207
    %v209 = vmul.f32 %v194, 1.442695
    %v210 = vpow.pop %v209
    %219 = vrot.lane.b32.xlu0 %v196, 8
    %v220 = vpop.permute.xlu0 %219
    %221 = vrot.lane.b32.xlu0 %v198, 8
    %v222 = vpop.permute.xlu0 %221
    %223 = vrot.lane.b32.xlu0 %v200, 8
    %v224 = vpop.permute.xlu0 %223
    %225 = vrot.lane.b32.xlu0 %v202, 8
    %v226 = vpop.permute.xlu0 %225
    %227 = vrot.lane.b32.xlu0 %v204, 8
    %v228 = vpop.permute.xlu0 %227
    %229 = vrot.lane.b32.xlu0 %v206, 8
    %v230 = vpop.permute.xlu0 %229
    %231 = vrot.lane.b32.xlu0 %v208, 8
    %v232 = vpop.permute.xlu0 %231
    %233 = vrot.lane.b32.xlu0 %v210, 8
    %v234 = vpop.permute.xlu0 %233
    %vm243 = vcmask 130112
    %244 = vst.msk [vmem:[#allocation2] sm:$0xff] %vm243, %v220
    %245 = vst.msk [vmem:[#allocation2 + $0x8] sm:$0xff] %vm243, %v222
    %246 = vst.msk [vmem:[#allocation2 + $0x10] sm:$0xff] %vm243, %v224
    %247 = vst.msk [vmem:[#allocation2 + $0x18] sm:$0xff] %vm243, %v226
    %248 = vst.msk [vmem:[#allocation2 + $0x20] sm:$0xff] %vm243, %v228
    %249 = vst.msk [vmem:[#allocation2 + $0x28] sm:$0xff] %vm243, %v230
    %250 = vst.msk [vmem:[#allocation2 + $0x30] sm:$0xff] %vm243, %v232
    %251 = vst.msk [vmem:[#allocation2 + $0x38] sm:$0xff] %vm243, %v234
    %252 = vset.pattern.permute.xlu0 2
    %253 = vperm.xlu0 %252, %v21
    %v254 = vpop.permute.xlu0 %253
    %256 = vset.pattern.permute.xlu0 2
    %257 = vperm.xlu0 %256, %v22
    %v258 = vpop.permute.xlu0 %257
    %260 = vset.pattern.permute.xlu0 2
    %261 = vperm.xlu0 %260, %v23
    %v262 = vpop.permute.xlu0 %261
    %264 = vset.pattern.permute.xlu0 2
    %265 = vperm.xlu0 %264, %v24
    %v266 = vpop.permute.xlu0 %265
    %268 = vset.pattern.permute.xlu0 2
    %269 = vperm.xlu0 %268, %v25
    %v270 = vpop.permute.xlu0 %269
    %272 = vset.pattern.permute.xlu0 2
    %273 = vperm.xlu0 %272, %v26
    %v274 = vpop.permute.xlu0 %273
    %276 = vset.pattern.permute.xlu0 2
    %277 = vperm.xlu0 %276, %v27
    %v278 = vpop.permute.xlu0 %277
    %280 = vset.pattern.permute.xlu0 2
    %281 = vperm.xlu0 %280, %v28
    %v282 = vpop.permute.xlu0 %281
    %v284 = vsub.f32 %v254, %v73
    %v285 = vsub.f32 %v258, %v73
    %v286 = vsub.f32 %v262, %v73
    %v287 = vsub.f32 %v266, %v73
    %v288 = vsub.f32 %v270, %v73
    %v289 = vsub.f32 %v274, %v73
    %v290 = vsub.f32 %v278, %v73
    %v291 = vsub.f32 %v282, %v73
    %v292 = vmul.f32 %v284, 1.070149
    %v293 = vmul.f32 %v285, 1.070149
    %v294 = vmul.f32 %v286, 1.070149
    %v295 = vmul.f32 %v287, 1.070149
    %v296 = vmul.f32 %v288, 1.070149
    %v297 = vmul.f32 %v289, 1.070149
    %v298 = vmul.f32 %v290, 1.070149
    %v299 = vmul.f32 %v291, 1.070149
    %v300 = vmul.f32 %v292, %v292
    %v301 = vmul.f32 %v293, %v293
    %v302 = vmul.f32 %v294, %v294
    %v303 = vmul.f32 %v295, %v295
    %v304 = vmul.f32 %v296, %v296
    %v305 = vmul.f32 %v297, %v297
    %v306 = vmul.f32 %v298, %v298
    %v307 = vmul.f32 %v299, %v299
    %v308 = vsub.f32 0.0, %v300
    %v309 = vsub.f32 0.0, %v301
    %v310 = vsub.f32 0.0, %v302
    %v311 = vsub.f32 0.0, %v303
    %v312 = vsub.f32 0.0, %v304
    %v313 = vsub.f32 0.0, %v305
    %v314 = vsub.f32 0.0, %v306
    %v315 = vsub.f32 0.0, %v307
    %v316 = vmul.f32 %v308, 1.442695
    %v317 = vpow.pop %v316
    %v318 = vmul.f32 %v309, 1.442695
    %v319 = vpow.pop %v318
    %v320 = vmul.f32 %v310, 1.442695
    %v321 = vpow.pop %v320
    %v322 = vmul.f32 %v311, 1.442695
    %v323 = vpow.pop %v322
    %v324 = vmul.f32 %v312, 1.442695
    %v325 = vpow.pop %v324
    %v326 = vmul.f32 %v313, 1.442695
    %v327 = vpow.pop %v326
    %v328 = vmul.f32 %v314, 1.442695
    %v329 = vpow.pop %v328
    %v330 = vmul.f32 %v315, 1.442695
    %v331 = vpow.pop %v330
    %340 = vrot.lane.b32.xlu0 %v317, 16
    %v341 = vpop.permute.xlu0 %340
    %342 = vrot.lane.b32.xlu0 %v319, 16
    %v343 = vpop.permute.xlu0 %342
    %344 = vrot.lane.b32.xlu0 %v321, 16
    %v345 = vpop.permute.xlu0 %344
    %346 = vrot.lane.b32.xlu0 %v323, 16
    %v347 = vpop.permute.xlu0 %346
    %348 = vrot.lane.b32.xlu0 %v325, 16
    %v349 = vpop.permute.xlu0 %348
    %350 = vrot.lane.b32.xlu0 %v327, 16
    %v351 = vpop.permute.xlu0 %350
    %352 = vrot.lane.b32.xlu0 %v329, 16
    %v353 = vpop.permute.xlu0 %352
    %354 = vrot.lane.b32.xlu0 %v331, 16
    %v355 = vpop.permute.xlu0 %354
    %vm364 = vcmask 195712
    %365 = vst.msk [vmem:[#allocation2] sm:$0xff] %vm364, %v341
    %366 = vst.msk [vmem:[#allocation2 + $0x8] sm:$0xff] %vm364, %v343
    %367 = vst.msk [vmem:[#allocation2 + $0x10] sm:$0xff] %vm364, %v345
    %368 = vst.msk [vmem:[#allocation2 + $0x18] sm:$0xff] %vm364, %v347
    %369 = vst.msk [vmem:[#allocation2 + $0x20] sm:$0xff] %vm364, %v349
    %370 = vst.msk [vmem:[#allocation2 + $0x28] sm:$0xff] %vm364, %v351
    %371 = vst.msk [vmem:[#allocation2 + $0x30] sm:$0xff] %vm364, %v353
    %372 = vst.msk [vmem:[#allocation2 + $0x38] sm:$0xff] %vm364, %v355
    %373 = vset.pattern.permute.xlu0 3
    %374 = vperm.xlu0 %373, %v21
    %v375 = vpop.permute.xlu0 %374
    %377 = vset.pattern.permute.xlu0 3
    %378 = vperm.xlu0 %377, %v22
    %v379 = vpop.permute.xlu0 %378
    %381 = vset.pattern.permute.xlu0 3
    %382 = vperm.xlu0 %381, %v23
    %v383 = vpop.permute.xlu0 %382
    %385 = vset.pattern.permute.xlu0 3
    %386 = vperm.xlu0 %385, %v24
    %v387 = vpop.permute.xlu0 %386
    %389 = vset.pattern.permute.xlu0 3
    %390 = vperm.xlu0 %389, %v25
    %v391 = vpop.permute.xlu0 %390
    %393 = vset.pattern.permute.xlu0 3
    %394 = vperm.xlu0 %393, %v26
    %v395 = vpop.permute.xlu0 %394
    %397 = vset.pattern.permute.xlu0 3
    %398 = vperm.xlu0 %397, %v27
    %v399 = vpop.permute.xlu0 %398
    %401 = vset.pattern.permute.xlu0 3
    %402 = vperm.xlu0 %401, %v28
    %v403 = vpop.permute.xlu0 %402
    %v405 = vsub.f32 %v375, %v73
    %v406 = vsub.f32 %v379, %v73
    %v407 = vsub.f32 %v383, %v73
    %v408 = vsub.f32 %v387, %v73
    %v409 = vsub.f32 %v391, %v73
    %v410 = vsub.f32 %v395, %v73
    %v411 = vsub.f32 %v399, %v73
    %v412 = vsub.f32 %v403, %v73
    %v413 = vmul.f32 %v405, 1.070149
    %v414 = vmul.f32 %v406, 1.070149
    %v415 = vmul.f32 %v407, 1.070149
    %v416 = vmul.f32 %v408, 1.070149
    %v417 = vmul.f32 %v409, 1.070149
    %v418 = vmul.f32 %v410, 1.070149
    %v419 = vmul.f32 %v411, 1.070149
    %v420 = vmul.f32 %v412, 1.070149
    %v421 = vmul.f32 %v413, %v413
    %v422 = vmul.f32 %v414, %v414
    %v423 = vmul.f32 %v415, %v415
    %v424 = vmul.f32 %v416, %v416
    %v425 = vmul.f32 %v417, %v417
    %v426 = vmul.f32 %v418, %v418
    %v427 = vmul.f32 %v419, %v419
    %v428 = vmul.f32 %v420, %v420
    %v429 = vsub.f32 0.0, %v421
    %v430 = vsub.f32 0.0, %v422
    %v431 = vsub.f32 0.0, %v423
    %v432 = vsub.f32 0.0, %v424
    %v433 = vsub.f32 0.0, %v425
    %v434 = vsub.f32 0.0, %v426
    %v435 = vsub.f32 0.0, %v427
    %v436 = vsub.f32 0.0, %v428
    %v437 = vmul.f32 %v429, 1.442695
    %v438 = vpow.pop %v437
    %v439 = vmul.f32 %v430, 1.442695
    %v440 = vpow.pop %v439
    %v441 = vmul.f32 %v431, 1.442695
    %v442 = vpow.pop %v441
    %v443 = vmul.f32 %v432, 1.442695
    %v444 = vpow.pop %v443
    %v445 = vmul.f32 %v433, 1.442695
    %v446 = vpow.pop %v445
    %v447 = vmul.f32 %v434, 1.442695
    %v448 = vpow.pop %v447
    %v449 = vmul.f32 %v435, 1.442695
    %v450 = vpow.pop %v449
    %v451 = vmul.f32 %v436, 1.442695
    %v452 = vpow.pop %v451
    %461 = vrot.lane.b32.xlu0 %v438, 24
    %v462 = vpop.permute.xlu0 %461
    %463 = vrot.lane.b32.xlu0 %v440, 24
    %v464 = vpop.permute.xlu0 %463
    %465 = vrot.lane.b32.xlu0 %v442, 24
    %v466 = vpop.permute.xlu0 %465
    %467 = vrot.lane.b32.xlu0 %v444, 24
    %v468 = vpop.permute.xlu0 %467
    %469 = vrot.lane.b32.xlu0 %v446, 24
    %v470 = vpop.permute.xlu0 %469
    %471 = vrot.lane.b32.xlu0 %v448, 24
    %v472 = vpop.permute.xlu0 %471
    %473 = vrot.lane.b32.xlu0 %v450, 24
    %v474 = vpop.permute.xlu0 %473
    %475 = vrot.lane.b32.xlu0 %v452, 24
    %v476 = vpop.permute.xlu0 %475
    %vm485 = vcmask 261312
    %486 = vst.msk [vmem:[#allocation2] sm:$0xff] %vm485, %v462
    %487 = vst.msk [vmem:[#allocation2 + $0x8] sm:$0xff] %vm485, %v464
    %488 = vst.msk [vmem:[#allocation2 + $0x10] sm:$0xff] %vm485, %v466
    %489 = vst.msk [vmem:[#allocation2 + $0x18] sm:$0xff] %vm485, %v468
    %490 = vst.msk [vmem:[#allocation2 + $0x20] sm:$0xff] %vm485, %v470
    %491 = vst.msk [vmem:[#allocation2 + $0x28] sm:$0xff] %vm485, %v472
    %492 = vst.msk [vmem:[#allocation2 + $0x30] sm:$0xff] %vm485, %v474
    %493 = vst.msk [vmem:[#allocation2 + $0x38] sm:$0xff] %vm485, %v476
    %494 = vset.pattern.permute.xlu0 4
    %495 = vperm.xlu0 %494, %v21
    %v496 = vpop.permute.xlu0 %495
    %498 = vset.pattern.permute.xlu0 4
    %499 = vperm.xlu0 %498, %v22
    %v500 = vpop.permute.xlu0 %499
    %502 = vset.pattern.permute.xlu0 4
    %503 = vperm.xlu0 %502, %v23
    %v504 = vpop.permute.xlu0 %503
    %506 = vset.pattern.permute.xlu0 4
    %507 = vperm.xlu0 %506, %v24
    %v508 = vpop.permute.xlu0 %507
    %510 = vset.pattern.permute.xlu0 4
    %511 = vperm.xlu0 %510, %v25
    %v512 = vpop.permute.xlu0 %511
    %514 = vset.pattern.permute.xlu0 4
    %515 = vperm.xlu0 %514, %v26
    %v516 = vpop.permute.xlu0 %515
    %518 = vset.pattern.permute.xlu0 4
    %519 = vperm.xlu0 %518, %v27
    %v520 = vpop.permute.xlu0 %519
    %522 = vset.pattern.permute.xlu0 4
    %523 = vperm.xlu0 %522, %v28
    %v524 = vpop.permute.xlu0 %523
    %v526 = vsub.f32 %v496, %v73
    %v527 = vsub.f32 %v500, %v73
    %v528 = vsub.f32 %v504, %v73
    %v529 = vsub.f32 %v508, %v73
    %v530 = vsub.f32 %v512, %v73
    %v531 = vsub.f32 %v516, %v73
    %v532 = vsub.f32 %v520, %v73
    %v533 = vsub.f32 %v524, %v73
    %v534 = vmul.f32 %v526, 1.070149
    %v535 = vmul.f32 %v527, 1.070149
    %v536 = vmul.f32 %v528, 1.070149
    %v537 = vmul.f32 %v529, 1.070149
    %v538 = vmul.f32 %v530, 1.070149
    %v539 = vmul.f32 %v531, 1.070149
    %v540 = vmul.f32 %v532, 1.070149
    %v541 = vmul.f32 %v533, 1.070149
    %v542 = vmul.f32 %v534, %v534
    %v543 = vmul.f32 %v535, %v535
    %v544 = vmul.f32 %v536, %v536
    %v545 = vmul.f32 %v537, %v537
    %v546 = vmul.f32 %v538, %v538
    %v547 = vmul.f32 %v539, %v539
    %v548 = vmul.f32 %v540, %v540
    %v549 = vmul.f32 %v541, %v541
    %v550 = vsub.f32 0.0, %v542
    %v551 = vsub.f32 0.0, %v543
    %v552 = vsub.f32 0.0, %v544
    %v553 = vsub.f32 0.0, %v545
    %v554 = vsub.f32 0.0, %v546
    %v555 = vsub.f32 0.0, %v547
    %v556 = vsub.f32 0.0, %v548
    %v557 = vsub.f32 0.0, %v549
    %v558 = vmul.f32 %v550, 1.442695
    %v559 = vpow.pop %v558
    %v560 = vmul.f32 %v551, 1.442695
    %v561 = vpow.pop %v560
    %v562 = vmul.f32 %v552, 1.442695
    %v563 = vpow.pop %v562
    %v564 = vmul.f32 %v553, 1.442695
    %v565 = vpow.pop %v564
    %v566 = vmul.f32 %v554, 1.442695
    %v567 = vpow.pop %v566
    %v568 = vmul.f32 %v555, 1.442695
    %v569 = vpow.pop %v568
    %v570 = vmul.f32 %v556, 1.442695
    %v571 = vpow.pop %v570
    %v572 = vmul.f32 %v557, 1.442695
    %v573 = vpow.pop %v572
    %582 = vrot.lane.b32.xlu0 %v559, 32
    %v583 = vpop.permute.xlu0 %582
    %584 = vrot.lane.b32.xlu0 %v561, 32
    %v585 = vpop.permute.xlu0 %584
    %586 = vrot.lane.b32.xlu0 %v563, 32
    %v587 = vpop.permute.xlu0 %586
    %588 = vrot.lane.b32.xlu0 %v565, 32
    %v589 = vpop.permute.xlu0 %588
    %590 = vrot.lane.b32.xlu0 %v567, 32
    %v591 = vpop.permute.xlu0 %590
    %592 = vrot.lane.b32.xlu0 %v569, 32
    %v593 = vpop.permute.xlu0 %592
    %594 = vrot.lane.b32.xlu0 %v571, 32
    %v595 = vpop.permute.xlu0 %594
    %596 = vrot.lane.b32.xlu0 %v573, 32
    %v597 = vpop.permute.xlu0 %596
    %vm606 = vcmask 326912
    %607 = vst.msk [vmem:[#allocation2] sm:$0xff] %vm606, %v583
    %608 = vst.msk [vmem:[#allocation2 + $0x8] sm:$0xff] %vm606, %v585
    %609 = vst.msk [vmem:[#allocation2 + $0x10] sm:$0xff] %vm606, %v587
    %610 = vst.msk [vmem:[#allocation2 + $0x18] sm:$0xff] %vm606, %v589
    %611 = vst.msk [vmem:[#allocation2 + $0x20] sm:$0xff] %vm606, %v591
    %612 = vst.msk [vmem:[#allocation2 + $0x28] sm:$0xff] %vm606, %v593
    %613 = vst.msk [vmem:[#allocation2 + $0x30] sm:$0xff] %vm606, %v595
    %614 = vst.msk [vmem:[#allocation2 + $0x38] sm:$0xff] %vm606, %v597
    %615 = vset.pattern.permute.xlu0 5
    %616 = vperm.xlu0 %615, %v21
    %v617 = vpop.permute.xlu0 %616
    %619 = vset.pattern.permute.xlu0 5
    %620 = vperm.xlu0 %619, %v22
    %v621 = vpop.permute.xlu0 %620
    %623 = vset.pattern.permute.xlu0 5
    %624 = vperm.xlu0 %623, %v23
    %v625 = vpop.permute.xlu0 %624
    %627 = vset.pattern.permute.xlu0 5
    %628 = vperm.xlu0 %627, %v24
    %v629 = vpop.permute.xlu0 %628
    %631 = vset.pattern.permute.xlu0 5
    %632 = vperm.xlu0 %631, %v25
    %v633 = vpop.permute.xlu0 %632
    %635 = vset.pattern.permute.xlu0 5
    %636 = vperm.xlu0 %635, %v26
    %v637 = vpop.permute.xlu0 %636
    %639 = vset.pattern.permute.xlu0 5
    %640 = vperm.xlu0 %639, %v27
    %v641 = vpop.permute.xlu0 %640
    %643 = vset.pattern.permute.xlu0 5
    %644 = vperm.xlu0 %643, %v28
    %v645 = vpop.permute.xlu0 %644
    %v647 = vsub.f32 %v617, %v73
    %v648 = vsub.f32 %v621, %v73
    %v649 = vsub.f32 %v625, %v73
    %v650 = vsub.f32 %v629, %v73
    %v651 = vsub.f32 %v633, %v73
    %v652 = vsub.f32 %v637, %v73
    %v653 = vsub.f32 %v641, %v73
    %v654 = vsub.f32 %v645, %v73
    %v655 = vmul.f32 %v647, 1.070149
    %v656 = vmul.f32 %v648, 1.070149
    %v657 = vmul.f32 %v649, 1.070149
    %v658 = vmul.f32 %v650, 1.070149
    %v659 = vmul.f32 %v651, 1.070149
    %v660 = vmul.f32 %v652, 1.070149
    %v661 = vmul.f32 %v653, 1.070149
    %v662 = vmul.f32 %v654, 1.070149
    %v663 = vmul.f32 %v655, %v655
    %v664 = vmul.f32 %v656, %v656
    %v665 = vmul.f32 %v657, %v657
    %v666 = vmul.f32 %v658, %v658
    %v667 = vmul.f32 %v659, %v659
    %v668 = vmul.f32 %v660, %v660
    %v669 = vmul.f32 %v661, %v661
    %v670 = vmul.f32 %v662, %v662
    %v671 = vsub.f32 0.0, %v663
    %v672 = vsub.f32 0.0, %v664
    %v673 = vsub.f32 0.0, %v665
    %v674 = vsub.f32 0.0, %v666
    %v675 = vsub.f32 0.0, %v667
    %v676 = vsub.f32 0.0, %v668
    %v677 = vsub.f32 0.0, %v669
    %v678 = vsub.f32 0.0, %v670
    %v679 = vmul.f32 %v671, 1.442695
    %v680 = vpow.pop %v679
    %v681 = vmul.f32 %v672, 1.442695
    %v682 = vpow.pop %v681
    %v683 = vmul.f32 %v673, 1.442695
    %v684 = vpow.pop %v683
    %v685 = vmul.f32 %v674, 1.442695
    %v686 = vpow.pop %v685
    %v687 = vmul.f32 %v675, 1.442695
    %v688 = vpow.pop %v687
    %v689 = vmul.f32 %v676, 1.442695
    %v690 = vpow.pop %v689
    %v691 = vmul.f32 %v677, 1.442695
    %v692 = vpow.pop %v691
    %v693 = vmul.f32 %v678, 1.442695
    %v694 = vpow.pop %v693
    %703 = vrot.lane.b32.xlu0 %v680, 40
    %v704 = vpop.permute.xlu0 %703
    %705 = vrot.lane.b32.xlu0 %v682, 40
    %v706 = vpop.permute.xlu0 %705
    %707 = vrot.lane.b32.xlu0 %v684, 40
    %v708 = vpop.permute.xlu0 %707
    %709 = vrot.lane.b32.xlu0 %v686, 40
    %v710 = vpop.permute.xlu0 %709
    %711 = vrot.lane.b32.xlu0 %v688, 40
    %v712 = vpop.permute.xlu0 %711
    %713 = vrot.lane.b32.xlu0 %v690, 40
    %v714 = vpop.permute.xlu0 %713
    %715 = vrot.lane.b32.xlu0 %v692, 40
    %v716 = vpop.permute.xlu0 %715
    %717 = vrot.lane.b32.xlu0 %v694, 40
    %v718 = vpop.permute.xlu0 %717
    %vm727 = vcmask 392512
    %728 = vst.msk [vmem:[#allocation2] sm:$0xff] %vm727, %v704
    %729 = vst.msk [vmem:[#allocation2 + $0x8] sm:$0xff] %vm727, %v706
    %730 = vst.msk [vmem:[#allocation2 + $0x10] sm:$0xff] %vm727, %v708
    %731 = vst.msk [vmem:[#allocation2 + $0x18] sm:$0xff] %vm727, %v710
    %732 = vst.msk [vmem:[#allocation2 + $0x20] sm:$0xff] %vm727, %v712
    %733 = vst.msk [vmem:[#allocation2 + $0x28] sm:$0xff] %vm727, %v714
    %734 = vst.msk [vmem:[#allocation2 + $0x30] sm:$0xff] %vm727, %v716
    %735 = vst.msk [vmem:[#allocation2 + $0x38] sm:$0xff] %vm727, %v718
    %736 = vset.pattern.permute.xlu0 6
    %737 = vperm.xlu0 %736, %v21
    %v738 = vpop.permute.xlu0 %737
    %740 = vset.pattern.permute.xlu0 6
    %741 = vperm.xlu0 %740, %v22
    %v742 = vpop.permute.xlu0 %741
    %744 = vset.pattern.permute.xlu0 6
    %745 = vperm.xlu0 %744, %v23
    %v746 = vpop.permute.xlu0 %745
    %748 = vset.pattern.permute.xlu0 6
    %749 = vperm.xlu0 %748, %v24
    %v750 = vpop.permute.xlu0 %749
    %752 = vset.pattern.permute.xlu0 6
    %753 = vperm.xlu0 %752, %v25
    %v754 = vpop.permute.xlu0 %753
    %756 = vset.pattern.permute.xlu0 6
    %757 = vperm.xlu0 %756, %v26
    %v758 = vpop.permute.xlu0 %757
    %760 = vset.pattern.permute.xlu0 6
    %761 = vperm.xlu0 %760, %v27
    %v762 = vpop.permute.xlu0 %761
    %764 = vset.pattern.permute.xlu0 6
    %765 = vperm.xlu0 %764, %v28
    %v766 = vpop.permute.xlu0 %765
    %v768 = vsub.f32 %v738, %v73
    %v769 = vsub.f32 %v742, %v73
    %v770 = vsub.f32 %v746, %v73
    %v771 = vsub.f32 %v750, %v73
    %v772 = vsub.f32 %v754, %v73
    %v773 = vsub.f32 %v758, %v73
    %v774 = vsub.f32 %v762, %v73
    %v775 = vsub.f32 %v766, %v73
    %v776 = vmul.f32 %v768, 1.070149
    %v777 = vmul.f32 %v769, 1.070149
    %v778 = vmul.f32 %v770, 1.070149
    %v779 = vmul.f32 %v771, 1.070149
    %v780 = vmul.f32 %v772, 1.070149
    %v781 = vmul.f32 %v773, 1.070149
    %v782 = vmul.f32 %v774, 1.070149
    %v783 = vmul.f32 %v775, 1.070149
    %v784 = vmul.f32 %v776, %v776
    %v785 = vmul.f32 %v777, %v777
    %v786 = vmul.f32 %v778, %v778
    %v787 = vmul.f32 %v779, %v779
    %v788 = vmul.f32 %v780, %v780
    %v789 = vmul.f32 %v781, %v781
    %v790 = vmul.f32 %v782, %v782
    %v791 = vmul.f32 %v783, %v783
    %v792 = vsub.f32 0.0, %v784
    %v793 = vsub.f32 0.0, %v785
    %v794 = vsub.f32 0.0, %v786
    %v795 = vsub.f32 0.0, %v787
    %v796 = vsub.f32 0.0, %v788
    %v797 = vsub.f32 0.0, %v789
    %v798 = vsub.f32 0.0, %v790
    %v799 = vsub.f32 0.0, %v791
    %v800 = vmul.f32 %v792, 1.442695
    %v801 = vpow.pop %v800
    %v802 = vmul.f32 %v793, 1.442695
    %v803 = vpow.pop %v802
    %v804 = vmul.f32 %v794, 1.442695
    %v805 = vpow.pop %v804
    %v806 = vmul.f32 %v795, 1.442695
    %v807 = vpow.pop %v806
    %v808 = vmul.f32 %v796, 1.442695
    %v809 = vpow.pop %v808
    %v810 = vmul.f32 %v797, 1.442695
    %v811 = vpow.pop %v810
    %v812 = vmul.f32 %v798, 1.442695
    %v813 = vpow.pop %v812
    %v814 = vmul.f32 %v799, 1.442695
    %v815 = vpow.pop %v814
    %824 = vrot.lane.b32.xlu0 %v801, 48
    %v825 = vpop.permute.xlu0 %824
    %826 = vrot.lane.b32.xlu0 %v803, 48
    %v827 = vpop.permute.xlu0 %826
    %828 = vrot.lane.b32.xlu0 %v805, 48
    %v829 = vpop.permute.xlu0 %828
    %830 = vrot.lane.b32.xlu0 %v807, 48
    %v831 = vpop.permute.xlu0 %830
    %832 = vrot.lane.b32.xlu0 %v809, 48
    %v833 = vpop.permute.xlu0 %832
    %834 = vrot.lane.b32.xlu0 %v811, 48
    %v835 = vpop.permute.xlu0 %834
    %836 = vrot.lane.b32.xlu0 %v813, 48
    %v837 = vpop.permute.xlu0 %836
    %838 = vrot.lane.b32.xlu0 %v815, 48
    %v839 = vpop.permute.xlu0 %838
    %vm848 = vcmask 458112
    %849 = vst.msk [vmem:[#allocation2] sm:$0xff] %vm848, %v825
    %850 = vst.msk [vmem:[#allocation2 + $0x8] sm:$0xff] %vm848, %v827
    %851 = vst.msk [vmem:[#allocation2 + $0x10] sm:$0xff] %vm848, %v829
    %852 = vst.msk [vmem:[#allocation2 + $0x18] sm:$0xff] %vm848, %v831
    %853 = vst.msk [vmem:[#allocation2 + $0x20] sm:$0xff] %vm848, %v833
    %854 = vst.msk [vmem:[#allocation2 + $0x28] sm:$0xff] %vm848, %v835
    %855 = vst.msk [vmem:[#allocation2 + $0x30] sm:$0xff] %vm848, %v837
    %856 = vst.msk [vmem:[#allocation2 + $0x38] sm:$0xff] %vm848, %v839
    %857 = vset.pattern.permute.xlu0 7
    %858 = vperm.xlu0 %857, %v21
    %v859 = vpop.permute.xlu0 %858
    %861 = vset.pattern.permute.xlu0 7
    %862 = vperm.xlu0 %861, %v22
    %v863 = vpop.permute.xlu0 %862
    %865 = vset.pattern.permute.xlu0 7
    %866 = vperm.xlu0 %865, %v23
    %v867 = vpop.permute.xlu0 %866
    %869 = vset.pattern.permute.xlu0 7
    %870 = vperm.xlu0 %869, %v24
    %v871 = vpop.permute.xlu0 %870
    %873 = vset.pattern.permute.xlu0 7
    %874 = vperm.xlu0 %873, %v25
    %v875 = vpop.permute.xlu0 %874
    %877 = vset.pattern.permute.xlu0 7
    %878 = vperm.xlu0 %877, %v26
    %v879 = vpop.permute.xlu0 %878
    %881 = vset.pattern.permute.xlu0 7
    %882 = vperm.xlu0 %881, %v27
    %v883 = vpop.permute.xlu0 %882
    %885 = vset.pattern.permute.xlu0 7
    %886 = vperm.xlu0 %885, %v28
    %v887 = vpop.permute.xlu0 %886
    %v889 = vsub.f32 %v859, %v73
    %v890 = vsub.f32 %v863, %v73
    %v891 = vsub.f32 %v867, %v73
    %v892 = vsub.f32 %v871, %v73
    %v893 = vsub.f32 %v875, %v73
    %v894 = vsub.f32 %v879, %v73
    %v895 = vsub.f32 %v883, %v73
    %v896 = vsub.f32 %v887, %v73
    %v897 = vmul.f32 %v889, 1.070149
    %v898 = vmul.f32 %v890, 1.070149
    %v899 = vmul.f32 %v891, 1.070149
    %v900 = vmul.f32 %v892, 1.070149
    %v901 = vmul.f32 %v893, 1.070149
    %v902 = vmul.f32 %v894, 1.070149
    %v903 = vmul.f32 %v895, 1.070149
    %v904 = vmul.f32 %v896, 1.070149
    %v905 = vmul.f32 %v897, %v897
    %v906 = vmul.f32 %v898, %v898
    %v907 = vmul.f32 %v899, %v899
    %v908 = vmul.f32 %v900, %v900
    %v909 = vmul.f32 %v901, %v901
    %v910 = vmul.f32 %v902, %v902
    %v911 = vmul.f32 %v903, %v903
    %v912 = vmul.f32 %v904, %v904
    %v913 = vsub.f32 0.0, %v905
    %v914 = vsub.f32 0.0, %v906
    %v915 = vsub.f32 0.0, %v907
    %v916 = vsub.f32 0.0, %v908
    %v917 = vsub.f32 0.0, %v909
    %v918 = vsub.f32 0.0, %v910
    %v919 = vsub.f32 0.0, %v911
    %v920 = vsub.f32 0.0, %v912
    %v921 = vmul.f32 %v913, 1.442695
    %v922 = vpow.pop %v921
    %v923 = vmul.f32 %v914, 1.442695
    %v924 = vpow.pop %v923
    %v925 = vmul.f32 %v915, 1.442695
    %v926 = vpow.pop %v925
    %v927 = vmul.f32 %v916, 1.442695
    %v928 = vpow.pop %v927
    %v929 = vmul.f32 %v917, 1.442695
    %v930 = vpow.pop %v929
    %v931 = vmul.f32 %v918, 1.442695
    %v932 = vpow.pop %v931
    %v933 = vmul.f32 %v919, 1.442695
    %v934 = vpow.pop %v933
    %v935 = vmul.f32 %v920, 1.442695
    %v936 = vpow.pop %v935
    %945 = vrot.lane.b32.xlu0 %v922, 56
    %v946 = vpop.permute.xlu0 %945
    %947 = vrot.lane.b32.xlu0 %v924, 56
    %v948 = vpop.permute.xlu0 %947
    %949 = vrot.lane.b32.xlu0 %v926, 56
    %v950 = vpop.permute.xlu0 %949
    %951 = vrot.lane.b32.xlu0 %v928, 56
    %v952 = vpop.permute.xlu0 %951
    %953 = vrot.lane.b32.xlu0 %v930, 56
    %v954 = vpop.permute.xlu0 %953
    %955 = vrot.lane.b32.xlu0 %v932, 56
    %v956 = vpop.permute.xlu0 %955
    %957 = vrot.lane.b32.xlu0 %v934, 56
    %v958 = vpop.permute.xlu0 %957
    %959 = vrot.lane.b32.xlu0 %v936, 56
    %v960 = vpop.permute.xlu0 %959
    %vm969 = vcmask 523712
    %970 = vst.msk [vmem:[#allocation2] sm:$0xff] %vm969, %v946
    %971 = vst.msk [vmem:[#allocation2 + $0x8] sm:$0xff] %vm969, %v948
    %972 = vst.msk [vmem:[#allocation2 + $0x10] sm:$0xff] %vm969, %v950
    %973 = vst.msk [vmem:[#allocation2 + $0x18] sm:$0xff] %vm969, %v952
    %974 = vst.msk [vmem:[#allocation2 + $0x20] sm:$0xff] %vm969, %v954
    %975 = vst.msk [vmem:[#allocation2 + $0x28] sm:$0xff] %vm969, %v956
    %976 = vst.msk [vmem:[#allocation2 + $0x30] sm:$0xff] %vm969, %v958
    %977 = vst.msk [vmem:[#allocation2 + $0x38] sm:$0xff] %vm969, %v960
    %v978 = vld [vmem:[#allocation2] sm:$0xff]
    %v979 = vld [vmem:[#allocation2 + $0x8] sm:$0xff]
    %v980 = vld [vmem:[#allocation2 + $0x10] sm:$0xff]
    %v981 = vld [vmem:[#allocation2 + $0x18] sm:$0xff]
    %v982 = vld [vmem:[#allocation2 + $0x20] sm:$0xff]
    %v983 = vld [vmem:[#allocation2 + $0x28] sm:$0xff]
    %v984 = vld [vmem:[#allocation2 + $0x30] sm:$0xff]
    %v985 = vld [vmem:[#allocation2 + $0x38] sm:$0xff]
    %v986 = vld [vmem:[%s2] sm:$0xff]
    %v987 = vld [vmem:[%s2 + $0x8] sm:$0xff]
    %v988 = vld [vmem:[%s2 + $0x10] sm:$0xff]
    %v989 = vld [vmem:[%s2 + $0x18] sm:$0xff]
    %v990 = vld [vmem:[%s2 + $0x20] sm:$0xff]
    %v991 = vld [vmem:[%s2 + $0x28] sm:$0xff]
    %v992 = vld [vmem:[%s2 + $0x30] sm:$0xff]
    %v993 = vld [vmem:[%s2 + $0x38] sm:$0xff]
    %vm994 = vcmask 523264
    %v996 = vsel %vm994, %v978, 0
    %v999 = vsel %vm994, %v979, 0
    %v1002 = vsel %vm994, %v980, 0
    %v1005 = vsel %vm994, %v981, 0
    %v1008 = vsel %vm994, %v982, 0
    %v1011 = vsel %vm994, %v983, 0
    %v1014 = vsel %vm994, %v984, 0
    %v1017 = vsel %vm994, %v985, 0
    %1019 = vmatprep.subr.mxu0 0.0
    %1020 = vmatpush1.msra.mxu0 %v986
    %1021 = vmatprep.subr.mxu0 0.0
    %1022 = vmatpush1.msra.mxu0 %v987
    %1023 = vmatprep.subr.mxu0 0.0
    %1024 = vmatpush1.msra.mxu0 %v988
    %1025 = vmatprep.subr.mxu0 0.0
    %1026 = vmatpush1.msra.mxu0 %v989
    %1027 = vmatprep.subr.mxu0 0.0
    %1028 = vmatpush1.msra.mxu0 %v990
    %1029 = vmatprep.subr.mxu0 0.0
    %1030 = vmatpush1.msra.mxu0 %v991
    %1031 = vmatprep.subr.mxu0 0.0
    %1032 = vmatpush1.msra.mxu0 %v992
    %1033 = vmatprep.subr.mxu0 0.0
    %1034 = vmatpush1.msra.mxu0 %v993
    %1035 = vmatprep.subr.mxu0 0.0
    %1036 = vmatpush1.msra.mxu0 0.0
    %1037 = vmatprep.subr.mxu0 0.0
    %1038 = vmatpush1.msra.mxu0 0.0
    %1039 = vmatprep.subr.mxu0 0.0
    %1040 = vmatpush1.msra.mxu0 0.0
    %1041 = vmatprep.subr.mxu0 0.0
    %1042 = vmatpush1.msra.mxu0 0.0
    %1043 = vmatprep.subr.mxu0 0.0
    %1044 = vmatpush1.msra.mxu0 0.0
    %1045 = vmatprep.subr.mxu0 0.0
    %1046 = vmatpush1.msra.mxu0 0.0
    %1047 = vmatprep.subr.mxu0 0.0
    %1048 = vmatpush1.msra.mxu0 0.0
    %1049 = vmatprep.subr.mxu0 0.0
    %1050 = vmatpush1.msra.mxu0 0.0
    %1051 = vmatprep.subr.mxu0 0.0
    %1052 = vmatpush1.msra.mxu0 0.0
    %1053 = vmatprep.subr.mxu0 0.0
    %1054 = vmatpush1.msra.mxu0 0.0
    %1055 = vmatprep.subr.mxu0 0.0
    %1056 = vmatpush1.msra.mxu0 0.0
    %1057 = vmatprep.subr.mxu0 0.0
    %1058 = vmatpush1.msra.mxu0 0.0
    %1059 = vmatprep.subr.mxu0 0.0
    %1060 = vmatpush1.msra.mxu0 0.0
    %1061 = vmatprep.subr.mxu0 0.0
    %1062 = vmatpush1.msra.mxu0 0.0
    %1063 = vmatprep.subr.mxu0 0.0
    %1064 = vmatpush1.msra.mxu0 0.0
    %1065 = vmatprep.subr.mxu0 0.0
    %1066 = vmatpush1.msra.mxu0 0.0
    %1067 = vmatprep.subr.mxu0 0.0
    %1068 = vmatpush1.msra.mxu0 0.0
    %1069 = vmatprep.subr.mxu0 0.0
    %1070 = vmatpush1.msra.mxu0 0.0
    %1071 = vmatprep.subr.mxu0 0.0
    %1072 = vmatpush1.msra.mxu0 0.0
    %1073 = vmatprep.subr.mxu0 0.0
    %1074 = vmatpush1.msra.mxu0 0.0
    %1075 = vmatprep.subr.mxu0 0.0
    %1076 = vmatpush1.msra.mxu0 0.0
    %1077 = vmatprep.subr.mxu0 0.0
    %1078 = vmatpush1.msra.mxu0 0.0
    %1079 = vmatprep.subr.mxu0 0.0
    %1080 = vmatpush1.msra.mxu0 0.0
    %1081 = vmatprep.subr.mxu0 0.0
    %1082 = vmatpush1.msra.mxu0 0.0
    %1083 = vmatprep.mubr.f32.mxu0 0.0
    %1084 = vmatmul.mubr.f32.gmra.mrb[0].mxu0 %v996
    %v1085 = vpop.f32.mrb[0].mxu0
    %v1086 = vadd.f32 0.0, %v1085
    %v1087 = vpop.f32.mrb[0].mxu0
    %1088 = vmatprep.mubr.f32.mxu0 0.0
    %1089 = vmatmul.mubr.f32.gmra.mrb[0].mxu0 %v999
    %v1090 = vpop.f32.mrb[0].mxu0
    %v1091 = vadd.f32 0.0, %v1090
    %v1092 = vpop.f32.mrb[0].mxu0
    %1093 = vmatprep.mubr.f32.mxu0 0.0
    %1094 = vmatmul.mubr.f32.gmra.mrb[0].mxu0 %v1002
    %v1095 = vpop.f32.mrb[0].mxu0
    %v1096 = vadd.f32 0.0, %v1095
    %v1097 = vpop.f32.mrb[0].mxu0
    %1098 = vmatprep.mubr.f32.mxu0 0.0
    %1099 = vmatmul.mubr.f32.gmra.mrb[0].mxu0 %v1005
    %v1100 = vpop.f32.mrb[0].mxu0
    %v1101 = vadd.f32 0.0, %v1100
    %v1102 = vpop.f32.mrb[0].mxu0
    %1103 = vmatprep.mubr.f32.mxu0 0.0
    %1104 = vmatmul.mubr.f32.gmra.mrb[0].mxu0 %v1008
    %v1105 = vpop.f32.mrb[0].mxu0
    %v1106 = vadd.f32 0.0, %v1105
    %v1107 = vpop.f32.mrb[0].mxu0
    %1108 = vmatprep.mubr.f32.mxu0 0.0
    %1109 = vmatmul.mubr.f32.gmra.mrb[0].mxu0 %v1011
    %v1110 = vpop.f32.mrb[0].mxu0
    %v1111 = vadd.f32 0.0, %v1110
    %v1112 = vpop.f32.mrb[0].mxu0
    %1113 = vmatprep.mubr.f32.mxu0 0.0
    %1114 = vmatmul.mubr.f32.gmra.mrb[0].mxu0 %v1014
    %v1115 = vpop.f32.mrb[0].mxu0
    %v1116 = vadd.f32 0.0, %v1115
    %v1117 = vpop.f32.mrb[0].mxu0
    %1118 = vmatprep.mubr.f32.mxu0 0.0
    %1119 = vmatmul.mubr.f32.gmra.mrb[0].mxu0 %v1017
    %v1120 = vpop.f32.mrb[0].mxu0
    %v1121 = vadd.f32 0.0, %v1120
    %v1122 = vpop.f32.mrb[0].mxu0
    %1123 = vdwg.mxu0
    %v1124 = vld [vmem:[%s1 + $0x1] sm:$0x1]
    %1126 = vset.pattern.permute.xlu0 0
    %1127 = vperm.xlu0 %1126, %v1086
    %v1128 = vpop.permute.xlu0 %1127
    %1131 = vset.pattern.permute.xlu0 0
    %1132 = vperm.xlu0 %1131, %v1091
    %v1133 = vpop.permute.xlu0 %1132
    %1136 = vset.pattern.permute.xlu0 0
    %1137 = vperm.xlu0 %1136, %v1096
    %v1138 = vpop.permute.xlu0 %1137
    %1141 = vset.pattern.permute.xlu0 0
    %1142 = vperm.xlu0 %1141, %v1101
    %v1143 = vpop.permute.xlu0 %1142
    %1146 = vset.pattern.permute.xlu0 0
    %1147 = vperm.xlu0 %1146, %v1106
    %v1148 = vpop.permute.xlu0 %1147
    %1151 = vset.pattern.permute.xlu0 0
    %1152 = vperm.xlu0 %1151, %v1111
    %v1153 = vpop.permute.xlu0 %1152
    %1156 = vset.pattern.permute.xlu0 0
    %1157 = vperm.xlu0 %1156, %v1116
    %v1158 = vpop.permute.xlu0 %1157
    %1161 = vset.pattern.permute.xlu0 0
    %1162 = vperm.xlu0 %1161, %v1121
    %v1163 = vpop.permute.xlu0 %1162
    %v1165 = vlaneseq
    %v1166 = vshrl.u32 %v1165, 7
    %v1167 = vsub.s32 0, %v1166
    %v1168 = vrot.slane %v1124, %v1167
    %v1169 = vsub.f32 %v1128, %v1168
    %v1170 = vsub.f32 %v1133, %v1168
    %v1171 = vsub.f32 %v1138, %v1168
    %v1172 = vsub.f32 %v1143, %v1168
    %v1173 = vsub.f32 %v1148, %v1168
    %v1174 = vsub.f32 %v1153, %v1168
    %v1175 = vsub.f32 %v1158, %v1168
    %v1176 = vsub.f32 %v1163, %v1168
    %v1177 = vmul.f32 %v1169, 1.070149
    %v1178 = vmul.f32 %v1170, 1.070149
    %v1179 = vmul.f32 %v1171, 1.070149
    %v1180 = vmul.f32 %v1172, 1.070149
    %v1181 = vmul.f32 %v1173, 1.070149
    %v1182 = vmul.f32 %v1174, 1.070149
    %v1183 = vmul.f32 %v1175, 1.070149
    %v1184 = vmul.f32 %v1176, 1.070149
    %v1185 = vmul.f32 %v1177, %v1177
    %v1186 = vmul.f32 %v1178, %v1178
    %v1187 = vmul.f32 %v1179, %v1179
    %v1188 = vmul.f32 %v1180, %v1180
    %v1189 = vmul.f32 %v1181, %v1181
    %v1190 = vmul.f32 %v1182, %v1182
    %v1191 = vmul.f32 %v1183, %v1183
    %v1192 = vmul.f32 %v1184, %v1184
    %v1193 = vsub.f32 0.0, %v1185
    %v1194 = vsub.f32 0.0, %v1186
    %v1195 = vsub.f32 0.0, %v1187
    %v1196 = vsub.f32 0.0, %v1188
    %v1197 = vsub.f32 0.0, %v1189
    %v1198 = vsub.f32 0.0, %v1190
    %v1199 = vsub.f32 0.0, %v1191
    %v1200 = vsub.f32 0.0, %v1192
    %v1201 = vmul.f32 %v1193, 1.442695
    %v1202 = vpow.pop %v1201
    %v1203 = vmul.f32 %v1194, 1.442695
    %v1204 = vpow.pop %v1203
    %v1205 = vmul.f32 %v1195, 1.442695
    %v1206 = vpow.pop %v1205
    %v1207 = vmul.f32 %v1196, 1.442695
    %v1208 = vpow.pop %v1207
    %v1209 = vmul.f32 %v1197, 1.442695
    %v1210 = vpow.pop %v1209
    %v1211 = vmul.f32 %v1198, 1.442695
    %v1212 = vpow.pop %v1211
    %v1213 = vmul.f32 %v1199, 1.442695
    %v1214 = vpow.pop %v1213
    %v1215 = vmul.f32 %v1200, 1.442695
    %v1216 = vpow.pop %v1215
    %1217 = vst.msk [vmem:[#allocation2] sm:$0xff] %vm122, %v1202
    %1218 = vst.msk [vmem:[#allocation2 + $0x8] sm:$0xff] %vm122, %v1204
    %1219 = vst.msk [vmem:[#allocation2 + $0x10] sm:$0xff] %vm122, %v1206
    %1220 = vst.msk [vmem:[#allocation2 + $0x18] sm:$0xff] %vm122, %v1208
    %1221 = vst.msk [vmem:[#allocation2 + $0x20] sm:$0xff] %vm122, %v1210
    %1222 = vst.msk [vmem:[#allocation2 + $0x28] sm:$0xff] %vm122, %v1212
    %1223 = vst.msk [vmem:[#allocation2 + $0x30] sm:$0xff] %vm122, %v1214
    %1224 = vst.msk [vmem:[#allocation2 + $0x38] sm:$0xff] %vm122, %v1216
    %1225 = vset.pattern.permute.xlu0 1
    %1226 = vperm.xlu0 %1225, %v1086
    %v1227 = vpop.permute.xlu0 %1226
    %1229 = vset.pattern.permute.xlu0 1
    %1230 = vperm.xlu0 %1229, %v1091
    %v1231 = vpop.permute.xlu0 %1230
    %1233 = vset.pattern.permute.xlu0 1
    %1234 = vperm.xlu0 %1233, %v1096
    %v1235 = vpop.permute.xlu0 %1234
    %1237 = vset.pattern.permute.xlu0 1
    %1238 = vperm.xlu0 %1237, %v1101
    %v1239 = vpop.permute.xlu0 %1238
    %1241 = vset.pattern.permute.xlu0 1
    %1242 = vperm.xlu0 %1241, %v1106
    %v1243 = vpop.permute.xlu0 %1242
    %1245 = vset.pattern.permute.xlu0 1
    %1246 = vperm.xlu0 %1245, %v1111
    %v1247 = vpop.permute.xlu0 %1246
    %1249 = vset.pattern.permute.xlu0 1
    %1250 = vperm.xlu0 %1249, %v1116
    %v1251 = vpop.permute.xlu0 %1250
    %1253 = vset.pattern.permute.xlu0 1
    %1254 = vperm.xlu0 %1253, %v1121
    %v1255 = vpop.permute.xlu0 %1254
    %v1257 = vsub.f32 %v1227, %v1168
    %v1258 = vsub.f32 %v1231, %v1168
    %v1259 = vsub.f32 %v1235, %v1168
    %v1260 = vsub.f32 %v1239, %v1168
    %v1261 = vsub.f32 %v1243, %v1168
    %v1262 = vsub.f32 %v1247, %v1168
    %v1263 = vsub.f32 %v1251, %v1168
    %v1264 = vsub.f32 %v1255, %v1168
    %v1265 = vmul.f32 %v1257, 1.070149
    %v1266 = vmul.f32 %v1258, 1.070149
    %v1267 = vmul.f32 %v1259, 1.070149
    %v1268 = vmul.f32 %v1260, 1.070149
    %v1269 = vmul.f32 %v1261, 1.070149
    %v1270 = vmul.f32 %v1262, 1.070149
    %v1271 = vmul.f32 %v1263, 1.070149
    %v1272 = vmul.f32 %v1264, 1.070149
    %v1273 = vmul.f32 %v1265, %v1265
    %v1274 = vmul.f32 %v1266, %v1266
    %v1275 = vmul.f32 %v1267, %v1267
    %v1276 = vmul.f32 %v1268, %v1268
    %v1277 = vmul.f32 %v1269, %v1269
    %v1278 = vmul.f32 %v1270, %v1270
    %v1279 = vmul.f32 %v1271, %v1271
    %v1280 = vmul.f32 %v1272, %v1272
    %v1281 = vsub.f32 0.0, %v1273
    %v1282 = vsub.f32 0.0, %v1274
    %v1283 = vsub.f32 0.0, %v1275
    %v1284 = vsub.f32 0.0, %v1276
    %v1285 = vsub.f32 0.0, %v1277
    %v1286 = vsub.f32 0.0, %v1278
    %v1287 = vsub.f32 0.0, %v1279
    %v1288 = vsub.f32 0.0, %v1280
    %v1289 = vmul.f32 %v1281, 1.442695
    %v1290 = vpow.pop %v1289
    %v1291 = vmul.f32 %v1282, 1.442695
    %v1292 = vpow.pop %v1291
    %v1293 = vmul.f32 %v1283, 1.442695
    %v1294 = vpow.pop %v1293
    %v1295 = vmul.f32 %v1284, 1.442695
    %v1296 = vpow.pop %v1295
    %v1297 = vmul.f32 %v1285, 1.442695
    %v1298 = vpow.pop %v1297
    %v1299 = vmul.f32 %v1286, 1.442695
    %v1300 = vpow.pop %v1299
    %v1301 = vmul.f32 %v1287, 1.442695
    %v1302 = vpow.pop %v1301
    %v1303 = vmul.f32 %v1288, 1.442695
    %v1304 = vpow.pop %v1303
    %1313 = vrot.lane.b32.xlu0 %v1290, 8
    %v1314 = vpop.permute.xlu0 %1313
    %1315 = vrot.lane.b32.xlu0 %v1292, 8
    %v1316 = vpop.permute.xlu0 %1315
    %1317 = vrot.lane.b32.xlu0 %v1294, 8
    %v1318 = vpop.permute.xlu0 %1317
    %1319 = vrot.lane.b32.xlu0 %v1296, 8
    %v1320 = vpop.permute.xlu0 %1319
    %1321 = vrot.lane.b32.xlu0 %v1298, 8
    %v1322 = vpop.permute.xlu0 %1321
    %1323 = vrot.lane.b32.xlu0 %v1300, 8
    %v1324 = vpop.permute.xlu0 %1323
    %1325 = vrot.lane.b32.xlu0 %v1302, 8
    %v1326 = vpop.permute.xlu0 %1325
    %1327 = vrot.lane.b32.xlu0 %v1304, 8
    %v1328 = vpop.permute.xlu0 %1327
    %1337 = vst.msk [vmem:[#allocation2] sm:$0xff] %vm243, %v1314
    %1338 = vst.msk [vmem:[#allocation2 + $0x8] sm:$0xff] %vm243, %v1316
    %1339 = vst.msk [vmem:[#allocation2 + $0x10] sm:$0xff] %vm243, %v1318
    %1340 = vst.msk [vmem:[#allocation2 + $0x18] sm:$0xff] %vm243, %v1320
    %1341 = vst.msk [vmem:[#allocation2 + $0x20] sm:$0xff] %vm243, %v1322
    %1342 = vst.msk [vmem:[#allocation2 + $0x28] sm:$0xff] %vm243, %v1324
    %1343 = vst.msk [vmem:[#allocation2 + $0x30] sm:$0xff] %vm243, %v1326
    %1344 = vst.msk [vmem:[#allocation2 + $0x38] sm:$0xff] %vm243, %v1328
    %1345 = vset.pattern.permute.xlu0 2
    %1346 = vperm.xlu0 %1345, %v1086
    %v1347 = vpop.permute.xlu0 %1346
    %1349 = vset.pattern.permute.xlu0 2
    %1350 = vperm.xlu0 %1349, %v1091
    %v1351 = vpop.permute.xlu0 %1350
    %1353 = vset.pattern.permute.xlu0 2
    %1354 = vperm.xlu0 %1353, %v1096
    %v1355 = vpop.permute.xlu0 %1354
    %1357 = vset.pattern.permute.xlu0 2
    %1358 = vperm.xlu0 %1357, %v1101
    %v1359 = vpop.permute.xlu0 %1358
    %1361 = vset.pattern.permute.xlu0 2
    %1362 = vperm.xlu0 %1361, %v1106
    %v1363 = vpop.permute.xlu0 %1362
    %1365 = vset.pattern.permute.xlu0 2
    %1366 = vperm.xlu0 %1365, %v1111
    %v1367 = vpop.permute.xlu0 %1366
    %1369 = vset.pattern.permute.xlu0 2
    %1370 = vperm.xlu0 %1369, %v1116
    %v1371 = vpop.permute.xlu0 %1370
    %1373 = vset.pattern.permute.xlu0 2
    %1374 = vperm.xlu0 %1373, %v1121
    %v1375 = vpop.permute.xlu0 %1374
    %v1377 = vsub.f32 %v1347, %v1168
    %v1378 = vsub.f32 %v1351, %v1168
    %v1379 = vsub.f32 %v1355, %v1168
    %v1380 = vsub.f32 %v1359, %v1168
    %v1381 = vsub.f32 %v1363, %v1168
    %v1382 = vsub.f32 %v1367, %v1168
    %v1383 = vsub.f32 %v1371, %v1168
    %v1384 = vsub.f32 %v1375, %v1168
    %v1385 = vmul.f32 %v1377, 1.070149
    %v1386 = vmul.f32 %v1378, 1.070149
    %v1387 = vmul.f32 %v1379, 1.070149
    %v1388 = vmul.f32 %v1380, 1.070149
    %v1389 = vmul.f32 %v1381, 1.070149
    %v1390 = vmul.f32 %v1382, 1.070149
    %v1391 = vmul.f32 %v1383, 1.070149
    %v1392 = vmul.f32 %v1384, 1.070149
    %v1393 = vmul.f32 %v1385, %v1385
    %v1394 = vmul.f32 %v1386, %v1386
    %v1395 = vmul.f32 %v1387, %v1387
    %v1396 = vmul.f32 %v1388, %v1388
    %v1397 = vmul.f32 %v1389, %v1389
    %v1398 = vmul.f32 %v1390, %v1390
    %v1399 = vmul.f32 %v1391, %v1391
    %v1400 = vmul.f32 %v1392, %v1392
    %v1401 = vsub.f32 0.0, %v1393
    %v1402 = vsub.f32 0.0, %v1394
    %v1403 = vsub.f32 0.0, %v1395
    %v1404 = vsub.f32 0.0, %v1396
    %v1405 = vsub.f32 0.0, %v1397
    %v1406 = vsub.f32 0.0, %v1398
    %v1407 = vsub.f32 0.0, %v1399
    %v1408 = vsub.f32 0.0, %v1400
    %v1409 = vmul.f32 %v1401, 1.442695
    %v1410 = vpow.pop %v1409
    %v1411 = vmul.f32 %v1402, 1.442695
    %v1412 = vpow.pop %v1411
    %v1413 = vmul.f32 %v1403, 1.442695
    %v1414 = vpow.pop %v1413
    %v1415 = vmul.f32 %v1404, 1.442695
    %v1416 = vpow.pop %v1415
    %v1417 = vmul.f32 %v1405, 1.442695
    %v1418 = vpow.pop %v1417
    %v1419 = vmul.f32 %v1406, 1.442695
    %v1420 = vpow.pop %v1419
    %v1421 = vmul.f32 %v1407, 1.442695
    %v1422 = vpow.pop %v1421
    %v1423 = vmul.f32 %v1408, 1.442695
    %v1424 = vpow.pop %v1423
    %1433 = vrot.lane.b32.xlu0 %v1410, 16
    %v1434 = vpop.permute.xlu0 %1433
    %1435 = vrot.lane.b32.xlu0 %v1412, 16
    %v1436 = vpop.permute.xlu0 %1435
    %1437 = vrot.lane.b32.xlu0 %v1414, 16
    %v1438 = vpop.permute.xlu0 %1437
    %1439 = vrot.lane.b32.xlu0 %v1416, 16
    %v1440 = vpop.permute.xlu0 %1439
    %1441 = vrot.lane.b32.xlu0 %v1418, 16
    %v1442 = vpop.permute.xlu0 %1441
    %1443 = vrot.lane.b32.xlu0 %v1420, 16
    %v1444 = vpop.permute.xlu0 %1443
    %1445 = vrot.lane.b32.xlu0 %v1422, 16
    %v1446 = vpop.permute.xlu0 %1445
    %1447 = vrot.lane.b32.xlu0 %v1424, 16
    %v1448 = vpop.permute.xlu0 %1447
    %1457 = vst.msk [vmem:[#allocation2] sm:$0xff] %vm364, %v1434
    %1458 = vst.msk [vmem:[#allocation2 + $0x8] sm:$0xff] %vm364, %v1436
    %1459 = vst.msk [vmem:[#allocation2 + $0x10] sm:$0xff] %vm364, %v1438
    %1460 = vst.msk [vmem:[#allocation2 + $0x18] sm:$0xff] %vm364, %v1440
    %1461 = vst.msk [vmem:[#allocation2 + $0x20] sm:$0xff] %vm364, %v1442
    %1462 = vst.msk [vmem:[#allocation2 + $0x28] sm:$0xff] %vm364, %v1444
    %1463 = vst.msk [vmem:[#allocation2 + $0x30] sm:$0xff] %vm364, %v1446
    %1464 = vst.msk [vmem:[#allocation2 + $0x38] sm:$0xff] %vm364, %v1448
    %1465 = vset.pattern.permute.xlu0 3
    %1466 = vperm.xlu0 %1465, %v1086
    %v1467 = vpop.permute.xlu0 %1466
    %1469 = vset.pattern.permute.xlu0 3
    %1470 = vperm.xlu0 %1469, %v1091
    %v1471 = vpop.permute.xlu0 %1470
    %1473 = vset.pattern.permute.xlu0 3
    %1474 = vperm.xlu0 %1473, %v1096
    %v1475 = vpop.permute.xlu0 %1474
    %1477 = vset.pattern.permute.xlu0 3
    %1478 = vperm.xlu0 %1477, %v1101
    %v1479 = vpop.permute.xlu0 %1478
    %1481 = vset.pattern.permute.xlu0 3
    %1482 = vperm.xlu0 %1481, %v1106
    %v1483 = vpop.permute.xlu0 %1482
    %1485 = vset.pattern.permute.xlu0 3
    %1486 = vperm.xlu0 %1485, %v1111
    %v1487 = vpop.permute.xlu0 %1486
    %1489 = vset.pattern.permute.xlu0 3
    %1490 = vperm.xlu0 %1489, %v1116
    %v1491 = vpop.permute.xlu0 %1490
    %1493 = vset.pattern.permute.xlu0 3
    %1494 = vperm.xlu0 %1493, %v1121
    %v1495 = vpop.permute.xlu0 %1494
    %v1497 = vsub.f32 %v1467, %v1168
    %v1498 = vsub.f32 %v1471, %v1168
    %v1499 = vsub.f32 %v1475, %v1168
    %v1500 = vsub.f32 %v1479, %v1168
    %v1501 = vsub.f32 %v1483, %v1168
    %v1502 = vsub.f32 %v1487, %v1168
    %v1503 = vsub.f32 %v1491, %v1168
    %v1504 = vsub.f32 %v1495, %v1168
    %v1505 = vmul.f32 %v1497, 1.070149
    %v1506 = vmul.f32 %v1498, 1.070149
    %v1507 = vmul.f32 %v1499, 1.070149
    %v1508 = vmul.f32 %v1500, 1.070149
    %v1509 = vmul.f32 %v1501, 1.070149
    %v1510 = vmul.f32 %v1502, 1.070149
    %v1511 = vmul.f32 %v1503, 1.070149
    %v1512 = vmul.f32 %v1504, 1.070149
    %v1513 = vmul.f32 %v1505, %v1505
    %v1514 = vmul.f32 %v1506, %v1506
    %v1515 = vmul.f32 %v1507, %v1507
    %v1516 = vmul.f32 %v1508, %v1508
    %v1517 = vmul.f32 %v1509, %v1509
    %v1518 = vmul.f32 %v1510, %v1510
    %v1519 = vmul.f32 %v1511, %v1511
    %v1520 = vmul.f32 %v1512, %v1512
    %v1521 = vsub.f32 0.0, %v1513
    %v1522 = vsub.f32 0.0, %v1514
    %v1523 = vsub.f32 0.0, %v1515
    %v1524 = vsub.f32 0.0, %v1516
    %v1525 = vsub.f32 0.0, %v1517
    %v1526 = vsub.f32 0.0, %v1518
    %v1527 = vsub.f32 0.0, %v1519
    %v1528 = vsub.f32 0.0, %v1520
    %v1529 = vmul.f32 %v1521, 1.442695
    %v1530 = vpow.pop %v1529
    %v1531 = vmul.f32 %v1522, 1.442695
    %v1532 = vpow.pop %v1531
    %v1533 = vmul.f32 %v1523, 1.442695
    %v1534 = vpow.pop %v1533
    %v1535 = vmul.f32 %v1524, 1.442695
    %v1536 = vpow.pop %v1535
    %v1537 = vmul.f32 %v1525, 1.442695
    %v1538 = vpow.pop %v1537
    %v1539 = vmul.f32 %v1526, 1.442695
    %v1540 = vpow.pop %v1539
    %v1541 = vmul.f32 %v1527, 1.442695
    %v1542 = vpow.pop %v1541
    %v1543 = vmul.f32 %v1528, 1.442695
    %v1544 = vpow.pop %v1543
    %1553 = vrot.lane.b32.xlu0 %v1530, 24
    %v1554 = vpop.permute.xlu0 %1553
    %1555 = vrot.lane.b32.xlu0 %v1532, 24
    %v1556 = vpop.permute.xlu0 %1555
    %1557 = vrot.lane.b32.xlu0 %v1534, 24
    %v1558 = vpop.permute.xlu0 %1557
    %1559 = vrot.lane.b32.xlu0 %v1536, 24
    %v1560 = vpop.permute.xlu0 %1559
    %1561 = vrot.lane.b32.xlu0 %v1538, 24
    %v1562 = vpop.permute.xlu0 %1561
    %1563 = vrot.lane.b32.xlu0 %v1540, 24
    %v1564 = vpop.permute.xlu0 %1563
    %1565 = vrot.lane.b32.xlu0 %v1542, 24
    %v1566 = vpop.permute.xlu0 %1565
    %1567 = vrot.lane.b32.xlu0 %v1544, 24
    %v1568 = vpop.permute.xlu0 %1567
    %1577 = vst.msk [vmem:[#allocation2] sm:$0xff] %vm485, %v1554
    %1578 = vst.msk [vmem:[#allocation2 + $0x8] sm:$0xff] %vm485, %v1556
    %1579 = vst.msk [vmem:[#allocation2 + $0x10] sm:$0xff] %vm485, %v1558
    %1580 = vst.msk [vmem:[#allocation2 + $0x18] sm:$0xff] %vm485, %v1560
    %1581 = vst.msk [vmem:[#allocation2 + $0x20] sm:$0xff] %vm485, %v1562
    %1582 = vst.msk [vmem:[#allocation2 + $0x28] sm:$0xff] %vm485, %v1564
    %1583 = vst.msk [vmem:[#allocation2 + $0x30] sm:$0xff] %vm485, %v1566
    %1584 = vst.msk [vmem:[#allocation2 + $0x38] sm:$0xff] %vm485, %v1568
    %1585 = vset.pattern.permute.xlu0 4
    %1586 = vperm.xlu0 %1585, %v1086
    %v1587 = vpop.permute.xlu0 %1586
    %1589 = vset.pattern.permute.xlu0 4
    %1590 = vperm.xlu0 %1589, %v1091
    %v1591 = vpop.permute.xlu0 %1590
    %1593 = vset.pattern.permute.xlu0 4
    %1594 = vperm.xlu0 %1593, %v1096
    %v1595 = vpop.permute.xlu0 %1594
    %1597 = vset.pattern.permute.xlu0 4
    %1598 = vperm.xlu0 %1597, %v1101
    %v1599 = vpop.permute.xlu0 %1598
    %1601 = vset.pattern.permute.xlu0 4
    %1602 = vperm.xlu0 %1601, %v1106
    %v1603 = vpop.permute.xlu0 %1602
    %1605 = vset.pattern.permute.xlu0 4
    %1606 = vperm.xlu0 %1605, %v1111
    %v1607 = vpop.permute.xlu0 %1606
    %1609 = vset.pattern.permute.xlu0 4
    %1610 = vperm.xlu0 %1609, %v1116
    %v1611 = vpop.permute.xlu0 %1610
    %1613 = vset.pattern.permute.xlu0 4
    %1614 = vperm.xlu0 %1613, %v1121
    %v1615 = vpop.permute.xlu0 %1614
    %v1617 = vsub.f32 %v1587, %v1168
    %v1618 = vsub.f32 %v1591, %v1168
    %v1619 = vsub.f32 %v1595, %v1168
    %v1620 = vsub.f32 %v1599, %v1168
    %v1621 = vsub.f32 %v1603, %v1168
    %v1622 = vsub.f32 %v1607, %v1168
    %v1623 = vsub.f32 %v1611, %v1168
    %v1624 = vsub.f32 %v1615, %v1168
    %v1625 = vmul.f32 %v1617, 1.070149
    %v1626 = vmul.f32 %v1618, 1.070149
    %v1627 = vmul.f32 %v1619, 1.070149
    %v1628 = vmul.f32 %v1620, 1.070149
    %v1629 = vmul.f32 %v1621, 1.070149
    %v1630 = vmul.f32 %v1622, 1.070149
    %v1631 = vmul.f32 %v1623, 1.070149
    %v1632 = vmul.f32 %v1624, 1.070149
    %v1633 = vmul.f32 %v1625, %v1625
    %v1634 = vmul.f32 %v1626, %v1626
    %v1635 = vmul.f32 %v1627, %v1627
    %v1636 = vmul.f32 %v1628, %v1628
    %v1637 = vmul.f32 %v1629, %v1629
    %v1638 = vmul.f32 %v1630, %v1630
    %v1639 = vmul.f32 %v1631, %v1631
    %v1640 = vmul.f32 %v1632, %v1632
    %v1641 = vsub.f32 0.0, %v1633
    %v1642 = vsub.f32 0.0, %v1634
    %v1643 = vsub.f32 0.0, %v1635
    %v1644 = vsub.f32 0.0, %v1636
    %v1645 = vsub.f32 0.0, %v1637
    %v1646 = vsub.f32 0.0, %v1638
    %v1647 = vsub.f32 0.0, %v1639
    %v1648 = vsub.f32 0.0, %v1640
    %v1649 = vmul.f32 %v1641, 1.442695
    %v1650 = vpow.pop %v1649
    %v1651 = vmul.f32 %v1642, 1.442695
    %v1652 = vpow.pop %v1651
    %v1653 = vmul.f32 %v1643, 1.442695
    %v1654 = vpow.pop %v1653
    %v1655 = vmul.f32 %v1644, 1.442695
    %v1656 = vpow.pop %v1655
    %v1657 = vmul.f32 %v1645, 1.442695
    %v1658 = vpow.pop %v1657
    %v1659 = vmul.f32 %v1646, 1.442695
    %v1660 = vpow.pop %v1659
    %v1661 = vmul.f32 %v1647, 1.442695
    %v1662 = vpow.pop %v1661
    %v1663 = vmul.f32 %v1648, 1.442695
    %v1664 = vpow.pop %v1663
    %1673 = vrot.lane.b32.xlu0 %v1650, 32
    %v1674 = vpop.permute.xlu0 %1673
    %1675 = vrot.lane.b32.xlu0 %v1652, 32
    %v1676 = vpop.permute.xlu0 %1675
    %1677 = vrot.lane.b32.xlu0 %v1654, 32
    %v1678 = vpop.permute.xlu0 %1677
    %1679 = vrot.lane.b32.xlu0 %v1656, 32
    %v1680 = vpop.permute.xlu0 %1679
    %1681 = vrot.lane.b32.xlu0 %v1658, 32
    %v1682 = vpop.permute.xlu0 %1681
    %1683 = vrot.lane.b32.xlu0 %v1660, 32
    %v1684 = vpop.permute.xlu0 %1683
    %1685 = vrot.lane.b32.xlu0 %v1662, 32
    %v1686 = vpop.permute.xlu0 %1685
    %1687 = vrot.lane.b32.xlu0 %v1664, 32
    %v1688 = vpop.permute.xlu0 %1687
    %1697 = vst.msk [vmem:[#allocation2] sm:$0xff] %vm606, %v1674
    %1698 = vst.msk [vmem:[#allocation2 + $0x8] sm:$0xff] %vm606, %v1676
    %1699 = vst.msk [vmem:[#allocation2 + $0x10] sm:$0xff] %vm606, %v1678
    %1700 = vst.msk [vmem:[#allocation2 + $0x18] sm:$0xff] %vm606, %v1680
    %1701 = vst.msk [vmem:[#allocation2 + $0x20] sm:$0xff] %vm606, %v1682
    %1702 = vst.msk [vmem:[#allocation2 + $0x28] sm:$0xff] %vm606, %v1684
    %1703 = vst.msk [vmem:[#allocation2 + $0x30] sm:$0xff] %vm606, %v1686
    %1704 = vst.msk [vmem:[#allocation2 + $0x38] sm:$0xff] %vm606, %v1688
    %1705 = vset.pattern.permute.xlu0 5
    %1706 = vperm.xlu0 %1705, %v1086
    %v1707 = vpop.permute.xlu0 %1706
    %1709 = vset.pattern.permute.xlu0 5
    %1710 = vperm.xlu0 %1709, %v1091
    %v1711 = vpop.permute.xlu0 %1710
    %1713 = vset.pattern.permute.xlu0 5
    %1714 = vperm.xlu0 %1713, %v1096
    %v1715 = vpop.permute.xlu0 %1714
    %1717 = vset.pattern.permute.xlu0 5
    %1718 = vperm.xlu0 %1717, %v1101
    %v1719 = vpop.permute.xlu0 %1718
    %1721 = vset.pattern.permute.xlu0 5
    %1722 = vperm.xlu0 %1721, %v1106
    %v1723 = vpop.permute.xlu0 %1722
    %1725 = vset.pattern.permute.xlu0 5
    %1726 = vperm.xlu0 %1725, %v1111
    %v1727 = vpop.permute.xlu0 %1726
    %1729 = vset.pattern.permute.xlu0 5
    %1730 = vperm.xlu0 %1729, %v1116
    %v1731 = vpop.permute.xlu0 %1730
    %1733 = vset.pattern.permute.xlu0 5
    %1734 = vperm.xlu0 %1733, %v1121
    %v1735 = vpop.permute.xlu0 %1734
    %v1737 = vsub.f32 %v1707, %v1168
    %v1738 = vsub.f32 %v1711, %v1168
    %v1739 = vsub.f32 %v1715, %v1168
    %v1740 = vsub.f32 %v1719, %v1168
    %v1741 = vsub.f32 %v1723, %v1168
    %v1742 = vsub.f32 %v1727, %v1168
    %v1743 = vsub.f32 %v1731, %v1168
    %v1744 = vsub.f32 %v1735, %v1168
    %v1745 = vmul.f32 %v1737, 1.070149
    %v1746 = vmul.f32 %v1738, 1.070149
    %v1747 = vmul.f32 %v1739, 1.070149
    %v1748 = vmul.f32 %v1740, 1.070149
    %v1749 = vmul.f32 %v1741, 1.070149
    %v1750 = vmul.f32 %v1742, 1.070149
    %v1751 = vmul.f32 %v1743, 1.070149
    %v1752 = vmul.f32 %v1744, 1.070149
    %v1753 = vmul.f32 %v1745, %v1745
    %v1754 = vmul.f32 %v1746, %v1746
    %v1755 = vmul.f32 %v1747, %v1747
    %v1756 = vmul.f32 %v1748, %v1748
    %v1757 = vmul.f32 %v1749, %v1749
    %v1758 = vmul.f32 %v1750, %v1750
    %v1759 = vmul.f32 %v1751, %v1751
    %v1760 = vmul.f32 %v1752, %v1752
    %v1761 = vsub.f32 0.0, %v1753
    %v1762 = vsub.f32 0.0, %v1754
    %v1763 = vsub.f32 0.0, %v1755
    %v1764 = vsub.f32 0.0, %v1756
    %v1765 = vsub.f32 0.0, %v1757
    %v1766 = vsub.f32 0.0, %v1758
    %v1767 = vsub.f32 0.0, %v1759
    %v1768 = vsub.f32 0.0, %v1760
    %v1769 = vmul.f32 %v1761, 1.442695
    %v1770 = vpow.pop %v1769
    %v1771 = vmul.f32 %v1762, 1.442695
    %v1772 = vpow.pop %v1771
    %v1773 = vmul.f32 %v1763, 1.442695
    %v1774 = vpow.pop %v1773
    %v1775 = vmul.f32 %v1764, 1.442695
    %v1776 = vpow.pop %v1775
    %v1777 = vmul.f32 %v1765, 1.442695
    %v1778 = vpow.pop %v1777
    %v1779 = vmul.f32 %v1766, 1.442695
    %v1780 = vpow.pop %v1779
    %v1781 = vmul.f32 %v1767, 1.442695
    %v1782 = vpow.pop %v1781
    %v1783 = vmul.f32 %v1768, 1.442695
    %v1784 = vpow.pop %v1783
    %1793 = vrot.lane.b32.xlu0 %v1770, 40
    %v1794 = vpop.permute.xlu0 %1793
    %1795 = vrot.lane.b32.xlu0 %v1772, 40
    %v1796 = vpop.permute.xlu0 %1795
    %1797 = vrot.lane.b32.xlu0 %v1774, 40
    %v1798 = vpop.permute.xlu0 %1797
    %1799 = vrot.lane.b32.xlu0 %v1776, 40
    %v1800 = vpop.permute.xlu0 %1799
    %1801 = vrot.lane.b32.xlu0 %v1778, 40
    %v1802 = vpop.permute.xlu0 %1801
    %1803 = vrot.lane.b32.xlu0 %v1780, 40
    %v1804 = vpop.permute.xlu0 %1803
    %1805 = vrot.lane.b32.xlu0 %v1782, 40
    %v1806 = vpop.permute.xlu0 %1805
    %1807 = vrot.lane.b32.xlu0 %v1784, 40
    %v1808 = vpop.permute.xlu0 %1807
    %1817 = vst.msk [vmem:[#allocation2] sm:$0xff] %vm727, %v1794
    %1818 = vst.msk [vmem:[#allocation2 + $0x8] sm:$0xff] %vm727, %v1796
    %1819 = vst.msk [vmem:[#allocation2 + $0x10] sm:$0xff] %vm727, %v1798
    %1820 = vst.msk [vmem:[#allocation2 + $0x18] sm:$0xff] %vm727, %v1800
    %1821 = vst.msk [vmem:[#allocation2 + $0x20] sm:$0xff] %vm727, %v1802
    %1822 = vst.msk [vmem:[#allocation2 + $0x28] sm:$0xff] %vm727, %v1804
    %1823 = vst.msk [vmem:[#allocation2 + $0x30] sm:$0xff] %vm727, %v1806
    %1824 = vst.msk [vmem:[#allocation2 + $0x38] sm:$0xff] %vm727, %v1808
    %1825 = vset.pattern.permute.xlu0 6
    %1826 = vperm.xlu0 %1825, %v1086
    %v1827 = vpop.permute.xlu0 %1826
    %1829 = vset.pattern.permute.xlu0 6
    %1830 = vperm.xlu0 %1829, %v1091
    %v1831 = vpop.permute.xlu0 %1830
    %1833 = vset.pattern.permute.xlu0 6
    %1834 = vperm.xlu0 %1833, %v1096
    %v1835 = vpop.permute.xlu0 %1834
    %1837 = vset.pattern.permute.xlu0 6
    %1838 = vperm.xlu0 %1837, %v1101
    %v1839 = vpop.permute.xlu0 %1838
    %1841 = vset.pattern.permute.xlu0 6
    %1842 = vperm.xlu0 %1841, %v1106
    %v1843 = vpop.permute.xlu0 %1842
    %1845 = vset.pattern.permute.xlu0 6
    %1846 = vperm.xlu0 %1845, %v1111
    %v1847 = vpop.permute.xlu0 %1846
    %1849 = vset.pattern.permute.xlu0 6
    %1850 = vperm.xlu0 %1849, %v1116
    %v1851 = vpop.permute.xlu0 %1850
    %1853 = vset.pattern.permute.xlu0 6
    %1854 = vperm.xlu0 %1853, %v1121
    %v1855 = vpop.permute.xlu0 %1854
    %v1857 = vsub.f32 %v1827, %v1168
    %v1858 = vsub.f32 %v1831, %v1168
    %v1859 = vsub.f32 %v1835, %v1168
    %v1860 = vsub.f32 %v1839, %v1168
    %v1861 = vsub.f32 %v1843, %v1168
    %v1862 = vsub.f32 %v1847, %v1168
    %v1863 = vsub.f32 %v1851, %v1168
    %v1864 = vsub.f32 %v1855, %v1168
    %v1865 = vmul.f32 %v1857, 1.070149
    %v1866 = vmul.f32 %v1858, 1.070149
    %v1867 = vmul.f32 %v1859, 1.070149
    %v1868 = vmul.f32 %v1860, 1.070149
    %v1869 = vmul.f32 %v1861, 1.070149
    %v1870 = vmul.f32 %v1862, 1.070149
    %v1871 = vmul.f32 %v1863, 1.070149
    %v1872 = vmul.f32 %v1864, 1.070149
    %v1873 = vmul.f32 %v1865, %v1865
    %v1874 = vmul.f32 %v1866, %v1866
    %v1875 = vmul.f32 %v1867, %v1867
    %v1876 = vmul.f32 %v1868, %v1868
    %v1877 = vmul.f32 %v1869, %v1869
    %v1878 = vmul.f32 %v1870, %v1870
    %v1879 = vmul.f32 %v1871, %v1871
    %v1880 = vmul.f32 %v1872, %v1872
    %v1881 = vsub.f32 0.0, %v1873
    %v1882 = vsub.f32 0.0, %v1874
    %v1883 = vsub.f32 0.0, %v1875
    %v1884 = vsub.f32 0.0, %v1876
    %v1885 = vsub.f32 0.0, %v1877
    %v1886 = vsub.f32 0.0, %v1878
    %v1887 = vsub.f32 0.0, %v1879
    %v1888 = vsub.f32 0.0, %v1880
    %v1889 = vmul.f32 %v1881, 1.442695
    %v1890 = vpow.pop %v1889
    %v1891 = vmul.f32 %v1882, 1.442695
    %v1892 = vpow.pop %v1891
    %v1893 = vmul.f32 %v1883, 1.442695
    %v1894 = vpow.pop %v1893
    %v1895 = vmul.f32 %v1884, 1.442695
    %v1896 = vpow.pop %v1895
    %v1897 = vmul.f32 %v1885, 1.442695
    %v1898 = vpow.pop %v1897
    %v1899 = vmul.f32 %v1886, 1.442695
    %v1900 = vpow.pop %v1899
    %v1901 = vmul.f32 %v1887, 1.442695
    %v1902 = vpow.pop %v1901
    %v1903 = vmul.f32 %v1888, 1.442695
    %v1904 = vpow.pop %v1903
    %1913 = vrot.lane.b32.xlu0 %v1890, 48
    %v1914 = vpop.permute.xlu0 %1913
    %1915 = vrot.lane.b32.xlu0 %v1892, 48
    %v1916 = vpop.permute.xlu0 %1915
    %1917 = vrot.lane.b32.xlu0 %v1894, 48
    %v1918 = vpop.permute.xlu0 %1917
    %1919 = vrot.lane.b32.xlu0 %v1896, 48
    %v1920 = vpop.permute.xlu0 %1919
    %1921 = vrot.lane.b32.xlu0 %v1898, 48
    %v1922 = vpop.permute.xlu0 %1921
    %1923 = vrot.lane.b32.xlu0 %v1900, 48
    %v1924 = vpop.permute.xlu0 %1923
    %1925 = vrot.lane.b32.xlu0 %v1902, 48
    %v1926 = vpop.permute.xlu0 %1925
    %1927 = vrot.lane.b32.xlu0 %v1904, 48
    %v1928 = vpop.permute.xlu0 %1927
    %1937 = vst.msk [vmem:[#allocation2] sm:$0xff] %vm848, %v1914
    %1938 = vst.msk [vmem:[#allocation2 + $0x8] sm:$0xff] %vm848, %v1916
    %1939 = vst.msk [vmem:[#allocation2 + $0x10] sm:$0xff] %vm848, %v1918
    %1940 = vst.msk [vmem:[#allocation2 + $0x18] sm:$0xff] %vm848, %v1920
    %1941 = vst.msk [vmem:[#allocation2 + $0x20] sm:$0xff] %vm848, %v1922
    %1942 = vst.msk [vmem:[#allocation2 + $0x28] sm:$0xff] %vm848, %v1924
    %1943 = vst.msk [vmem:[#allocation2 + $0x30] sm:$0xff] %vm848, %v1926
    %1944 = vst.msk [vmem:[#allocation2 + $0x38] sm:$0xff] %vm848, %v1928
    %1945 = vset.pattern.permute.xlu0 7
    %1946 = vperm.xlu0 %1945, %v1086
    %v1947 = vpop.permute.xlu0 %1946
    %1949 = vset.pattern.permute.xlu0 7
    %1950 = vperm.xlu0 %1949, %v1091
    %v1951 = vpop.permute.xlu0 %1950
    %1953 = vset.pattern.permute.xlu0 7
    %1954 = vperm.xlu0 %1953, %v1096
    %v1955 = vpop.permute.xlu0 %1954
    %1957 = vset.pattern.permute.xlu0 7
    %1958 = vperm.xlu0 %1957, %v1101
    %v1959 = vpop.permute.xlu0 %1958
    %1961 = vset.pattern.permute.xlu0 7
    %1962 = vperm.xlu0 %1961, %v1106
    %v1963 = vpop.permute.xlu0 %1962
    %1965 = vset.pattern.permute.xlu0 7
    %1966 = vperm.xlu0 %1965, %v1111
    %v1967 = vpop.permute.xlu0 %1966
    %1969 = vset.pattern.permute.xlu0 7
    %1970 = vperm.xlu0 %1969, %v1116
    %v1971 = vpop.permute.xlu0 %1970
    %1973 = vset.pattern.permute.xlu0 7
    %1974 = vperm.xlu0 %1973, %v1121
    %v1975 = vpop.permute.xlu0 %1974
    %v1977 = vsub.f32 %v1947, %v1168
    %v1978 = vsub.f32 %v1951, %v1168
    %v1979 = vsub.f32 %v1955, %v1168
    %v1980 = vsub.f32 %v1959, %v1168
    %v1981 = vsub.f32 %v1963, %v1168
    %v1982 = vsub.f32 %v1967, %v1168
    %v1983 = vsub.f32 %v1971, %v1168
    %v1984 = vsub.f32 %v1975, %v1168
    %v1985 = vmul.f32 %v1977, 1.070149
    %v1986 = vmul.f32 %v1978, 1.070149
    %v1987 = vmul.f32 %v1979, 1.070149
    %v1988 = vmul.f32 %v1980, 1.070149
    %v1989 = vmul.f32 %v1981, 1.070149
    %v1990 = vmul.f32 %v1982, 1.070149
    %v1991 = vmul.f32 %v1983, 1.070149
    %v1992 = vmul.f32 %v1984, 1.070149
    %v1993 = vmul.f32 %v1985, %v1985
    %v1994 = vmul.f32 %v1986, %v1986
    %v1995 = vmul.f32 %v1987, %v1987
    %v1996 = vmul.f32 %v1988, %v1988
    %v1997 = vmul.f32 %v1989, %v1989
    %v1998 = vmul.f32 %v1990, %v1990
    %v1999 = vmul.f32 %v1991, %v1991
    %v2000 = vmul.f32 %v1992, %v1992
    %v2001 = vsub.f32 0.0, %v1993
    %v2002 = vsub.f32 0.0, %v1994
    %v2003 = vsub.f32 0.0, %v1995
    %v2004 = vsub.f32 0.0, %v1996
    %v2005 = vsub.f32 0.0, %v1997
    %v2006 = vsub.f32 0.0, %v1998
    %v2007 = vsub.f32 0.0, %v1999
    %v2008 = vsub.f32 0.0, %v2000
    %v2009 = vmul.f32 %v2001, 1.442695
    %v2010 = vpow.pop %v2009
    %v2011 = vmul.f32 %v2002, 1.442695
    %v2012 = vpow.pop %v2011
    %v2013 = vmul.f32 %v2003, 1.442695
    %v2014 = vpow.pop %v2013
    %v2015 = vmul.f32 %v2004, 1.442695
    %v2016 = vpow.pop %v2015
    %v2017 = vmul.f32 %v2005, 1.442695
    %v2018 = vpow.pop %v2017
    %v2019 = vmul.f32 %v2006, 1.442695
    %v2020 = vpow.pop %v2019
    %v2021 = vmul.f32 %v2007, 1.442695
    %v2022 = vpow.pop %v2021
    %v2023 = vmul.f32 %v2008, 1.442695
    %v2024 = vpow.pop %v2023
    %2033 = vrot.lane.b32.xlu0 %v2010, 56
    %v2034 = vpop.permute.xlu0 %2033
    %2035 = vrot.lane.b32.xlu0 %v2012, 56
    %v2036 = vpop.permute.xlu0 %2035
    %2037 = vrot.lane.b32.xlu0 %v2014, 56
    %v2038 = vpop.permute.xlu0 %2037
    %2039 = vrot.lane.b32.xlu0 %v2016, 56
    %v2040 = vpop.permute.xlu0 %2039
    %2041 = vrot.lane.b32.xlu0 %v2018, 56
    %v2042 = vpop.permute.xlu0 %2041
    %2043 = vrot.lane.b32.xlu0 %v2020, 56
    %v2044 = vpop.permute.xlu0 %2043
    %2045 = vrot.lane.b32.xlu0 %v2022, 56
    %v2046 = vpop.permute.xlu0 %2045
    %2047 = vrot.lane.b32.xlu0 %v2024, 56
    %v2048 = vpop.permute.xlu0 %2047
    %2057 = vst.msk [vmem:[#allocation2] sm:$0xff] %vm969, %v2034
    %2058 = vst.msk [vmem:[#allocation2 + $0x8] sm:$0xff] %vm969, %v2036
    %2059 = vst.msk [vmem:[#allocation2 + $0x10] sm:$0xff] %vm969, %v2038
    %2060 = vst.msk [vmem:[#allocation2 + $0x18] sm:$0xff] %vm969, %v2040
    %2061 = vst.msk [vmem:[#allocation2 + $0x20] sm:$0xff] %vm969, %v2042
    %2062 = vst.msk [vmem:[#allocation2 + $0x28] sm:$0xff] %vm969, %v2044
    %2063 = vst.msk [vmem:[#allocation2 + $0x30] sm:$0xff] %vm969, %v2046
    %2064 = vst.msk [vmem:[#allocation2 + $0x38] sm:$0xff] %vm969, %v2048
    %2065 = vset.pattern.permute.xlu0 8
    %2066 = vperm.xlu0 %2065, %v1086
    %v2067 = vpop.permute.xlu0 %2066
    %2069 = vset.pattern.permute.xlu0 8
    %2070 = vperm.xlu0 %2069, %v1091
    %v2071 = vpop.permute.xlu0 %2070
    %2073 = vset.pattern.permute.xlu0 8
    %2074 = vperm.xlu0 %2073, %v1096
    %v2075 = vpop.permute.xlu0 %2074
    %2077 = vset.pattern.permute.xlu0 8
    %2078 = vperm.xlu0 %2077, %v1101
    %v2079 = vpop.permute.xlu0 %2078
    %2081 = vset.pattern.permute.xlu0 8
    %2082 = vperm.xlu0 %2081, %v1106
    %v2083 = vpop.permute.xlu0 %2082
    %2085 = vset.pattern.permute.xlu0 8
    %2086 = vperm.xlu0 %2085, %v1111
    %v2087 = vpop.permute.xlu0 %2086
    %2089 = vset.pattern.permute.xlu0 8
    %2090 = vperm.xlu0 %2089, %v1116
    %v2091 = vpop.permute.xlu0 %2090
    %2093 = vset.pattern.permute.xlu0 8
    %2094 = vperm.xlu0 %2093, %v1121
    %v2095 = vpop.permute.xlu0 %2094
    %v2097 = vsub.f32 %v2067, %v1168
    %v2098 = vsub.f32 %v2071, %v1168
    %v2099 = vsub.f32 %v2075, %v1168
    %v2100 = vsub.f32 %v2079, %v1168
    %v2101 = vsub.f32 %v2083, %v1168
    %v2102 = vsub.f32 %v2087, %v1168
    %v2103 = vsub.f32 %v2091, %v1168
    %v2104 = vsub.f32 %v2095, %v1168
    %v2105 = vmul.f32 %v2097, 1.070149
    %v2106 = vmul.f32 %v2098, 1.070149
    %v2107 = vmul.f32 %v2099, 1.070149
    %v2108 = vmul.f32 %v2100, 1.070149
    %v2109 = vmul.f32 %v2101, 1.070149
    %v2110 = vmul.f32 %v2102, 1.070149
    %v2111 = vmul.f32 %v2103, 1.070149
    %v2112 = vmul.f32 %v2104, 1.070149
    %v2113 = vmul.f32 %v2105, %v2105
    %v2114 = vmul.f32 %v2106, %v2106
    %v2115 = vmul.f32 %v2107, %v2107
    %v2116 = vmul.f32 %v2108, %v2108
    %v2117 = vmul.f32 %v2109, %v2109
    %v2118 = vmul.f32 %v2110, %v2110
    %v2119 = vmul.f32 %v2111, %v2111
    %v2120 = vmul.f32 %v2112, %v2112
    %v2121 = vsub.f32 0.0, %v2113
    %v2122 = vsub.f32 0.0, %v2114
    %v2123 = vsub.f32 0.0, %v2115
    %v2124 = vsub.f32 0.0, %v2116
    %v2125 = vsub.f32 0.0, %v2117
    %v2126 = vsub.f32 0.0, %v2118
    %v2127 = vsub.f32 0.0, %v2119
    %v2128 = vsub.f32 0.0, %v2120
    %v2129 = vmul.f32 %v2121, 1.442695
    %v2130 = vpow.pop %v2129
    %v2131 = vmul.f32 %v2122, 1.442695
    %v2132 = vpow.pop %v2131
    %v2133 = vmul.f32 %v2123, 1.442695
    %v2134 = vpow.pop %v2133
    %v2135 = vmul.f32 %v2124, 1.442695
    %v2136 = vpow.pop %v2135
    %v2137 = vmul.f32 %v2125, 1.442695
    %v2138 = vpow.pop %v2137
    %v2139 = vmul.f32 %v2126, 1.442695
    %v2140 = vpow.pop %v2139
    %v2141 = vmul.f32 %v2127, 1.442695
    %v2142 = vpow.pop %v2141
    %v2143 = vmul.f32 %v2128, 1.442695
    %v2144 = vpow.pop %v2143
    %2153 = vrot.lane.b32.xlu0 %v2130, 64
    %v2154 = vpop.permute.xlu0 %2153
    %2155 = vrot.lane.b32.xlu0 %v2132, 64
    %v2156 = vpop.permute.xlu0 %2155
    %2157 = vrot.lane.b32.xlu0 %v2134, 64
    %v2158 = vpop.permute.xlu0 %2157
    %2159 = vrot.lane.b32.xlu0 %v2136, 64
    %v2160 = vpop.permute.xlu0 %2159
    %2161 = vrot.lane.b32.xlu0 %v2138, 64
    %v2162 = vpop.permute.xlu0 %2161
    %2163 = vrot.lane.b32.xlu0 %v2140, 64
    %v2164 = vpop.permute.xlu0 %2163
    %2165 = vrot.lane.b32.xlu0 %v2142, 64
    %v2166 = vpop.permute.xlu0 %2165
    %2167 = vrot.lane.b32.xlu0 %v2144, 64
    %v2168 = vpop.permute.xlu0 %2167
    %vm2177 = vcmask 589312
    %2178 = vst.msk [vmem:[#allocation2] sm:$0xff] %vm2177, %v2154
    %2179 = vst.msk [vmem:[#allocation2 + $0x8] sm:$0xff] %vm2177, %v2156
    %2180 = vst.msk [vmem:[#allocation2 + $0x10] sm:$0xff] %vm2177, %v2158
    %2181 = vst.msk [vmem:[#allocation2 + $0x18] sm:$0xff] %vm2177, %v2160
    %2182 = vst.msk [vmem:[#allocation2 + $0x20] sm:$0xff] %vm2177, %v2162
    %2183 = vst.msk [vmem:[#allocation2 + $0x28] sm:$0xff] %vm2177, %v2164
    %2184 = vst.msk [vmem:[#allocation2 + $0x30] sm:$0xff] %vm2177, %v2166
    %2185 = vst.msk [vmem:[#allocation2 + $0x38] sm:$0xff] %vm2177, %v2168
    %2186 = vset.pattern.permute.xlu0 9
    %2187 = vperm.xlu0 %2186, %v1086
    %v2188 = vpop.permute.xlu0 %2187
    %2190 = vset.pattern.permute.xlu0 9
    %2191 = vperm.xlu0 %2190, %v1091
    %v2192 = vpop.permute.xlu0 %2191
    %2194 = vset.pattern.permute.xlu0 9
    %2195 = vperm.xlu0 %2194, %v1096
    %v2196 = vpop.permute.xlu0 %2195
    %2198 = vset.pattern.permute.xlu0 9
    %2199 = vperm.xlu0 %2198, %v1101
    %v2200 = vpop.permute.xlu0 %2199
    %2202 = vset.pattern.permute.xlu0 9
    %2203 = vperm.xlu0 %2202, %v1106
    %v2204 = vpop.permute.xlu0 %2203
    %2206 = vset.pattern.permute.xlu0 9
    %2207 = vperm.xlu0 %2206, %v1111
    %v2208 = vpop.permute.xlu0 %2207
    %2210 = vset.pattern.permute.xlu0 9
    %2211 = vperm.xlu0 %2210, %v1116
    %v2212 = vpop.permute.xlu0 %2211
    %2214 = vset.pattern.permute.xlu0 9
    %2215 = vperm.xlu0 %2214, %v1121
    %v2216 = vpop.permute.xlu0 %2215
    %v2218 = vsub.f32 %v2188, %v1168
    %v2219 = vsub.f32 %v2192, %v1168
    %v2220 = vsub.f32 %v2196, %v1168
    %v2221 = vsub.f32 %v2200, %v1168
    %v2222 = vsub.f32 %v2204, %v1168
    %v2223 = vsub.f32 %v2208, %v1168
    %v2224 = vsub.f32 %v2212, %v1168
    %v2225 = vsub.f32 %v2216, %v1168
    %v2226 = vmul.f32 %v2218, 1.070149
    %v2227 = vmul.f32 %v2219, 1.070149
    %v2228 = vmul.f32 %v2220, 1.070149
    %v2229 = vmul.f32 %v2221, 1.070149
    %v2230 = vmul.f32 %v2222, 1.070149
    %v2231 = vmul.f32 %v2223, 1.070149
    %v2232 = vmul.f32 %v2224, 1.070149
    %v2233 = vmul.f32 %v2225, 1.070149
    %v2234 = vmul.f32 %v2226, %v2226
    %v2235 = vmul.f32 %v2227, %v2227
    %v2236 = vmul.f32 %v2228, %v2228
    %v2237 = vmul.f32 %v2229, %v2229
    %v2238 = vmul.f32 %v2230, %v2230
    %v2239 = vmul.f32 %v2231, %v2231
    %v2240 = vmul.f32 %v2232, %v2232
    %v2241 = vmul.f32 %v2233, %v2233
    %v2242 = vsub.f32 0.0, %v2234
    %v2243 = vsub.f32 0.0, %v2235
    %v2244 = vsub.f32 0.0, %v2236
    %v2245 = vsub.f32 0.0, %v2237
    %v2246 = vsub.f32 0.0, %v2238
    %v2247 = vsub.f32 0.0, %v2239
    %v2248 = vsub.f32 0.0, %v2240
    %v2249 = vsub.f32 0.0, %v2241
    %v2250 = vmul.f32 %v2242, 1.442695
    %v2251 = vpow.pop %v2250
    %v2252 = vmul.f32 %v2243, 1.442695
    %v2253 = vpow.pop %v2252
    %v2254 = vmul.f32 %v2244, 1.442695
    %v2255 = vpow.pop %v2254
    %v2256 = vmul.f32 %v2245, 1.442695
    %v2257 = vpow.pop %v2256
    %v2258 = vmul.f32 %v2246, 1.442695
    %v2259 = vpow.pop %v2258
    %v2260 = vmul.f32 %v2247, 1.442695
    %v2261 = vpow.pop %v2260
    %v2262 = vmul.f32 %v2248, 1.442695
    %v2263 = vpow.pop %v2262
    %v2264 = vmul.f32 %v2249, 1.442695
    %v2265 = vpow.pop %v2264
    %2274 = vrot.lane.b32.xlu0 %v2251, 72
    %v2275 = vpop.permute.xlu0 %2274
    %2276 = vrot.lane.b32.xlu0 %v2253, 72
    %v2277 = vpop.permute.xlu0 %2276
    %2278 = vrot.lane.b32.xlu0 %v2255, 72
    %v2279 = vpop.permute.xlu0 %2278
    %2280 = vrot.lane.b32.xlu0 %v2257, 72
    %v2281 = vpop.permute.xlu0 %2280
    %2282 = vrot.lane.b32.xlu0 %v2259, 72
    %v2283 = vpop.permute.xlu0 %2282
    %2284 = vrot.lane.b32.xlu0 %v2261, 72
    %v2285 = vpop.permute.xlu0 %2284
    %2286 = vrot.lane.b32.xlu0 %v2263, 72
    %v2287 = vpop.permute.xlu0 %2286
    %2288 = vrot.lane.b32.xlu0 %v2265, 72
    %v2289 = vpop.permute.xlu0 %2288
    %vm2298 = vcmask 654912
    %2299 = vst.msk [vmem:[#allocation2] sm:$0xff] %vm2298, %v2275
    %2300 = vst.msk [vmem:[#allocation2 + $0x8] sm:$0xff] %vm2298, %v2277
    %2301 = vst.msk [vmem:[#allocation2 + $0x10] sm:$0xff] %vm2298, %v2279
    %2302 = vst.msk [vmem:[#allocation2 + $0x18] sm:$0xff] %vm2298, %v2281
    %2303 = vst.msk [vmem:[#allocation2 + $0x20] sm:$0xff] %vm2298, %v2283
    %2304 = vst.msk [vmem:[#allocation2 + $0x28] sm:$0xff] %vm2298, %v2285
    %2305 = vst.msk [vmem:[#allocation2 + $0x30] sm:$0xff] %vm2298, %v2287
    %2306 = vst.msk [vmem:[#allocation2 + $0x38] sm:$0xff] %vm2298, %v2289
    %2307 = vset.pattern.permute.xlu0 10
    %2308 = vperm.xlu0 %2307, %v1086
    %v2309 = vpop.permute.xlu0 %2308
    %2311 = vset.pattern.permute.xlu0 10
    %2312 = vperm.xlu0 %2311, %v1091
    %v2313 = vpop.permute.xlu0 %2312
    %2315 = vset.pattern.permute.xlu0 10
    %2316 = vperm.xlu0 %2315, %v1096
    %v2317 = vpop.permute.xlu0 %2316
    %2319 = vset.pattern.permute.xlu0 10
    %2320 = vperm.xlu0 %2319, %v1101
    %v2321 = vpop.permute.xlu0 %2320
    %2323 = vset.pattern.permute.xlu0 10
    %2324 = vperm.xlu0 %2323, %v1106
    %v2325 = vpop.permute.xlu0 %2324
    %2327 = vset.pattern.permute.xlu0 10
    %2328 = vperm.xlu0 %2327, %v1111
    %v2329 = vpop.permute.xlu0 %2328
    %2331 = vset.pattern.permute.xlu0 10
    %2332 = vperm.xlu0 %2331, %v1116
    %v2333 = vpop.permute.xlu0 %2332
    %2335 = vset.pattern.permute.xlu0 10
    %2336 = vperm.xlu0 %2335, %v1121
    %v2337 = vpop.permute.xlu0 %2336
    %v2339 = vsub.f32 %v2309, %v1168
    %v2340 = vsub.f32 %v2313, %v1168
    %v2341 = vsub.f32 %v2317, %v1168
    %v2342 = vsub.f32 %v2321, %v1168
    %v2343 = vsub.f32 %v2325, %v1168
    %v2344 = vsub.f32 %v2329, %v1168
    %v2345 = vsub.f32 %v2333, %v1168
    %v2346 = vsub.f32 %v2337, %v1168
    %v2347 = vmul.f32 %v2339, 1.070149
    %v2348 = vmul.f32 %v2340, 1.070149
    %v2349 = vmul.f32 %v2341, 1.070149
    %v2350 = vmul.f32 %v2342, 1.070149
    %v2351 = vmul.f32 %v2343, 1.070149
    %v2352 = vmul.f32 %v2344, 1.070149
    %v2353 = vmul.f32 %v2345, 1.070149
    %v2354 = vmul.f32 %v2346, 1.070149
    %v2355 = vmul.f32 %v2347, %v2347
    %v2356 = vmul.f32 %v2348, %v2348
    %v2357 = vmul.f32 %v2349, %v2349
    %v2358 = vmul.f32 %v2350, %v2350
    %v2359 = vmul.f32 %v2351, %v2351
    %v2360 = vmul.f32 %v2352, %v2352
    %v2361 = vmul.f32 %v2353, %v2353
    %v2362 = vmul.f32 %v2354, %v2354
    %v2363 = vsub.f32 0.0, %v2355
    %v2364 = vsub.f32 0.0, %v2356
    %v2365 = vsub.f32 0.0, %v2357
    %v2366 = vsub.f32 0.0, %v2358
    %v2367 = vsub.f32 0.0, %v2359
    %v2368 = vsub.f32 0.0, %v2360
    %v2369 = vsub.f32 0.0, %v2361
    %v2370 = vsub.f32 0.0, %v2362
    %v2371 = vmul.f32 %v2363, 1.442695
    %v2372 = vpow.pop %v2371
    %v2373 = vmul.f32 %v2364, 1.442695
    %v2374 = vpow.pop %v2373
    %v2375 = vmul.f32 %v2365, 1.442695
    %v2376 = vpow.pop %v2375
    %v2377 = vmul.f32 %v2366, 1.442695
    %v2378 = vpow.pop %v2377
    %v2379 = vmul.f32 %v2367, 1.442695
    %v2380 = vpow.pop %v2379
    %v2381 = vmul.f32 %v2368, 1.442695
    %v2382 = vpow.pop %v2381
    %v2383 = vmul.f32 %v2369, 1.442695
    %v2384 = vpow.pop %v2383
    %v2385 = vmul.f32 %v2370, 1.442695
    %v2386 = vpow.pop %v2385
    %2395 = vrot.lane.b32.xlu0 %v2372, 80
    %v2396 = vpop.permute.xlu0 %2395
    %2397 = vrot.lane.b32.xlu0 %v2374, 80
    %v2398 = vpop.permute.xlu0 %2397
    %2399 = vrot.lane.b32.xlu0 %v2376, 80
    %v2400 = vpop.permute.xlu0 %2399
    %2401 = vrot.lane.b32.xlu0 %v2378, 80
    %v2402 = vpop.permute.xlu0 %2401
    %2403 = vrot.lane.b32.xlu0 %v2380, 80
    %v2404 = vpop.permute.xlu0 %2403
    %2405 = vrot.lane.b32.xlu0 %v2382, 80
    %v2406 = vpop.permute.xlu0 %2405
    %2407 = vrot.lane.b32.xlu0 %v2384, 80
    %v2408 = vpop.permute.xlu0 %2407
    %2409 = vrot.lane.b32.xlu0 %v2386, 80
    %v2410 = vpop.permute.xlu0 %2409
    %vm2419 = vcmask 720512
    %2420 = vst.msk [vmem:[#allocation2] sm:$0xff] %vm2419, %v2396
    %2421 = vst.msk [vmem:[#allocation2 + $0x8] sm:$0xff] %vm2419, %v2398
    %2422 = vst.msk [vmem:[#allocation2 + $0x10] sm:$0xff] %vm2419, %v2400
    %2423 = vst.msk [vmem:[#allocation2 + $0x18] sm:$0xff] %vm2419, %v2402
    %2424 = vst.msk [vmem:[#allocation2 + $0x20] sm:$0xff] %vm2419, %v2404
    %2425 = vst.msk [vmem:[#allocation2 + $0x28] sm:$0xff] %vm2419, %v2406
    %2426 = vst.msk [vmem:[#allocation2 + $0x30] sm:$0xff] %vm2419, %v2408
    %2427 = vst.msk [vmem:[#allocation2 + $0x38] sm:$0xff] %vm2419, %v2410
    %2428 = vset.pattern.permute.xlu0 11
    %2429 = vperm.xlu0 %2428, %v1086
    %v2430 = vpop.permute.xlu0 %2429
    %2432 = vset.pattern.permute.xlu0 11
    %2433 = vperm.xlu0 %2432, %v1091
    %v2434 = vpop.permute.xlu0 %2433
    %2436 = vset.pattern.permute.xlu0 11
    %2437 = vperm.xlu0 %2436, %v1096
    %v2438 = vpop.permute.xlu0 %2437
    %2440 = vset.pattern.permute.xlu0 11
    %2441 = vperm.xlu0 %2440, %v1101
    %v2442 = vpop.permute.xlu0 %2441
    %2444 = vset.pattern.permute.xlu0 11
    %2445 = vperm.xlu0 %2444, %v1106
    %v2446 = vpop.permute.xlu0 %2445
    %2448 = vset.pattern.permute.xlu0 11
    %2449 = vperm.xlu0 %2448, %v1111
    %v2450 = vpop.permute.xlu0 %2449
    %2452 = vset.pattern.permute.xlu0 11
    %2453 = vperm.xlu0 %2452, %v1116
    %v2454 = vpop.permute.xlu0 %2453
    %2456 = vset.pattern.permute.xlu0 11
    %2457 = vperm.xlu0 %2456, %v1121
    %v2458 = vpop.permute.xlu0 %2457
    %v2460 = vsub.f32 %v2430, %v1168
    %v2461 = vsub.f32 %v2434, %v1168
    %v2462 = vsub.f32 %v2438, %v1168
    %v2463 = vsub.f32 %v2442, %v1168
    %v2464 = vsub.f32 %v2446, %v1168
    %v2465 = vsub.f32 %v2450, %v1168
    %v2466 = vsub.f32 %v2454, %v1168
    %v2467 = vsub.f32 %v2458, %v1168
    %v2468 = vmul.f32 %v2460, 1.070149
    %v2469 = vmul.f32 %v2461, 1.070149
    %v2470 = vmul.f32 %v2462, 1.070149
    %v2471 = vmul.f32 %v2463, 1.070149
    %v2472 = vmul.f32 %v2464, 1.070149
    %v2473 = vmul.f32 %v2465, 1.070149
    %v2474 = vmul.f32 %v2466, 1.070149
    %v2475 = vmul.f32 %v2467, 1.070149
    %v2476 = vmul.f32 %v2468, %v2468
    %v2477 = vmul.f32 %v2469, %v2469
    %v2478 = vmul.f32 %v2470, %v2470
    %v2479 = vmul.f32 %v2471, %v2471
    %v2480 = vmul.f32 %v2472, %v2472
    %v2481 = vmul.f32 %v2473, %v2473
    %v2482 = vmul.f32 %v2474, %v2474
    %v2483 = vmul.f32 %v2475, %v2475
    %v2484 = vsub.f32 0.0, %v2476
    %v2485 = vsub.f32 0.0, %v2477
    %v2486 = vsub.f32 0.0, %v2478
    %v2487 = vsub.f32 0.0, %v2479
    %v2488 = vsub.f32 0.0, %v2480
    %v2489 = vsub.f32 0.0, %v2481
    %v2490 = vsub.f32 0.0, %v2482
    %v2491 = vsub.f32 0.0, %v2483
    %v2492 = vmul.f32 %v2484, 1.442695
    %v2493 = vpow.pop %v2492
    %v2494 = vmul.f32 %v2485, 1.442695
    %v2495 = vpow.pop %v2494
    %v2496 = vmul.f32 %v2486, 1.442695
    %v2497 = vpow.pop %v2496
    %v2498 = vmul.f32 %v2487, 1.442695
    %v2499 = vpow.pop %v2498
    %v2500 = vmul.f32 %v2488, 1.442695
    %v2501 = vpow.pop %v2500
    %v2502 = vmul.f32 %v2489, 1.442695
    %v2503 = vpow.pop %v2502
    %v2504 = vmul.f32 %v2490, 1.442695
    %v2505 = vpow.pop %v2504
    %v2506 = vmul.f32 %v2491, 1.442695
    %v2507 = vpow.pop %v2506
    %2516 = vrot.lane.b32.xlu0 %v2493, 88
    %v2517 = vpop.permute.xlu0 %2516
    %2518 = vrot.lane.b32.xlu0 %v2495, 88
    %v2519 = vpop.permute.xlu0 %2518
    %2520 = vrot.lane.b32.xlu0 %v2497, 88
    %v2521 = vpop.permute.xlu0 %2520
    %2522 = vrot.lane.b32.xlu0 %v2499, 88
    %v2523 = vpop.permute.xlu0 %2522
    %2524 = vrot.lane.b32.xlu0 %v2501, 88
    %v2525 = vpop.permute.xlu0 %2524
    %2526 = vrot.lane.b32.xlu0 %v2503, 88
    %v2527 = vpop.permute.xlu0 %2526
    %2528 = vrot.lane.b32.xlu0 %v2505, 88
    %v2529 = vpop.permute.xlu0 %2528
    %2530 = vrot.lane.b32.xlu0 %v2507, 88
    %v2531 = vpop.permute.xlu0 %2530
    %vm2540 = vcmask 786112
    %2541 = vst.msk [vmem:[#allocation2] sm:$0xff] %vm2540, %v2517
    %2542 = vst.msk [vmem:[#allocation2 + $0x8] sm:$0xff] %vm2540, %v2519
    %2543 = vst.msk [vmem:[#allocation2 + $0x10] sm:$0xff] %vm2540, %v2521
    %2544 = vst.msk [vmem:[#allocation2 + $0x18] sm:$0xff] %vm2540, %v2523
    %2545 = vst.msk [vmem:[#allocation2 + $0x20] sm:$0xff] %vm2540, %v2525
    %2546 = vst.msk [vmem:[#allocation2 + $0x28] sm:$0xff] %vm2540, %v2527
    %2547 = vst.msk [vmem:[#allocation2 + $0x30] sm:$0xff] %vm2540, %v2529
    %2548 = vst.msk [vmem:[#allocation2 + $0x38] sm:$0xff] %vm2540, %v2531
    %2549 = vset.pattern.permute.xlu0 12
    %2550 = vperm.xlu0 %2549, %v1086
    %v2551 = vpop.permute.xlu0 %2550
    %2553 = vset.pattern.permute.xlu0 12
    %2554 = vperm.xlu0 %2553, %v1091
    %v2555 = vpop.permute.xlu0 %2554
    %2557 = vset.pattern.permute.xlu0 12
    %2558 = vperm.xlu0 %2557, %v1096
    %v2559 = vpop.permute.xlu0 %2558
    %2561 = vset.pattern.permute.xlu0 12
    %2562 = vperm.xlu0 %2561, %v1101
    %v2563 = vpop.permute.xlu0 %2562
    %2565 = vset.pattern.permute.xlu0 12
    %2566 = vperm.xlu0 %2565, %v1106
    %v2567 = vpop.permute.xlu0 %2566
    %2569 = vset.pattern.permute.xlu0 12
    %2570 = vperm.xlu0 %2569, %v1111
    %v2571 = vpop.permute.xlu0 %2570
    %2573 = vset.pattern.permute.xlu0 12
    %2574 = vperm.xlu0 %2573, %v1116
    %v2575 = vpop.permute.xlu0 %2574
    %2577 = vset.pattern.permute.xlu0 12
    %2578 = vperm.xlu0 %2577, %v1121
    %v2579 = vpop.permute.xlu0 %2578
    %v2581 = vsub.f32 %v2551, %v1168
    %v2582 = vsub.f32 %v2555, %v1168
    %v2583 = vsub.f32 %v2559, %v1168
    %v2584 = vsub.f32 %v2563, %v1168
    %v2585 = vsub.f32 %v2567, %v1168
    %v2586 = vsub.f32 %v2571, %v1168
    %v2587 = vsub.f32 %v2575, %v1168
    %v2588 = vsub.f32 %v2579, %v1168
    %v2589 = vmul.f32 %v2581, 1.070149
    %v2590 = vmul.f32 %v2582, 1.070149
    %v2591 = vmul.f32 %v2583, 1.070149
    %v2592 = vmul.f32 %v2584, 1.070149
    %v2593 = vmul.f32 %v2585, 1.070149
    %v2594 = vmul.f32 %v2586, 1.070149
    %v2595 = vmul.f32 %v2587, 1.070149
    %v2596 = vmul.f32 %v2588, 1.070149
    %v2597 = vmul.f32 %v2589, %v2589
    %v2598 = vmul.f32 %v2590, %v2590
    %v2599 = vmul.f32 %v2591, %v2591
    %v2600 = vmul.f32 %v2592, %v2592
    %v2601 = vmul.f32 %v2593, %v2593
    %v2602 = vmul.f32 %v2594, %v2594
    %v2603 = vmul.f32 %v2595, %v2595
    %v2604 = vmul.f32 %v2596, %v2596
    %v2605 = vsub.f32 0.0, %v2597
    %v2606 = vsub.f32 0.0, %v2598
    %v2607 = vsub.f32 0.0, %v2599
    %v2608 = vsub.f32 0.0, %v2600
    %v2609 = vsub.f32 0.0, %v2601
    %v2610 = vsub.f32 0.0, %v2602
    %v2611 = vsub.f32 0.0, %v2603
    %v2612 = vsub.f32 0.0, %v2604
    %v2613 = vmul.f32 %v2605, 1.442695
    %v2614 = vpow.pop %v2613
    %v2615 = vmul.f32 %v2606, 1.442695
    %v2616 = vpow.pop %v2615
    %v2617 = vmul.f32 %v2607, 1.442695
    %v2618 = vpow.pop %v2617
    %v2619 = vmul.f32 %v2608, 1.442695
    %v2620 = vpow.pop %v2619
    %v2621 = vmul.f32 %v2609, 1.442695
    %v2622 = vpow.pop %v2621
    %v2623 = vmul.f32 %v2610, 1.442695
    %v2624 = vpow.pop %v2623
    %v2625 = vmul.f32 %v2611, 1.442695
    %v2626 = vpow.pop %v2625
    %v2627 = vmul.f32 %v2612, 1.442695
    %v2628 = vpow.pop %v2627
    %2637 = vrot.lane.b32.xlu0 %v2614, 96
    %v2638 = vpop.permute.xlu0 %2637
    %2639 = vrot.lane.b32.xlu0 %v2616, 96
    %v2640 = vpop.permute.xlu0 %2639
    %2641 = vrot.lane.b32.xlu0 %v2618, 96
    %v2642 = vpop.permute.xlu0 %2641
    %2643 = vrot.lane.b32.xlu0 %v2620, 96
    %v2644 = vpop.permute.xlu0 %2643
    %2645 = vrot.lane.b32.xlu0 %v2622, 96
    %v2646 = vpop.permute.xlu0 %2645
    %2647 = vrot.lane.b32.xlu0 %v2624, 96
    %v2648 = vpop.permute.xlu0 %2647
    %2649 = vrot.lane.b32.xlu0 %v2626, 96
    %v2650 = vpop.permute.xlu0 %2649
    %2651 = vrot.lane.b32.xlu0 %v2628, 96
    %v2652 = vpop.permute.xlu0 %2651
    %vm2661 = vcmask 851712
    %2662 = vst.msk [vmem:[#allocation2] sm:$0xff] %vm2661, %v2638
    %2663 = vst.msk [vmem:[#allocation2 + $0x8] sm:$0xff] %vm2661, %v2640
    %2664 = vst.msk [vmem:[#allocation2 + $0x10] sm:$0xff] %vm2661, %v2642
    %2665 = vst.msk [vmem:[#allocation2 + $0x18] sm:$0xff] %vm2661, %v2644
    %2666 = vst.msk [vmem:[#allocation2 + $0x20] sm:$0xff] %vm2661, %v2646
    %2667 = vst.msk [vmem:[#allocation2 + $0x28] sm:$0xff] %vm2661, %v2648
    %2668 = vst.msk [vmem:[#allocation2 + $0x30] sm:$0xff] %vm2661, %v2650
    %2669 = vst.msk [vmem:[#allocation2 + $0x38] sm:$0xff] %vm2661, %v2652
    %2670 = vset.pattern.permute.xlu0 13
    %2671 = vperm.xlu0 %2670, %v1086
    %v2672 = vpop.permute.xlu0 %2671
    %2674 = vset.pattern.permute.xlu0 13
    %2675 = vperm.xlu0 %2674, %v1091
    %v2676 = vpop.permute.xlu0 %2675
    %2678 = vset.pattern.permute.xlu0 13
    %2679 = vperm.xlu0 %2678, %v1096
    %v2680 = vpop.permute.xlu0 %2679
    %2682 = vset.pattern.permute.xlu0 13
    %2683 = vperm.xlu0 %2682, %v1101
    %v2684 = vpop.permute.xlu0 %2683
    %2686 = vset.pattern.permute.xlu0 13
    %2687 = vperm.xlu0 %2686, %v1106
    %v2688 = vpop.permute.xlu0 %2687
    %2690 = vset.pattern.permute.xlu0 13
    %2691 = vperm.xlu0 %2690, %v1111
    %v2692 = vpop.permute.xlu0 %2691
    %2694 = vset.pattern.permute.xlu0 13
    %2695 = vperm.xlu0 %2694, %v1116
    %v2696 = vpop.permute.xlu0 %2695
    %2698 = vset.pattern.permute.xlu0 13
    %2699 = vperm.xlu0 %2698, %v1121
    %v2700 = vpop.permute.xlu0 %2699
    %v2702 = vsub.f32 %v2672, %v1168
    %v2703 = vsub.f32 %v2676, %v1168
    %v2704 = vsub.f32 %v2680, %v1168
    %v2705 = vsub.f32 %v2684, %v1168
    %v2706 = vsub.f32 %v2688, %v1168
    %v2707 = vsub.f32 %v2692, %v1168
    %v2708 = vsub.f32 %v2696, %v1168
    %v2709 = vsub.f32 %v2700, %v1168
    %v2710 = vmul.f32 %v2702, 1.070149
    %v2711 = vmul.f32 %v2703, 1.070149
    %v2712 = vmul.f32 %v2704, 1.070149
    %v2713 = vmul.f32 %v2705, 1.070149
    %v2714 = vmul.f32 %v2706, 1.070149
    %v2715 = vmul.f32 %v2707, 1.070149
    %v2716 = vmul.f32 %v2708, 1.070149
    %v2717 = vmul.f32 %v2709, 1.070149
    %v2718 = vmul.f32 %v2710, %v2710
    %v2719 = vmul.f32 %v2711, %v2711
    %v2720 = vmul.f32 %v2712, %v2712
    %v2721 = vmul.f32 %v2713, %v2713
    %v2722 = vmul.f32 %v2714, %v2714
    %v2723 = vmul.f32 %v2715, %v2715
    %v2724 = vmul.f32 %v2716, %v2716
    %v2725 = vmul.f32 %v2717, %v2717
    %v2726 = vsub.f32 0.0, %v2718
    %v2727 = vsub.f32 0.0, %v2719
    %v2728 = vsub.f32 0.0, %v2720
    %v2729 = vsub.f32 0.0, %v2721
    %v2730 = vsub.f32 0.0, %v2722
    %v2731 = vsub.f32 0.0, %v2723
    %v2732 = vsub.f32 0.0, %v2724
    %v2733 = vsub.f32 0.0, %v2725
    %v2734 = vmul.f32 %v2726, 1.442695
    %v2735 = vpow.pop %v2734
    %v2736 = vmul.f32 %v2727, 1.442695
    %v2737 = vpow.pop %v2736
    %v2738 = vmul.f32 %v2728, 1.442695
    %v2739 = vpow.pop %v2738
    %v2740 = vmul.f32 %v2729, 1.442695
    %v2741 = vpow.pop %v2740
    %v2742 = vmul.f32 %v2730, 1.442695
    %v2743 = vpow.pop %v2742
    %v2744 = vmul.f32 %v2731, 1.442695
    %v2745 = vpow.pop %v2744
    %v2746 = vmul.f32 %v2732, 1.442695
    %v2747 = vpow.pop %v2746
    %v2748 = vmul.f32 %v2733, 1.442695
    %v2749 = vpow.pop %v2748
    %2758 = vrot.lane.b32.xlu0 %v2735, 104
    %v2759 = vpop.permute.xlu0 %2758
    %2760 = vrot.lane.b32.xlu0 %v2737, 104
    %v2761 = vpop.permute.xlu0 %2760
    %2762 = vrot.lane.b32.xlu0 %v2739, 104
    %v2763 = vpop.permute.xlu0 %2762
    %2764 = vrot.lane.b32.xlu0 %v2741, 104
    %v2765 = vpop.permute.xlu0 %2764
    %2766 = vrot.lane.b32.xlu0 %v2743, 104
    %v2767 = vpop.permute.xlu0 %2766
    %2768 = vrot.lane.b32.xlu0 %v2745, 104
    %v2769 = vpop.permute.xlu0 %2768
    %2770 = vrot.lane.b32.xlu0 %v2747, 104
    %v2771 = vpop.permute.xlu0 %2770
    %2772 = vrot.lane.b32.xlu0 %v2749, 104
    %v2773 = vpop.permute.xlu0 %2772
    %vm2782 = vcmask 917312
    %2783 = vst.msk [vmem:[#allocation2] sm:$0xff] %vm2782, %v2759
    %2784 = vst.msk [vmem:[#allocation2 + $0x8] sm:$0xff] %vm2782, %v2761
    %2785 = vst.msk [vmem:[#allocation2 + $0x10] sm:$0xff] %vm2782, %v2763
    %2786 = vst.msk [vmem:[#allocation2 + $0x18] sm:$0xff] %vm2782, %v2765
    %2787 = vst.msk [vmem:[#allocation2 + $0x20] sm:$0xff] %vm2782, %v2767
    %2788 = vst.msk [vmem:[#allocation2 + $0x28] sm:$0xff] %vm2782, %v2769
    %2789 = vst.msk [vmem:[#allocation2 + $0x30] sm:$0xff] %vm2782, %v2771
    %2790 = vst.msk [vmem:[#allocation2 + $0x38] sm:$0xff] %vm2782, %v2773
    %2791 = vset.pattern.permute.xlu0 14
    %2792 = vperm.xlu0 %2791, %v1086
    %v2793 = vpop.permute.xlu0 %2792
    %2795 = vset.pattern.permute.xlu0 14
    %2796 = vperm.xlu0 %2795, %v1091
    %v2797 = vpop.permute.xlu0 %2796
    %2799 = vset.pattern.permute.xlu0 14
    %2800 = vperm.xlu0 %2799, %v1096
    %v2801 = vpop.permute.xlu0 %2800
    %2803 = vset.pattern.permute.xlu0 14
    %2804 = vperm.xlu0 %2803, %v1101
    %v2805 = vpop.permute.xlu0 %2804
    %2807 = vset.pattern.permute.xlu0 14
    %2808 = vperm.xlu0 %2807, %v1106
    %v2809 = vpop.permute.xlu0 %2808
    %2811 = vset.pattern.permute.xlu0 14
    %2812 = vperm.xlu0 %2811, %v1111
    %v2813 = vpop.permute.xlu0 %2812
    %2815 = vset.pattern.permute.xlu0 14
    %2816 = vperm.xlu0 %2815, %v1116
    %v2817 = vpop.permute.xlu0 %2816
    %2819 = vset.pattern.permute.xlu0 14
    %2820 = vperm.xlu0 %2819, %v1121
    %v2821 = vpop.permute.xlu0 %2820
    %v2823 = vsub.f32 %v2793, %v1168
    %v2824 = vsub.f32 %v2797, %v1168
    %v2825 = vsub.f32 %v2801, %v1168
    %v2826 = vsub.f32 %v2805, %v1168
    %v2827 = vsub.f32 %v2809, %v1168
    %v2828 = vsub.f32 %v2813, %v1168
    %v2829 = vsub.f32 %v2817, %v1168
    %v2830 = vsub.f32 %v2821, %v1168
    %v2831 = vmul.f32 %v2823, 1.070149
    %v2832 = vmul.f32 %v2824, 1.070149
    %v2833 = vmul.f32 %v2825, 1.070149
    %v2834 = vmul.f32 %v2826, 1.070149
    %v2835 = vmul.f32 %v2827, 1.070149
    %v2836 = vmul.f32 %v2828, 1.070149
    %v2837 = vmul.f32 %v2829, 1.070149
    %v2838 = vmul.f32 %v2830, 1.070149
    %v2839 = vmul.f32 %v2831, %v2831
    %v2840 = vmul.f32 %v2832, %v2832
    %v2841 = vmul.f32 %v2833, %v2833
    %v2842 = vmul.f32 %v2834, %v2834
    %v2843 = vmul.f32 %v2835, %v2835
    %v2844 = vmul.f32 %v2836, %v2836
    %v2845 = vmul.f32 %v2837, %v2837
    %v2846 = vmul.f32 %v2838, %v2838
    %v2847 = vsub.f32 0.0, %v2839
    %v2848 = vsub.f32 0.0, %v2840
    %v2849 = vsub.f32 0.0, %v2841
    %v2850 = vsub.f32 0.0, %v2842
    %v2851 = vsub.f32 0.0, %v2843
    %v2852 = vsub.f32 0.0, %v2844
    %v2853 = vsub.f32 0.0, %v2845
    %v2854 = vsub.f32 0.0, %v2846
    %v2855 = vmul.f32 %v2847, 1.442695
    %v2856 = vpow.pop %v2855
    %v2857 = vmul.f32 %v2848, 1.442695
    %v2858 = vpow.pop %v2857
    %v2859 = vmul.f32 %v2849, 1.442695
    %v2860 = vpow.pop %v2859
    %v2861 = vmul.f32 %v2850, 1.442695
    %v2862 = vpow.pop %v2861
    %v2863 = vmul.f32 %v2851, 1.442695
    %v2864 = vpow.pop %v2863
    %v2865 = vmul.f32 %v2852, 1.442695
    %v2866 = vpow.pop %v2865
    %v2867 = vmul.f32 %v2853, 1.442695
    %v2868 = vpow.pop %v2867
    %v2869 = vmul.f32 %v2854, 1.442695
    %v2870 = vpow.pop %v2869
    %2879 = vrot.lane.b32.xlu0 %v2856, 112
    %v2880 = vpop.permute.xlu0 %2879
    %2881 = vrot.lane.b32.xlu0 %v2858, 112
    %v2882 = vpop.permute.xlu0 %2881
    %2883 = vrot.lane.b32.xlu0 %v2860, 112
    %v2884 = vpop.permute.xlu0 %2883
    %2885 = vrot.lane.b32.xlu0 %v2862, 112
    %v2886 = vpop.permute.xlu0 %2885
    %2887 = vrot.lane.b32.xlu0 %v2864, 112
    %v2888 = vpop.permute.xlu0 %2887
    %2889 = vrot.lane.b32.xlu0 %v2866, 112
    %v2890 = vpop.permute.xlu0 %2889
    %2891 = vrot.lane.b32.xlu0 %v2868, 112
    %v2892 = vpop.permute.xlu0 %2891
    %2893 = vrot.lane.b32.xlu0 %v2870, 112
    %v2894 = vpop.permute.xlu0 %2893
    %vm2903 = vcmask 982912
    %2904 = vst.msk [vmem:[#allocation2] sm:$0xff] %vm2903, %v2880
    %2905 = vst.msk [vmem:[#allocation2 + $0x8] sm:$0xff] %vm2903, %v2882
    %2906 = vst.msk [vmem:[#allocation2 + $0x10] sm:$0xff] %vm2903, %v2884
    %2907 = vst.msk [vmem:[#allocation2 + $0x18] sm:$0xff] %vm2903, %v2886
    %2908 = vst.msk [vmem:[#allocation2 + $0x20] sm:$0xff] %vm2903, %v2888
    %2909 = vst.msk [vmem:[#allocation2 + $0x28] sm:$0xff] %vm2903, %v2890
    %2910 = vst.msk [vmem:[#allocation2 + $0x30] sm:$0xff] %vm2903, %v2892
    %2911 = vst.msk [vmem:[#allocation2 + $0x38] sm:$0xff] %vm2903, %v2894
    %2912 = vset.pattern.permute.xlu0 15
    %2913 = vperm.xlu0 %2912, %v1086
    %v2914 = vpop.permute.xlu0 %2913
    %2916 = vset.pattern.permute.xlu0 15
    %2917 = vperm.xlu0 %2916, %v1091
    %v2918 = vpop.permute.xlu0 %2917
    %2920 = vset.pattern.permute.xlu0 15
    %2921 = vperm.xlu0 %2920, %v1096
    %v2922 = vpop.permute.xlu0 %2921
    %2924 = vset.pattern.permute.xlu0 15
    %2925 = vperm.xlu0 %2924, %v1101
    %v2926 = vpop.permute.xlu0 %2925
    %2928 = vset.pattern.permute.xlu0 15
    %2929 = vperm.xlu0 %2928, %v1106
    %v2930 = vpop.permute.xlu0 %2929
    %2932 = vset.pattern.permute.xlu0 15
    %2933 = vperm.xlu0 %2932, %v1111
    %v2934 = vpop.permute.xlu0 %2933
    %2936 = vset.pattern.permute.xlu0 15
    %2937 = vperm.xlu0 %2936, %v1116
    %v2938 = vpop.permute.xlu0 %2937
    %2940 = vset.pattern.permute.xlu0 15
    %2941 = vperm.xlu0 %2940, %v1121
    %v2942 = vpop.permute.xlu0 %2941
    %v2944 = vsub.f32 %v2914, %v1168
    %v2945 = vsub.f32 %v2918, %v1168
    %v2946 = vsub.f32 %v2922, %v1168
    %v2947 = vsub.f32 %v2926, %v1168
    %v2948 = vsub.f32 %v2930, %v1168
    %v2949 = vsub.f32 %v2934, %v1168
    %v2950 = vsub.f32 %v2938, %v1168
    %v2951 = vsub.f32 %v2942, %v1168
    %v2952 = vmul.f32 %v2944, 1.070149
    %v2953 = vmul.f32 %v2945, 1.070149
    %v2954 = vmul.f32 %v2946, 1.070149
    %v2955 = vmul.f32 %v2947, 1.070149
    %v2956 = vmul.f32 %v2948, 1.070149
    %v2957 = vmul.f32 %v2949, 1.070149
    %v2958 = vmul.f32 %v2950, 1.070149
    %v2959 = vmul.f32 %v2951, 1.070149
    %v2960 = vmul.f32 %v2952, %v2952
    %v2961 = vmul.f32 %v2953, %v2953
    %v2962 = vmul.f32 %v2954, %v2954
    %v2963 = vmul.f32 %v2955, %v2955
    %v2964 = vmul.f32 %v2956, %v2956
    %v2965 = vmul.f32 %v2957, %v2957
    %v2966 = vmul.f32 %v2958, %v2958
    %v2967 = vmul.f32 %v2959, %v2959
    %v2968 = vsub.f32 0.0, %v2960
    %v2969 = vsub.f32 0.0, %v2961
    %v2970 = vsub.f32 0.0, %v2962
    %v2971 = vsub.f32 0.0, %v2963
    %v2972 = vsub.f32 0.0, %v2964
    %v2973 = vsub.f32 0.0, %v2965
    %v2974 = vsub.f32 0.0, %v2966
    %v2975 = vsub.f32 0.0, %v2967
    %v2976 = vmul.f32 %v2968, 1.442695
    %v2977 = vpow.pop %v2976
    %v2978 = vmul.f32 %v2969, 1.442695
    %v2979 = vpow.pop %v2978
    %v2980 = vmul.f32 %v2970, 1.442695
    %v2981 = vpow.pop %v2980
    %v2982 = vmul.f32 %v2971, 1.442695
    %v2983 = vpow.pop %v2982
    %v2984 = vmul.f32 %v2972, 1.442695
    %v2985 = vpow.pop %v2984
    %v2986 = vmul.f32 %v2973, 1.442695
    %v2987 = vpow.pop %v2986
    %v2988 = vmul.f32 %v2974, 1.442695
    %v2989 = vpow.pop %v2988
    %v2990 = vmul.f32 %v2975, 1.442695
    %v2991 = vpow.pop %v2990
    %3000 = vrot.lane.b32.xlu0 %v2977, 120
    %v3001 = vpop.permute.xlu0 %3000
    %3002 = vrot.lane.b32.xlu0 %v2979, 120
    %v3003 = vpop.permute.xlu0 %3002
    %3004 = vrot.lane.b32.xlu0 %v2981, 120
    %v3005 = vpop.permute.xlu0 %3004
    %3006 = vrot.lane.b32.xlu0 %v2983, 120
    %v3007 = vpop.permute.xlu0 %3006
    %3008 = vrot.lane.b32.xlu0 %v2985, 120
    %v3009 = vpop.permute.xlu0 %3008
    %3010 = vrot.lane.b32.xlu0 %v2987, 120
    %v3011 = vpop.permute.xlu0 %3010
    %3012 = vrot.lane.b32.xlu0 %v2989, 120
    %v3013 = vpop.permute.xlu0 %3012
    %3014 = vrot.lane.b32.xlu0 %v2991, 120
    %v3015 = vpop.permute.xlu0 %3014
    %vm3024 = vcmask 1048512
    %3025 = vst.msk [vmem:[#allocation2] sm:$0xff] %vm3024, %v3001
    %3026 = vst.msk [vmem:[#allocation2 + $0x8] sm:$0xff] %vm3024, %v3003
    %3027 = vst.msk [vmem:[#allocation2 + $0x10] sm:$0xff] %vm3024, %v3005
    %3028 = vst.msk [vmem:[#allocation2 + $0x18] sm:$0xff] %vm3024, %v3007
    %3029 = vst.msk [vmem:[#allocation2 + $0x20] sm:$0xff] %vm3024, %v3009
    %3030 = vst.msk [vmem:[#allocation2 + $0x28] sm:$0xff] %vm3024, %v3011
    %3031 = vst.msk [vmem:[#allocation2 + $0x30] sm:$0xff] %vm3024, %v3013
    %3032 = vst.msk [vmem:[#allocation2 + $0x38] sm:$0xff] %vm3024, %v3015
    %v3033 = vld [vmem:[#allocation2] sm:$0xff]
    %v3034 = vld [vmem:[#allocation2 + $0x8] sm:$0xff]
    %v3035 = vld [vmem:[#allocation2 + $0x10] sm:$0xff]
    %v3036 = vld [vmem:[#allocation2 + $0x18] sm:$0xff]
    %v3037 = vld [vmem:[#allocation2 + $0x20] sm:$0xff]
    %v3038 = vld [vmem:[#allocation2 + $0x28] sm:$0xff]
    %v3039 = vld [vmem:[#allocation2 + $0x30] sm:$0xff]
    %v3040 = vld [vmem:[#allocation2 + $0x38] sm:$0xff]
    %v3041 = vld [vmem:[%s3] sm:$0xff]
    %v3042 = vld [vmem:[%s3 + $0x8] sm:$0xff]
    %v3043 = vld [vmem:[%s3 + $0x10] sm:$0xff]
    %v3044 = vld [vmem:[%s3 + $0x18] sm:$0xff]
    %v3045 = vld [vmem:[%s3 + $0x20] sm:$0xff]
    %v3046 = vld [vmem:[%s3 + $0x28] sm:$0xff]
    %v3047 = vld [vmem:[%s3 + $0x30] sm:$0xff]
    %v3048 = vld [vmem:[%s3 + $0x38] sm:$0xff]
    %v3049 = vld [vmem:[%s3 + $0x40] sm:$0xff]
    %v3050 = vld [vmem:[%s3 + $0x48] sm:$0xff]
    %v3051 = vld [vmem:[%s3 + $0x50] sm:$0xff]
    %v3052 = vld [vmem:[%s3 + $0x58] sm:$0xff]
    %v3053 = vld [vmem:[%s3 + $0x60] sm:$0xff]
    %v3054 = vld [vmem:[%s3 + $0x68] sm:$0xff]
    %v3055 = vld [vmem:[%s3 + $0x70] sm:$0xff]
    %v3056 = vld [vmem:[%s3 + $0x78] sm:$0xff]
    %3057 = vmatprep.subr.mxu0 0.0
    %3058 = vmatpush1.msra.mxu0 %v3041
    %3059 = vmatprep.subr.mxu0 0.0
    %3060 = vmatpush1.msra.mxu0 %v3042
    %3061 = vmatprep.subr.mxu0 0.0
    %3062 = vmatpush1.msra.mxu0 %v3043
    %3063 = vmatprep.subr.mxu0 0.0
    %3064 = vmatpush1.msra.mxu0 %v3044
    %3065 = vmatprep.subr.mxu0 0.0
    %3066 = vmatpush1.msra.mxu0 %v3045
    %3067 = vmatprep.subr.mxu0 0.0
    %3068 = vmatpush1.msra.mxu0 %v3046
    %3069 = vmatprep.subr.mxu0 0.0
    %3070 = vmatpush1.msra.mxu0 %v3047
    %3071 = vmatprep.subr.mxu0 0.0
    %3072 = vmatpush1.msra.mxu0 %v3048
    %3073 = vmatprep.subr.mxu0 0.0
    %3074 = vmatpush1.msra.mxu0 %v3049
    %3075 = vmatprep.subr.mxu0 0.0
    %3076 = vmatpush1.msra.mxu0 %v3050
    %3077 = vmatprep.subr.mxu0 0.0
    %3078 = vmatpush1.msra.mxu0 %v3051
    %3079 = vmatprep.subr.mxu0 0.0
    %3080 = vmatpush1.msra.mxu0 %v3052
    %3081 = vmatprep.subr.mxu0 0.0
    %3082 = vmatpush1.msra.mxu0 %v3053
    %3083 = vmatprep.subr.mxu0 0.0
    %3084 = vmatpush1.msra.mxu0 %v3054
    %3085 = vmatprep.subr.mxu0 0.0
    %3086 = vmatpush1.msra.mxu0 %v3055
    %3087 = vmatprep.subr.mxu0 0.0
    %3088 = vmatpush1.msra.mxu0 %v3056
    %3089 = vmatprep.subr.mxu0 0.0
    %3090 = vmatpush1.msra.mxu0 0.0
    %3091 = vmatprep.subr.mxu0 0.0
    %3092 = vmatpush1.msra.mxu0 0.0
    %3093 = vmatprep.subr.mxu0 0.0
    %3094 = vmatpush1.msra.mxu0 0.0
    %3095 = vmatprep.subr.mxu0 0.0
    %3096 = vmatpush1.msra.mxu0 0.0
    %3097 = vmatprep.subr.mxu0 0.0
    %3098 = vmatpush1.msra.mxu0 0.0
    %3099 = vmatprep.subr.mxu0 0.0
    %3100 = vmatpush1.msra.mxu0 0.0
    %3101 = vmatprep.subr.mxu0 0.0
    %3102 = vmatpush1.msra.mxu0 0.0
    %3103 = vmatprep.subr.mxu0 0.0
    %3104 = vmatpush1.msra.mxu0 0.0
    %3105 = vmatprep.subr.mxu0 0.0
    %3106 = vmatpush1.msra.mxu0 0.0
    %3107 = vmatprep.subr.mxu0 0.0
    %3108 = vmatpush1.msra.mxu0 0.0
    %3109 = vmatprep.subr.mxu0 0.0
    %3110 = vmatpush1.msra.mxu0 0.0
    %3111 = vmatprep.subr.mxu0 0.0
    %3112 = vmatpush1.msra.mxu0 0.0
    %3113 = vmatprep.subr.mxu0 0.0
    %3114 = vmatpush1.msra.mxu0 0.0
    %3115 = vmatprep.subr.mxu0 0.0
    %3116 = vmatpush1.msra.mxu0 0.0
    %3117 = vmatprep.subr.mxu0 0.0
    %3118 = vmatpush1.msra.mxu0 0.0
    %3119 = vmatprep.subr.mxu0 0.0
    %3120 = vmatpush1.msra.mxu0 0.0
    %3121 = vmatprep.mubr.f32.mxu0 0.0
    %3122 = vmatmul.mubr.f32.gmra.mrb[0].mxu0 %v3033
    %v3123 = vpop.f32.mrb[0].mxu0
    %v3124 = vadd.f32 0.0, %v3123
    %v3125 = vpop.f32.mrb[0].mxu0
    %3126 = vmatprep.mubr.f32.mxu0 0.0
    %3127 = vmatmul.mubr.f32.gmra.mrb[0].mxu0 %v3034
    %v3128 = vpop.f32.mrb[0].mxu0
    %v3129 = vadd.f32 0.0, %v3128
    %v3130 = vpop.f32.mrb[0].mxu0
    %3131 = vmatprep.mubr.f32.mxu0 0.0
    %3132 = vmatmul.mubr.f32.gmra.mrb[0].mxu0 %v3035
    %v3133 = vpop.f32.mrb[0].mxu0
    %v3134 = vadd.f32 0.0, %v3133
    %v3135 = vpop.f32.mrb[0].mxu0
    %3136 = vmatprep.mubr.f32.mxu0 0.0
    %3137 = vmatmul.mubr.f32.gmra.mrb[0].mxu0 %v3036
    %v3138 = vpop.f32.mrb[0].mxu0
    %v3139 = vadd.f32 0.0, %v3138
    %v3140 = vpop.f32.mrb[0].mxu0
    %3141 = vmatprep.mubr.f32.mxu0 0.0
    %3142 = vmatmul.mubr.f32.gmra.mrb[0].mxu0 %v3037
    %v3143 = vpop.f32.mrb[0].mxu0
    %v3144 = vadd.f32 0.0, %v3143
    %v3145 = vpop.f32.mrb[0].mxu0
    %3146 = vmatprep.mubr.f32.mxu0 0.0
    %3147 = vmatmul.mubr.f32.gmra.mrb[0].mxu0 %v3038
    %v3148 = vpop.f32.mrb[0].mxu0
    %v3149 = vadd.f32 0.0, %v3148
    %v3150 = vpop.f32.mrb[0].mxu0
    %3151 = vmatprep.mubr.f32.mxu0 0.0
    %3152 = vmatmul.mubr.f32.gmra.mrb[0].mxu0 %v3039
    %v3153 = vpop.f32.mrb[0].mxu0
    %v3154 = vadd.f32 0.0, %v3153
    %v3155 = vpop.f32.mrb[0].mxu0
    %3156 = vmatprep.mubr.f32.mxu0 0.0
    %3157 = vmatmul.mubr.f32.gmra.mrb[0].mxu0 %v3040
    %v3158 = vpop.f32.mrb[0].mxu0
    %v3159 = vadd.f32 0.0, %v3158
    %v3160 = vpop.f32.mrb[0].mxu0
    %3161 = vdwg.mxu0
    %v3162 = vld [vmem:[%s1 + $0x2] sm:$0x1]
    %3164 = vset.pattern.permute.xlu0 0
    %3165 = vperm.xlu0 %3164, %v3124
    %v3166 = vpop.permute.xlu0 %3165
    %3169 = vset.pattern.permute.xlu0 0
    %3170 = vperm.xlu0 %3169, %v3129
    %v3171 = vpop.permute.xlu0 %3170
    %3174 = vset.pattern.permute.xlu0 0
    %3175 = vperm.xlu0 %3174, %v3134
    %v3176 = vpop.permute.xlu0 %3175
    %3179 = vset.pattern.permute.xlu0 0
    %3180 = vperm.xlu0 %3179, %v3139
    %v3181 = vpop.permute.xlu0 %3180
    %3184 = vset.pattern.permute.xlu0 0
    %3185 = vperm.xlu0 %3184, %v3144
    %v3186 = vpop.permute.xlu0 %3185
    %3189 = vset.pattern.permute.xlu0 0
    %3190 = vperm.xlu0 %3189, %v3149
    %v3191 = vpop.permute.xlu0 %3190
    %3194 = vset.pattern.permute.xlu0 0
    %3195 = vperm.xlu0 %3194, %v3154
    %v3196 = vpop.permute.xlu0 %3195
    %3199 = vset.pattern.permute.xlu0 0
    %3200 = vperm.xlu0 %3199, %v3159
    %v3201 = vpop.permute.xlu0 %3200
    %v3203 = vlaneseq
    %v3204 = vshrl.u32 %v3203, 7
    %v3205 = vsub.s32 0, %v3204
    %v3206 = vrot.slane %v3162, %v3205
    %v3207 = vsub.f32 %v3166, %v3206
    %v3208 = vsub.f32 %v3171, %v3206
    %v3209 = vsub.f32 %v3176, %v3206
    %v3210 = vsub.f32 %v3181, %v3206
    %v3211 = vsub.f32 %v3186, %v3206
    %v3212 = vsub.f32 %v3191, %v3206
    %v3213 = vsub.f32 %v3196, %v3206
    %v3214 = vsub.f32 %v3201, %v3206
    %v3215 = vmul.f32 %v3207, 1.070149
    %v3216 = vmul.f32 %v3208, 1.070149
    %v3217 = vmul.f32 %v3209, 1.070149
    %v3218 = vmul.f32 %v3210, 1.070149
    %v3219 = vmul.f32 %v3211, 1.070149
    %v3220 = vmul.f32 %v3212, 1.070149
    %v3221 = vmul.f32 %v3213, 1.070149
    %v3222 = vmul.f32 %v3214, 1.070149
    %v3223 = vmul.f32 %v3215, %v3215
    %v3224 = vmul.f32 %v3216, %v3216
    %v3225 = vmul.f32 %v3217, %v3217
    %v3226 = vmul.f32 %v3218, %v3218
    %v3227 = vmul.f32 %v3219, %v3219
    %v3228 = vmul.f32 %v3220, %v3220
    %v3229 = vmul.f32 %v3221, %v3221
    %v3230 = vmul.f32 %v3222, %v3222
    %v3231 = vsub.f32 0.0, %v3223
    %v3232 = vsub.f32 0.0, %v3224
    %v3233 = vsub.f32 0.0, %v3225
    %v3234 = vsub.f32 0.0, %v3226
    %v3235 = vsub.f32 0.0, %v3227
    %v3236 = vsub.f32 0.0, %v3228
    %v3237 = vsub.f32 0.0, %v3229
    %v3238 = vsub.f32 0.0, %v3230
    %v3239 = vmul.f32 %v3231, 1.442695
    %v3240 = vpow.pop %v3239
    %v3241 = vmul.f32 %v3232, 1.442695
    %v3242 = vpow.pop %v3241
    %v3243 = vmul.f32 %v3233, 1.442695
    %v3244 = vpow.pop %v3243
    %v3245 = vmul.f32 %v3234, 1.442695
    %v3246 = vpow.pop %v3245
    %v3247 = vmul.f32 %v3235, 1.442695
    %v3248 = vpow.pop %v3247
    %v3249 = vmul.f32 %v3236, 1.442695
    %v3250 = vpow.pop %v3249
    %v3251 = vmul.f32 %v3237, 1.442695
    %v3252 = vpow.pop %v3251
    %v3253 = vmul.f32 %v3238, 1.442695
    %v3254 = vpow.pop %v3253
    %3255 = vst.msk [vmem:[#allocation2] sm:$0xff] %vm122, %v3240
    %3256 = vst.msk [vmem:[#allocation2 + $0x8] sm:$0xff] %vm122, %v3242
    %3257 = vst.msk [vmem:[#allocation2 + $0x10] sm:$0xff] %vm122, %v3244
    %3258 = vst.msk [vmem:[#allocation2 + $0x18] sm:$0xff] %vm122, %v3246
    %3259 = vst.msk [vmem:[#allocation2 + $0x20] sm:$0xff] %vm122, %v3248
    %3260 = vst.msk [vmem:[#allocation2 + $0x28] sm:$0xff] %vm122, %v3250
    %3261 = vst.msk [vmem:[#allocation2 + $0x30] sm:$0xff] %vm122, %v3252
    %3262 = vst.msk [vmem:[#allocation2 + $0x38] sm:$0xff] %vm122, %v3254
    %3263 = vset.pattern.permute.xlu0 1
    %3264 = vperm.xlu0 %3263, %v3124
    %v3265 = vpop.permute.xlu0 %3264
    %3267 = vset.pattern.permute.xlu0 1
    %3268 = vperm.xlu0 %3267, %v3129
    %v3269 = vpop.permute.xlu0 %3268
    %3271 = vset.pattern.permute.xlu0 1
    %3272 = vperm.xlu0 %3271, %v3134
    %v3273 = vpop.permute.xlu0 %3272
    %3275 = vset.pattern.permute.xlu0 1
    %3276 = vperm.xlu0 %3275, %v3139
    %v3277 = vpop.permute.xlu0 %3276
    %3279 = vset.pattern.permute.xlu0 1
    %3280 = vperm.xlu0 %3279, %v3144
    %v3281 = vpop.permute.xlu0 %3280
    %3283 = vset.pattern.permute.xlu0 1
    %3284 = vperm.xlu0 %3283, %v3149
    %v3285 = vpop.permute.xlu0 %3284
    %3287 = vset.pattern.permute.xlu0 1
    %3288 = vperm.xlu0 %3287, %v3154
    %v3289 = vpop.permute.xlu0 %3288
    %3291 = vset.pattern.permute.xlu0 1
    %3292 = vperm.xlu0 %3291, %v3159
    %v3293 = vpop.permute.xlu0 %3292
    %v3295 = vsub.f32 %v3265, %v3206
    %v3296 = vsub.f32 %v3269, %v3206
    %v3297 = vsub.f32 %v3273, %v3206
    %v3298 = vsub.f32 %v3277, %v3206
    %v3299 = vsub.f32 %v3281, %v3206
    %v3300 = vsub.f32 %v3285, %v3206
    %v3301 = vsub.f32 %v3289, %v3206
    %v3302 = vsub.f32 %v3293, %v3206
    %v3303 = vmul.f32 %v3295, 1.070149
    %v3304 = vmul.f32 %v3296, 1.070149
    %v3305 = vmul.f32 %v3297, 1.070149
    %v3306 = vmul.f32 %v3298, 1.070149
    %v3307 = vmul.f32 %v3299, 1.070149
    %v3308 = vmul.f32 %v3300, 1.070149
    %v3309 = vmul.f32 %v3301, 1.070149
    %v3310 = vmul.f32 %v3302, 1.070149
    %v3311 = vmul.f32 %v3303, %v3303
    %v3312 = vmul.f32 %v3304, %v3304
    %v3313 = vmul.f32 %v3305, %v3305
    %v3314 = vmul.f32 %v3306, %v3306
    %v3315 = vmul.f32 %v3307, %v3307
    %v3316 = vmul.f32 %v3308, %v3308
    %v3317 = vmul.f32 %v3309, %v3309
    %v3318 = vmul.f32 %v3310, %v3310
    %v3319 = vsub.f32 0.0, %v3311
    %v3320 = vsub.f32 0.0, %v3312
    %v3321 = vsub.f32 0.0, %v3313
    %v3322 = vsub.f32 0.0, %v3314
    %v3323 = vsub.f32 0.0, %v3315
    %v3324 = vsub.f32 0.0, %v3316
    %v3325 = vsub.f32 0.0, %v3317
    %v3326 = vsub.f32 0.0, %v3318
    %v3327 = vmul.f32 %v3319, 1.442695
    %v3328 = vpow.pop %v3327
    %v3329 = vmul.f32 %v3320, 1.442695
    %v3330 = vpow.pop %v3329
    %v3331 = vmul.f32 %v3321, 1.442695
    %v3332 = vpow.pop %v3331
    %v3333 = vmul.f32 %v3322, 1.442695
    %v3334 = vpow.pop %v3333
    %v3335 = vmul.f32 %v3323, 1.442695
    %v3336 = vpow.pop %v3335
    %v3337 = vmul.f32 %v3324, 1.442695
    %v3338 = vpow.pop %v3337
    %v3339 = vmul.f32 %v3325, 1.442695
    %v3340 = vpow.pop %v3339
    %v3341 = vmul.f32 %v3326, 1.442695
    %v3342 = vpow.pop %v3341
    %3351 = vrot.lane.b32.xlu0 %v3328, 8
    %v3352 = vpop.permute.xlu0 %3351
    %3353 = vrot.lane.b32.xlu0 %v3330, 8
    %v3354 = vpop.permute.xlu0 %3353
    %3355 = vrot.lane.b32.xlu0 %v3332, 8
    %v3356 = vpop.permute.xlu0 %3355
    %3357 = vrot.lane.b32.xlu0 %v3334, 8
    %v3358 = vpop.permute.xlu0 %3357
    %3359 = vrot.lane.b32.xlu0 %v3336, 8
    %v3360 = vpop.permute.xlu0 %3359
    %3361 = vrot.lane.b32.xlu0 %v3338, 8
    %v3362 = vpop.permute.xlu0 %3361
    %3363 = vrot.lane.b32.xlu0 %v3340, 8
    %v3364 = vpop.permute.xlu0 %3363
    %3365 = vrot.lane.b32.xlu0 %v3342, 8
    %v3366 = vpop.permute.xlu0 %3365
    %3375 = vst.msk [vmem:[#allocation2] sm:$0xff] %vm243, %v3352
    %3376 = vst.msk [vmem:[#allocation2 + $0x8] sm:$0xff] %vm243, %v3354
    %3377 = vst.msk [vmem:[#allocation2 + $0x10] sm:$0xff] %vm243, %v3356
    %3378 = vst.msk [vmem:[#allocation2 + $0x18] sm:$0xff] %vm243, %v3358
    %3379 = vst.msk [vmem:[#allocation2 + $0x20] sm:$0xff] %vm243, %v3360
    %3380 = vst.msk [vmem:[#allocation2 + $0x28] sm:$0xff] %vm243, %v3362
    %3381 = vst.msk [vmem:[#allocation2 + $0x30] sm:$0xff] %vm243, %v3364
    %3382 = vst.msk [vmem:[#allocation2 + $0x38] sm:$0xff] %vm243, %v3366
    %3383 = vset.pattern.permute.xlu0 2
    %3384 = vperm.xlu0 %3383, %v3124
    %v3385 = vpop.permute.xlu0 %3384
    %3387 = vset.pattern.permute.xlu0 2
    %3388 = vperm.xlu0 %3387, %v3129
    %v3389 = vpop.permute.xlu0 %3388
    %3391 = vset.pattern.permute.xlu0 2
    %3392 = vperm.xlu0 %3391, %v3134
    %v3393 = vpop.permute.xlu0 %3392
    %3395 = vset.pattern.permute.xlu0 2
    %3396 = vperm.xlu0 %3395, %v3139
    %v3397 = vpop.permute.xlu0 %3396
    %3399 = vset.pattern.permute.xlu0 2
    %3400 = vperm.xlu0 %3399, %v3144
    %v3401 = vpop.permute.xlu0 %3400
    %3403 = vset.pattern.permute.xlu0 2
    %3404 = vperm.xlu0 %3403, %v3149
    %v3405 = vpop.permute.xlu0 %3404
    %3407 = vset.pattern.permute.xlu0 2
    %3408 = vperm.xlu0 %3407, %v3154
    %v3409 = vpop.permute.xlu0 %3408
    %3411 = vset.pattern.permute.xlu0 2
    %3412 = vperm.xlu0 %3411, %v3159
    %v3413 = vpop.permute.xlu0 %3412
    %v3415 = vsub.f32 %v3385, %v3206
    %v3416 = vsub.f32 %v3389, %v3206
    %v3417 = vsub.f32 %v3393, %v3206
    %v3418 = vsub.f32 %v3397, %v3206
    %v3419 = vsub.f32 %v3401, %v3206
    %v3420 = vsub.f32 %v3405, %v3206
    %v3421 = vsub.f32 %v3409, %v3206
    %v3422 = vsub.f32 %v3413, %v3206
    %v3423 = vmul.f32 %v3415, 1.070149
    %v3424 = vmul.f32 %v3416, 1.070149
    %v3425 = vmul.f32 %v3417, 1.070149
    %v3426 = vmul.f32 %v3418, 1.070149
    %v3427 = vmul.f32 %v3419, 1.070149
    %v3428 = vmul.f32 %v3420, 1.070149
    %v3429 = vmul.f32 %v3421, 1.070149
    %v3430 = vmul.f32 %v3422, 1.070149
    %v3431 = vmul.f32 %v3423, %v3423
    %v3432 = vmul.f32 %v3424, %v3424
    %v3433 = vmul.f32 %v3425, %v3425
    %v3434 = vmul.f32 %v3426, %v3426
    %v3435 = vmul.f32 %v3427, %v3427
    %v3436 = vmul.f32 %v3428, %v3428
    %v3437 = vmul.f32 %v3429, %v3429
    %v3438 = vmul.f32 %v3430, %v3430
    %v3439 = vsub.f32 0.0, %v3431
    %v3440 = vsub.f32 0.0, %v3432
    %v3441 = vsub.f32 0.0, %v3433
    %v3442 = vsub.f32 0.0, %v3434
    %v3443 = vsub.f32 0.0, %v3435
    %v3444 = vsub.f32 0.0, %v3436
    %v3445 = vsub.f32 0.0, %v3437
    %v3446 = vsub.f32 0.0, %v3438
    %v3447 = vmul.f32 %v3439, 1.442695
    %v3448 = vpow.pop %v3447
    %v3449 = vmul.f32 %v3440, 1.442695
    %v3450 = vpow.pop %v3449
    %v3451 = vmul.f32 %v3441, 1.442695
    %v3452 = vpow.pop %v3451
    %v3453 = vmul.f32 %v3442, 1.442695
    %v3454 = vpow.pop %v3453
    %v3455 = vmul.f32 %v3443, 1.442695
    %v3456 = vpow.pop %v3455
    %v3457 = vmul.f32 %v3444, 1.442695
    %v3458 = vpow.pop %v3457
    %v3459 = vmul.f32 %v3445, 1.442695
    %v3460 = vpow.pop %v3459
    %v3461 = vmul.f32 %v3446, 1.442695
    %v3462 = vpow.pop %v3461
    %3471 = vrot.lane.b32.xlu0 %v3448, 16
    %v3472 = vpop.permute.xlu0 %3471
    %3473 = vrot.lane.b32.xlu0 %v3450, 16
    %v3474 = vpop.permute.xlu0 %3473
    %3475 = vrot.lane.b32.xlu0 %v3452, 16
    %v3476 = vpop.permute.xlu0 %3475
    %3477 = vrot.lane.b32.xlu0 %v3454, 16
    %v3478 = vpop.permute.xlu0 %3477
    %3479 = vrot.lane.b32.xlu0 %v3456, 16
    %v3480 = vpop.permute.xlu0 %3479
    %3481 = vrot.lane.b32.xlu0 %v3458, 16
    %v3482 = vpop.permute.xlu0 %3481
    %3483 = vrot.lane.b32.xlu0 %v3460, 16
    %v3484 = vpop.permute.xlu0 %3483
    %3485 = vrot.lane.b32.xlu0 %v3462, 16
    %v3486 = vpop.permute.xlu0 %3485
    %3495 = vst.msk [vmem:[#allocation2] sm:$0xff] %vm364, %v3472
    %3496 = vst.msk [vmem:[#allocation2 + $0x8] sm:$0xff] %vm364, %v3474
    %3497 = vst.msk [vmem:[#allocation2 + $0x10] sm:$0xff] %vm364, %v3476
    %3498 = vst.msk [vmem:[#allocation2 + $0x18] sm:$0xff] %vm364, %v3478
    %3499 = vst.msk [vmem:[#allocation2 + $0x20] sm:$0xff] %vm364, %v3480
    %3500 = vst.msk [vmem:[#allocation2 + $0x28] sm:$0xff] %vm364, %v3482
    %3501 = vst.msk [vmem:[#allocation2 + $0x30] sm:$0xff] %vm364, %v3484
    %3502 = vst.msk [vmem:[#allocation2 + $0x38] sm:$0xff] %vm364, %v3486
    %3503 = vset.pattern.permute.xlu0 3
    %3504 = vperm.xlu0 %3503, %v3124
    %v3505 = vpop.permute.xlu0 %3504
    %3507 = vset.pattern.permute.xlu0 3
    %3508 = vperm.xlu0 %3507, %v3129
    %v3509 = vpop.permute.xlu0 %3508
    %3511 = vset.pattern.permute.xlu0 3
    %3512 = vperm.xlu0 %3511, %v3134
    %v3513 = vpop.permute.xlu0 %3512
    %3515 = vset.pattern.permute.xlu0 3
    %3516 = vperm.xlu0 %3515, %v3139
    %v3517 = vpop.permute.xlu0 %3516
    %3519 = vset.pattern.permute.xlu0 3
    %3520 = vperm.xlu0 %3519, %v3144
    %v3521 = vpop.permute.xlu0 %3520
    %3523 = vset.pattern.permute.xlu0 3
    %3524 = vperm.xlu0 %3523, %v3149
    %v3525 = vpop.permute.xlu0 %3524
    %3527 = vset.pattern.permute.xlu0 3
    %3528 = vperm.xlu0 %3527, %v3154
    %v3529 = vpop.permute.xlu0 %3528
    %3531 = vset.pattern.permute.xlu0 3
    %3532 = vperm.xlu0 %3531, %v3159
    %v3533 = vpop.permute.xlu0 %3532
    %v3535 = vsub.f32 %v3505, %v3206
    %v3536 = vsub.f32 %v3509, %v3206
    %v3537 = vsub.f32 %v3513, %v3206
    %v3538 = vsub.f32 %v3517, %v3206
    %v3539 = vsub.f32 %v3521, %v3206
    %v3540 = vsub.f32 %v3525, %v3206
    %v3541 = vsub.f32 %v3529, %v3206
    %v3542 = vsub.f32 %v3533, %v3206
    %v3543 = vmul.f32 %v3535, 1.070149
    %v3544 = vmul.f32 %v3536, 1.070149
    %v3545 = vmul.f32 %v3537, 1.070149
    %v3546 = vmul.f32 %v3538, 1.070149
    %v3547 = vmul.f32 %v3539, 1.070149
    %v3548 = vmul.f32 %v3540, 1.070149
    %v3549 = vmul.f32 %v3541, 1.070149
    %v3550 = vmul.f32 %v3542, 1.070149
    %v3551 = vmul.f32 %v3543, %v3543
    %v3552 = vmul.f32 %v3544, %v3544
    %v3553 = vmul.f32 %v3545, %v3545
    %v3554 = vmul.f32 %v3546, %v3546
    %v3555 = vmul.f32 %v3547, %v3547
    %v3556 = vmul.f32 %v3548, %v3548
    %v3557 = vmul.f32 %v3549, %v3549
    %v3558 = vmul.f32 %v3550, %v3550
    %v3559 = vsub.f32 0.0, %v3551
    %v3560 = vsub.f32 0.0, %v3552
    %v3561 = vsub.f32 0.0, %v3553
    %v3562 = vsub.f32 0.0, %v3554
    %v3563 = vsub.f32 0.0, %v3555
    %v3564 = vsub.f32 0.0, %v3556
    %v3565 = vsub.f32 0.0, %v3557
    %v3566 = vsub.f32 0.0, %v3558
    %v3567 = vmul.f32 %v3559, 1.442695
    %v3568 = vpow.pop %v3567
    %v3569 = vmul.f32 %v3560, 1.442695
    %v3570 = vpow.pop %v3569
    %v3571 = vmul.f32 %v3561, 1.442695
    %v3572 = vpow.pop %v3571
    %v3573 = vmul.f32 %v3562, 1.442695
    %v3574 = vpow.pop %v3573
    %v3575 = vmul.f32 %v3563, 1.442695
    %v3576 = vpow.pop %v3575
    %v3577 = vmul.f32 %v3564, 1.442695
    %v3578 = vpow.pop %v3577
    %v3579 = vmul.f32 %v3565, 1.442695
    %v3580 = vpow.pop %v3579
    %v3581 = vmul.f32 %v3566, 1.442695
    %v3582 = vpow.pop %v3581
    %3591 = vrot.lane.b32.xlu0 %v3568, 24
    %v3592 = vpop.permute.xlu0 %3591
    %3593 = vrot.lane.b32.xlu0 %v3570, 24
    %v3594 = vpop.permute.xlu0 %3593
    %3595 = vrot.lane.b32.xlu0 %v3572, 24
    %v3596 = vpop.permute.xlu0 %3595
    %3597 = vrot.lane.b32.xlu0 %v3574, 24
    %v3598 = vpop.permute.xlu0 %3597
    %3599 = vrot.lane.b32.xlu0 %v3576, 24
    %v3600 = vpop.permute.xlu0 %3599
    %3601 = vrot.lane.b32.xlu0 %v3578, 24
    %v3602 = vpop.permute.xlu0 %3601
    %3603 = vrot.lane.b32.xlu0 %v3580, 24
    %v3604 = vpop.permute.xlu0 %3603
    %3605 = vrot.lane.b32.xlu0 %v3582, 24
    %v3606 = vpop.permute.xlu0 %3605
    %3615 = vst.msk [vmem:[#allocation2] sm:$0xff] %vm485, %v3592
    %3616 = vst.msk [vmem:[#allocation2 + $0x8] sm:$0xff] %vm485, %v3594
    %3617 = vst.msk [vmem:[#allocation2 + $0x10] sm:$0xff] %vm485, %v3596
    %3618 = vst.msk [vmem:[#allocation2 + $0x18] sm:$0xff] %vm485, %v3598
    %3619 = vst.msk [vmem:[#allocation2 + $0x20] sm:$0xff] %vm485, %v3600
    %3620 = vst.msk [vmem:[#allocation2 + $0x28] sm:$0xff] %vm485, %v3602
    %3621 = vst.msk [vmem:[#allocation2 + $0x30] sm:$0xff] %vm485, %v3604
    %3622 = vst.msk [vmem:[#allocation2 + $0x38] sm:$0xff] %vm485, %v3606
    %3623 = vset.pattern.permute.xlu0 4
    %3624 = vperm.xlu0 %3623, %v3124
    %v3625 = vpop.permute.xlu0 %3624
    %3627 = vset.pattern.permute.xlu0 4
    %3628 = vperm.xlu0 %3627, %v3129
    %v3629 = vpop.permute.xlu0 %3628
    %3631 = vset.pattern.permute.xlu0 4
    %3632 = vperm.xlu0 %3631, %v3134
    %v3633 = vpop.permute.xlu0 %3632
    %3635 = vset.pattern.permute.xlu0 4
    %3636 = vperm.xlu0 %3635, %v3139
    %v3637 = vpop.permute.xlu0 %3636
    %3639 = vset.pattern.permute.xlu0 4
    %3640 = vperm.xlu0 %3639, %v3144
    %v3641 = vpop.permute.xlu0 %3640
    %3643 = vset.pattern.permute.xlu0 4
    %3644 = vperm.xlu0 %3643, %v3149
    %v3645 = vpop.permute.xlu0 %3644
    %3647 = vset.pattern.permute.xlu0 4
    %3648 = vperm.xlu0 %3647, %v3154
    %v3649 = vpop.permute.xlu0 %3648
    %3651 = vset.pattern.permute.xlu0 4
    %3652 = vperm.xlu0 %3651, %v3159
    %v3653 = vpop.permute.xlu0 %3652
    %v3655 = vsub.f32 %v3625, %v3206
    %v3656 = vsub.f32 %v3629, %v3206
    %v3657 = vsub.f32 %v3633, %v3206
    %v3658 = vsub.f32 %v3637, %v3206
    %v3659 = vsub.f32 %v3641, %v3206
    %v3660 = vsub.f32 %v3645, %v3206
    %v3661 = vsub.f32 %v3649, %v3206
    %v3662 = vsub.f32 %v3653, %v3206
    %v3663 = vmul.f32 %v3655, 1.070149
    %v3664 = vmul.f32 %v3656, 1.070149
    %v3665 = vmul.f32 %v3657, 1.070149
    %v3666 = vmul.f32 %v3658, 1.070149
    %v3667 = vmul.f32 %v3659, 1.070149
    %v3668 = vmul.f32 %v3660, 1.070149
    %v3669 = vmul.f32 %v3661, 1.070149
    %v3670 = vmul.f32 %v3662, 1.070149
    %v3671 = vmul.f32 %v3663, %v3663
    %v3672 = vmul.f32 %v3664, %v3664
    %v3673 = vmul.f32 %v3665, %v3665
    %v3674 = vmul.f32 %v3666, %v3666
    %v3675 = vmul.f32 %v3667, %v3667
    %v3676 = vmul.f32 %v3668, %v3668
    %v3677 = vmul.f32 %v3669, %v3669
    %v3678 = vmul.f32 %v3670, %v3670
    %v3679 = vsub.f32 0.0, %v3671
    %v3680 = vsub.f32 0.0, %v3672
    %v3681 = vsub.f32 0.0, %v3673
    %v3682 = vsub.f32 0.0, %v3674
    %v3683 = vsub.f32 0.0, %v3675
    %v3684 = vsub.f32 0.0, %v3676
    %v3685 = vsub.f32 0.0, %v3677
    %v3686 = vsub.f32 0.0, %v3678
    %v3687 = vmul.f32 %v3679, 1.442695
    %v3688 = vpow.pop %v3687
    %v3689 = vmul.f32 %v3680, 1.442695
    %v3690 = vpow.pop %v3689
    %v3691 = vmul.f32 %v3681, 1.442695
    %v3692 = vpow.pop %v3691
    %v3693 = vmul.f32 %v3682, 1.442695
    %v3694 = vpow.pop %v3693
    %v3695 = vmul.f32 %v3683, 1.442695
    %v3696 = vpow.pop %v3695
    %v3697 = vmul.f32 %v3684, 1.442695
    %v3698 = vpow.pop %v3697
    %v3699 = vmul.f32 %v3685, 1.442695
    %v3700 = vpow.pop %v3699
    %v3701 = vmul.f32 %v3686, 1.442695
    %v3702 = vpow.pop %v3701
    %3711 = vrot.lane.b32.xlu0 %v3688, 32
    %v3712 = vpop.permute.xlu0 %3711
    %3713 = vrot.lane.b32.xlu0 %v3690, 32
    %v3714 = vpop.permute.xlu0 %3713
    %3715 = vrot.lane.b32.xlu0 %v3692, 32
    %v3716 = vpop.permute.xlu0 %3715
    %3717 = vrot.lane.b32.xlu0 %v3694, 32
    %v3718 = vpop.permute.xlu0 %3717
    %3719 = vrot.lane.b32.xlu0 %v3696, 32
    %v3720 = vpop.permute.xlu0 %3719
    %3721 = vrot.lane.b32.xlu0 %v3698, 32
    %v3722 = vpop.permute.xlu0 %3721
    %3723 = vrot.lane.b32.xlu0 %v3700, 32
    %v3724 = vpop.permute.xlu0 %3723
    %3725 = vrot.lane.b32.xlu0 %v3702, 32
    %v3726 = vpop.permute.xlu0 %3725
    %3735 = vst.msk [vmem:[#allocation2] sm:$0xff] %vm606, %v3712
    %3736 = vst.msk [vmem:[#allocation2 + $0x8] sm:$0xff] %vm606, %v3714
    %3737 = vst.msk [vmem:[#allocation2 + $0x10] sm:$0xff] %vm606, %v3716
    %3738 = vst.msk [vmem:[#allocation2 + $0x18] sm:$0xff] %vm606, %v3718
    %3739 = vst.msk [vmem:[#allocation2 + $0x20] sm:$0xff] %vm606, %v3720
    %3740 = vst.msk [vmem:[#allocation2 + $0x28] sm:$0xff] %vm606, %v3722
    %3741 = vst.msk [vmem:[#allocation2 + $0x30] sm:$0xff] %vm606, %v3724
    %3742 = vst.msk [vmem:[#allocation2 + $0x38] sm:$0xff] %vm606, %v3726
    %3743 = vset.pattern.permute.xlu0 5
    %3744 = vperm.xlu0 %3743, %v3124
    %v3745 = vpop.permute.xlu0 %3744
    %3747 = vset.pattern.permute.xlu0 5
    %3748 = vperm.xlu0 %3747, %v3129
    %v3749 = vpop.permute.xlu0 %3748
    %3751 = vset.pattern.permute.xlu0 5
    %3752 = vperm.xlu0 %3751, %v3134
    %v3753 = vpop.permute.xlu0 %3752
    %3755 = vset.pattern.permute.xlu0 5
    %3756 = vperm.xlu0 %3755, %v3139
    %v3757 = vpop.permute.xlu0 %3756
    %3759 = vset.pattern.permute.xlu0 5
    %3760 = vperm.xlu0 %3759, %v3144
    %v3761 = vpop.permute.xlu0 %3760
    %3763 = vset.pattern.permute.xlu0 5
    %3764 = vperm.xlu0 %3763, %v3149
    %v3765 = vpop.permute.xlu0 %3764
    %3767 = vset.pattern.permute.xlu0 5
    %3768 = vperm.xlu0 %3767, %v3154
    %v3769 = vpop.permute.xlu0 %3768
    %3771 = vset.pattern.permute.xlu0 5
    %3772 = vperm.xlu0 %3771, %v3159
    %v3773 = vpop.permute.xlu0 %3772
    %v3775 = vsub.f32 %v3745, %v3206
    %v3776 = vsub.f32 %v3749, %v3206
    %v3777 = vsub.f32 %v3753, %v3206
    %v3778 = vsub.f32 %v3757, %v3206
    %v3779 = vsub.f32 %v3761, %v3206
    %v3780 = vsub.f32 %v3765, %v3206
    %v3781 = vsub.f32 %v3769, %v3206
    %v3782 = vsub.f32 %v3773, %v3206
    %v3783 = vmul.f32 %v3775, 1.070149
    %v3784 = vmul.f32 %v3776, 1.070149
    %v3785 = vmul.f32 %v3777, 1.070149
    %v3786 = vmul.f32 %v3778, 1.070149
    %v3787 = vmul.f32 %v3779, 1.070149
    %v3788 = vmul.f32 %v3780, 1.070149
    %v3789 = vmul.f32 %v3781, 1.070149
    %v3790 = vmul.f32 %v3782, 1.070149
    %v3791 = vmul.f32 %v3783, %v3783
    %v3792 = vmul.f32 %v3784, %v3784
    %v3793 = vmul.f32 %v3785, %v3785
    %v3794 = vmul.f32 %v3786, %v3786
    %v3795 = vmul.f32 %v3787, %v3787
    %v3796 = vmul.f32 %v3788, %v3788
    %v3797 = vmul.f32 %v3789, %v3789
    %v3798 = vmul.f32 %v3790, %v3790
    %v3799 = vsub.f32 0.0, %v3791
    %v3800 = vsub.f32 0.0, %v3792
    %v3801 = vsub.f32 0.0, %v3793
    %v3802 = vsub.f32 0.0, %v3794
    %v3803 = vsub.f32 0.0, %v3795
    %v3804 = vsub.f32 0.0, %v3796
    %v3805 = vsub.f32 0.0, %v3797
    %v3806 = vsub.f32 0.0, %v3798
    %v3807 = vmul.f32 %v3799, 1.442695
    %v3808 = vpow.pop %v3807
    %v3809 = vmul.f32 %v3800, 1.442695
    %v3810 = vpow.pop %v3809
    %v3811 = vmul.f32 %v3801, 1.442695
    %v3812 = vpow.pop %v3811
    %v3813 = vmul.f32 %v3802, 1.442695
    %v3814 = vpow.pop %v3813
    %v3815 = vmul.f32 %v3803, 1.442695
    %v3816 = vpow.pop %v3815
    %v3817 = vmul.f32 %v3804, 1.442695
    %v3818 = vpow.pop %v3817
    %v3819 = vmul.f32 %v3805, 1.442695
    %v3820 = vpow.pop %v3819
    %v3821 = vmul.f32 %v3806, 1.442695
    %v3822 = vpow.pop %v3821
    %3831 = vrot.lane.b32.xlu0 %v3808, 40
    %v3832 = vpop.permute.xlu0 %3831
    %3833 = vrot.lane.b32.xlu0 %v3810, 40
    %v3834 = vpop.permute.xlu0 %3833
    %3835 = vrot.lane.b32.xlu0 %v3812, 40
    %v3836 = vpop.permute.xlu0 %3835
    %3837 = vrot.lane.b32.xlu0 %v3814, 40
    %v3838 = vpop.permute.xlu0 %3837
    %3839 = vrot.lane.b32.xlu0 %v3816, 40
    %v3840 = vpop.permute.xlu0 %3839
    %3841 = vrot.lane.b32.xlu0 %v3818, 40
    %v3842 = vpop.permute.xlu0 %3841
    %3843 = vrot.lane.b32.xlu0 %v3820, 40
    %v3844 = vpop.permute.xlu0 %3843
    %3845 = vrot.lane.b32.xlu0 %v3822, 40
    %v3846 = vpop.permute.xlu0 %3845
    %3855 = vst.msk [vmem:[#allocation2] sm:$0xff] %vm727, %v3832
    %3856 = vst.msk [vmem:[#allocation2 + $0x8] sm:$0xff] %vm727, %v3834
    %3857 = vst.msk [vmem:[#allocation2 + $0x10] sm:$0xff] %vm727, %v3836
    %3858 = vst.msk [vmem:[#allocation2 + $0x18] sm:$0xff] %vm727, %v3838
    %3859 = vst.msk [vmem:[#allocation2 + $0x20] sm:$0xff] %vm727, %v3840
    %3860 = vst.msk [vmem:[#allocation2 + $0x28] sm:$0xff] %vm727, %v3842
    %3861 = vst.msk [vmem:[#allocation2 + $0x30] sm:$0xff] %vm727, %v3844
    %3862 = vst.msk [vmem:[#allocation2 + $0x38] sm:$0xff] %vm727, %v3846
    %3863 = vset.pattern.permute.xlu0 6
    %3864 = vperm.xlu0 %3863, %v3124
    %v3865 = vpop.permute.xlu0 %3864
    %3867 = vset.pattern.permute.xlu0 6
    %3868 = vperm.xlu0 %3867, %v3129
    %v3869 = vpop.permute.xlu0 %3868
    %3871 = vset.pattern.permute.xlu0 6
    %3872 = vperm.xlu0 %3871, %v3134
    %v3873 = vpop.permute.xlu0 %3872
    %3875 = vset.pattern.permute.xlu0 6
    %3876 = vperm.xlu0 %3875, %v3139
    %v3877 = vpop.permute.xlu0 %3876
    %3879 = vset.pattern.permute.xlu0 6
    %3880 = vperm.xlu0 %3879, %v3144
    %v3881 = vpop.permute.xlu0 %3880
    %3883 = vset.pattern.permute.xlu0 6
    %3884 = vperm.xlu0 %3883, %v3149
    %v3885 = vpop.permute.xlu0 %3884
    %3887 = vset.pattern.permute.xlu0 6
    %3888 = vperm.xlu0 %3887, %v3154
    %v3889 = vpop.permute.xlu0 %3888
    %3891 = vset.pattern.permute.xlu0 6
    %3892 = vperm.xlu0 %3891, %v3159
    %v3893 = vpop.permute.xlu0 %3892
    %v3895 = vsub.f32 %v3865, %v3206
    %v3896 = vsub.f32 %v3869, %v3206
    %v3897 = vsub.f32 %v3873, %v3206
    %v3898 = vsub.f32 %v3877, %v3206
    %v3899 = vsub.f32 %v3881, %v3206
    %v3900 = vsub.f32 %v3885, %v3206
    %v3901 = vsub.f32 %v3889, %v3206
    %v3902 = vsub.f32 %v3893, %v3206
    %v3903 = vmul.f32 %v3895, 1.070149
    %v3904 = vmul.f32 %v3896, 1.070149
    %v3905 = vmul.f32 %v3897, 1.070149
    %v3906 = vmul.f32 %v3898, 1.070149
    %v3907 = vmul.f32 %v3899, 1.070149
    %v3908 = vmul.f32 %v3900, 1.070149
    %v3909 = vmul.f32 %v3901, 1.070149
    %v3910 = vmul.f32 %v3902, 1.070149
    %v3911 = vmul.f32 %v3903, %v3903
    %v3912 = vmul.f32 %v3904, %v3904
    %v3913 = vmul.f32 %v3905, %v3905
    %v3914 = vmul.f32 %v3906, %v3906
    %v3915 = vmul.f32 %v3907, %v3907
    %v3916 = vmul.f32 %v3908, %v3908
    %v3917 = vmul.f32 %v3909, %v3909
    %v3918 = vmul.f32 %v3910, %v3910
    %v3919 = vsub.f32 0.0, %v3911
    %v3920 = vsub.f32 0.0, %v3912
    %v3921 = vsub.f32 0.0, %v3913
    %v3922 = vsub.f32 0.0, %v3914
    %v3923 = vsub.f32 0.0, %v3915
    %v3924 = vsub.f32 0.0, %v3916
    %v3925 = vsub.f32 0.0, %v3917
    %v3926 = vsub.f32 0.0, %v3918
    %v3927 = vmul.f32 %v3919, 1.442695
    %v3928 = vpow.pop %v3927
    %v3929 = vmul.f32 %v3920, 1.442695
    %v3930 = vpow.pop %v3929
    %v3931 = vmul.f32 %v3921, 1.442695
    %v3932 = vpow.pop %v3931
    %v3933 = vmul.f32 %v3922, 1.442695
    %v3934 = vpow.pop %v3933
    %v3935 = vmul.f32 %v3923, 1.442695
    %v3936 = vpow.pop %v3935
    %v3937 = vmul.f32 %v3924, 1.442695
    %v3938 = vpow.pop %v3937
    %v3939 = vmul.f32 %v3925, 1.442695
    %v3940 = vpow.pop %v3939
    %v3941 = vmul.f32 %v3926, 1.442695
    %v3942 = vpow.pop %v3941
    %3951 = vrot.lane.b32.xlu0 %v3928, 48
    %v3952 = vpop.permute.xlu0 %3951
    %3953 = vrot.lane.b32.xlu0 %v3930, 48
    %v3954 = vpop.permute.xlu0 %3953
    %3955 = vrot.lane.b32.xlu0 %v3932, 48
    %v3956 = vpop.permute.xlu0 %3955
    %3957 = vrot.lane.b32.xlu0 %v3934, 48
    %v3958 = vpop.permute.xlu0 %3957
    %3959 = vrot.lane.b32.xlu0 %v3936, 48
    %v3960 = vpop.permute.xlu0 %3959
    %3961 = vrot.lane.b32.xlu0 %v3938, 48
    %v3962 = vpop.permute.xlu0 %3961
    %3963 = vrot.lane.b32.xlu0 %v3940, 48
    %v3964 = vpop.permute.xlu0 %3963
    %3965 = vrot.lane.b32.xlu0 %v3942, 48
    %v3966 = vpop.permute.xlu0 %3965
    %3975 = vst.msk [vmem:[#allocation2] sm:$0xff] %vm848, %v3952
    %3976 = vst.msk [vmem:[#allocation2 + $0x8] sm:$0xff] %vm848, %v3954
    %3977 = vst.msk [vmem:[#allocation2 + $0x10] sm:$0xff] %vm848, %v3956
    %3978 = vst.msk [vmem:[#allocation2 + $0x18] sm:$0xff] %vm848, %v3958
    %3979 = vst.msk [vmem:[#allocation2 + $0x20] sm:$0xff] %vm848, %v3960
    %3980 = vst.msk [vmem:[#allocation2 + $0x28] sm:$0xff] %vm848, %v3962
    %3981 = vst.msk [vmem:[#allocation2 + $0x30] sm:$0xff] %vm848, %v3964
    %3982 = vst.msk [vmem:[#allocation2 + $0x38] sm:$0xff] %vm848, %v3966
    %3983 = vset.pattern.permute.xlu0 7
    %3984 = vperm.xlu0 %3983, %v3124
    %v3985 = vpop.permute.xlu0 %3984
    %3987 = vset.pattern.permute.xlu0 7
    %3988 = vperm.xlu0 %3987, %v3129
    %v3989 = vpop.permute.xlu0 %3988
    %3991 = vset.pattern.permute.xlu0 7
    %3992 = vperm.xlu0 %3991, %v3134
    %v3993 = vpop.permute.xlu0 %3992
    %3995 = vset.pattern.permute.xlu0 7
    %3996 = vperm.xlu0 %3995, %v3139
    %v3997 = vpop.permute.xlu0 %3996
    %3999 = vset.pattern.permute.xlu0 7
    %4000 = vperm.xlu0 %3999, %v3144
    %v4001 = vpop.permute.xlu0 %4000
    %4003 = vset.pattern.permute.xlu0 7
    %4004 = vperm.xlu0 %4003, %v3149
    %v4005 = vpop.permute.xlu0 %4004
    %4007 = vset.pattern.permute.xlu0 7
    %4008 = vperm.xlu0 %4007, %v3154
    %v4009 = vpop.permute.xlu0 %4008
    %4011 = vset.pattern.permute.xlu0 7
    %4012 = vperm.xlu0 %4011, %v3159
    %v4013 = vpop.permute.xlu0 %4012
    %v4015 = vsub.f32 %v3985, %v3206
    %v4016 = vsub.f32 %v3989, %v3206
    %v4017 = vsub.f32 %v3993, %v3206
    %v4018 = vsub.f32 %v3997, %v3206
    %v4019 = vsub.f32 %v4001, %v3206
    %v4020 = vsub.f32 %v4005, %v3206
    %v4021 = vsub.f32 %v4009, %v3206
    %v4022 = vsub.f32 %v4013, %v3206
    %v4023 = vmul.f32 %v4015, 1.070149
    %v4024 = vmul.f32 %v4016, 1.070149
    %v4025 = vmul.f32 %v4017, 1.070149
    %v4026 = vmul.f32 %v4018, 1.070149
    %v4027 = vmul.f32 %v4019, 1.070149
    %v4028 = vmul.f32 %v4020, 1.070149
    %v4029 = vmul.f32 %v4021, 1.070149
    %v4030 = vmul.f32 %v4022, 1.070149
    %v4031 = vmul.f32 %v4023, %v4023
    %v4032 = vmul.f32 %v4024, %v4024
    %v4033 = vmul.f32 %v4025, %v4025
    %v4034 = vmul.f32 %v4026, %v4026
    %v4035 = vmul.f32 %v4027, %v4027
    %v4036 = vmul.f32 %v4028, %v4028
    %v4037 = vmul.f32 %v4029, %v4029
    %v4038 = vmul.f32 %v4030, %v4030
    %v4039 = vsub.f32 0.0, %v4031
    %v4040 = vsub.f32 0.0, %v4032
    %v4041 = vsub.f32 0.0, %v4033
    %v4042 = vsub.f32 0.0, %v4034
    %v4043 = vsub.f32 0.0, %v4035
    %v4044 = vsub.f32 0.0, %v4036
    %v4045 = vsub.f32 0.0, %v4037
    %v4046 = vsub.f32 0.0, %v4038
    %v4047 = vmul.f32 %v4039, 1.442695
    %v4048 = vpow.pop %v4047
    %v4049 = vmul.f32 %v4040, 1.442695
    %v4050 = vpow.pop %v4049
    %v4051 = vmul.f32 %v4041, 1.442695
    %v4052 = vpow.pop %v4051
    %v4053 = vmul.f32 %v4042, 1.442695
    %v4054 = vpow.pop %v4053
    %v4055 = vmul.f32 %v4043, 1.442695
    %v4056 = vpow.pop %v4055
    %v4057 = vmul.f32 %v4044, 1.442695
    %v4058 = vpow.pop %v4057
    %v4059 = vmul.f32 %v4045, 1.442695
    %v4060 = vpow.pop %v4059
    %v4061 = vmul.f32 %v4046, 1.442695
    %v4062 = vpow.pop %v4061
    %4071 = vrot.lane.b32.xlu0 %v4048, 56
    %v4072 = vpop.permute.xlu0 %4071
    %4073 = vrot.lane.b32.xlu0 %v4050, 56
    %v4074 = vpop.permute.xlu0 %4073
    %4075 = vrot.lane.b32.xlu0 %v4052, 56
    %v4076 = vpop.permute.xlu0 %4075
    %4077 = vrot.lane.b32.xlu0 %v4054, 56
    %v4078 = vpop.permute.xlu0 %4077
    %4079 = vrot.lane.b32.xlu0 %v4056, 56
    %v4080 = vpop.permute.xlu0 %4079
    %4081 = vrot.lane.b32.xlu0 %v4058, 56
    %v4082 = vpop.permute.xlu0 %4081
    %4083 = vrot.lane.b32.xlu0 %v4060, 56
    %v4084 = vpop.permute.xlu0 %4083
    %4085 = vrot.lane.b32.xlu0 %v4062, 56
    %v4086 = vpop.permute.xlu0 %4085
    %4095 = vst.msk [vmem:[#allocation2] sm:$0xff] %vm969, %v4072
    %4096 = vst.msk [vmem:[#allocation2 + $0x8] sm:$0xff] %vm969, %v4074
    %4097 = vst.msk [vmem:[#allocation2 + $0x10] sm:$0xff] %vm969, %v4076
    %4098 = vst.msk [vmem:[#allocation2 + $0x18] sm:$0xff] %vm969, %v4078
    %4099 = vst.msk [vmem:[#allocation2 + $0x20] sm:$0xff] %vm969, %v4080
    %4100 = vst.msk [vmem:[#allocation2 + $0x28] sm:$0xff] %vm969, %v4082
    %4101 = vst.msk [vmem:[#allocation2 + $0x30] sm:$0xff] %vm969, %v4084
    %4102 = vst.msk [vmem:[#allocation2 + $0x38] sm:$0xff] %vm969, %v4086
    %4103 = vset.pattern.permute.xlu0 8
    %4104 = vperm.xlu0 %4103, %v3124
    %v4105 = vpop.permute.xlu0 %4104
    %4107 = vset.pattern.permute.xlu0 8
    %4108 = vperm.xlu0 %4107, %v3129
    %v4109 = vpop.permute.xlu0 %4108
    %4111 = vset.pattern.permute.xlu0 8
    %4112 = vperm.xlu0 %4111, %v3134
    %v4113 = vpop.permute.xlu0 %4112
    %4115 = vset.pattern.permute.xlu0 8
    %4116 = vperm.xlu0 %4115, %v3139
    %v4117 = vpop.permute.xlu0 %4116
    %4119 = vset.pattern.permute.xlu0 8
    %4120 = vperm.xlu0 %4119, %v3144
    %v4121 = vpop.permute.xlu0 %4120
    %4123 = vset.pattern.permute.xlu0 8
    %4124 = vperm.xlu0 %4123, %v3149
    %v4125 = vpop.permute.xlu0 %4124
    %4127 = vset.pattern.permute.xlu0 8
    %4128 = vperm.xlu0 %4127, %v3154
    %v4129 = vpop.permute.xlu0 %4128
    %4131 = vset.pattern.permute.xlu0 8
    %4132 = vperm.xlu0 %4131, %v3159
    %v4133 = vpop.permute.xlu0 %4132
    %v4135 = vsub.f32 %v4105, %v3206
    %v4136 = vsub.f32 %v4109, %v3206
    %v4137 = vsub.f32 %v4113, %v3206
    %v4138 = vsub.f32 %v4117, %v3206
    %v4139 = vsub.f32 %v4121, %v3206
    %v4140 = vsub.f32 %v4125, %v3206
    %v4141 = vsub.f32 %v4129, %v3206
    %v4142 = vsub.f32 %v4133, %v3206
    %v4143 = vmul.f32 %v4135, 1.070149
    %v4144 = vmul.f32 %v4136, 1.070149
    %v4145 = vmul.f32 %v4137, 1.070149
    %v4146 = vmul.f32 %v4138, 1.070149
    %v4147 = vmul.f32 %v4139, 1.070149
    %v4148 = vmul.f32 %v4140, 1.070149
    %v4149 = vmul.f32 %v4141, 1.070149
    %v4150 = vmul.f32 %v4142, 1.070149
    %v4151 = vmul.f32 %v4143, %v4143
    %v4152 = vmul.f32 %v4144, %v4144
    %v4153 = vmul.f32 %v4145, %v4145
    %v4154 = vmul.f32 %v4146, %v4146
    %v4155 = vmul.f32 %v4147, %v4147
    %v4156 = vmul.f32 %v4148, %v4148
    %v4157 = vmul.f32 %v4149, %v4149
    %v4158 = vmul.f32 %v4150, %v4150
    %v4159 = vsub.f32 0.0, %v4151
    %v4160 = vsub.f32 0.0, %v4152
    %v4161 = vsub.f32 0.0, %v4153
    %v4162 = vsub.f32 0.0, %v4154
    %v4163 = vsub.f32 0.0, %v4155
    %v4164 = vsub.f32 0.0, %v4156
    %v4165 = vsub.f32 0.0, %v4157
    %v4166 = vsub.f32 0.0, %v4158
    %v4167 = vmul.f32 %v4159, 1.442695
    %v4168 = vpow.pop %v4167
    %v4169 = vmul.f32 %v4160, 1.442695
    %v4170 = vpow.pop %v4169
    %v4171 = vmul.f32 %v4161, 1.442695
    %v4172 = vpow.pop %v4171
    %v4173 = vmul.f32 %v4162, 1.442695
    %v4174 = vpow.pop %v4173
    %v4175 = vmul.f32 %v4163, 1.442695
    %v4176 = vpow.pop %v4175
    %v4177 = vmul.f32 %v4164, 1.442695
    %v4178 = vpow.pop %v4177
    %v4179 = vmul.f32 %v4165, 1.442695
    %v4180 = vpow.pop %v4179
    %v4181 = vmul.f32 %v4166, 1.442695
    %v4182 = vpow.pop %v4181
    %4191 = vrot.lane.b32.xlu0 %v4168, 64
    %v4192 = vpop.permute.xlu0 %4191
    %4193 = vrot.lane.b32.xlu0 %v4170, 64
    %v4194 = vpop.permute.xlu0 %4193
    %4195 = vrot.lane.b32.xlu0 %v4172, 64
    %v4196 = vpop.permute.xlu0 %4195
    %4197 = vrot.lane.b32.xlu0 %v4174, 64
    %v4198 = vpop.permute.xlu0 %4197
    %4199 = vrot.lane.b32.xlu0 %v4176, 64
    %v4200 = vpop.permute.xlu0 %4199
    %4201 = vrot.lane.b32.xlu0 %v4178, 64
    %v4202 = vpop.permute.xlu0 %4201
    %4203 = vrot.lane.b32.xlu0 %v4180, 64
    %v4204 = vpop.permute.xlu0 %4203
    %4205 = vrot.lane.b32.xlu0 %v4182, 64
    %v4206 = vpop.permute.xlu0 %4205
    %4215 = vst.msk [vmem:[#allocation2] sm:$0xff] %vm2177, %v4192
    %4216 = vst.msk [vmem:[#allocation2 + $0x8] sm:$0xff] %vm2177, %v4194
    %4217 = vst.msk [vmem:[#allocation2 + $0x10] sm:$0xff] %vm2177, %v4196
    %4218 = vst.msk [vmem:[#allocation2 + $0x18] sm:$0xff] %vm2177, %v4198
    %4219 = vst.msk [vmem:[#allocation2 + $0x20] sm:$0xff] %vm2177, %v4200
    %4220 = vst.msk [vmem:[#allocation2 + $0x28] sm:$0xff] %vm2177, %v4202
    %4221 = vst.msk [vmem:[#allocation2 + $0x30] sm:$0xff] %vm2177, %v4204
    %4222 = vst.msk [vmem:[#allocation2 + $0x38] sm:$0xff] %vm2177, %v4206
    %4223 = vset.pattern.permute.xlu0 9
    %4224 = vperm.xlu0 %4223, %v3124
    %v4225 = vpop.permute.xlu0 %4224
    %4227 = vset.pattern.permute.xlu0 9
    %4228 = vperm.xlu0 %4227, %v3129
    %v4229 = vpop.permute.xlu0 %4228
    %4231 = vset.pattern.permute.xlu0 9
    %4232 = vperm.xlu0 %4231, %v3134
    %v4233 = vpop.permute.xlu0 %4232
    %4235 = vset.pattern.permute.xlu0 9
    %4236 = vperm.xlu0 %4235, %v3139
    %v4237 = vpop.permute.xlu0 %4236
    %4239 = vset.pattern.permute.xlu0 9
    %4240 = vperm.xlu0 %4239, %v3144
    %v4241 = vpop.permute.xlu0 %4240
    %4243 = vset.pattern.permute.xlu0 9
    %4244 = vperm.xlu0 %4243, %v3149
    %v4245 = vpop.permute.xlu0 %4244
    %4247 = vset.pattern.permute.xlu0 9
    %4248 = vperm.xlu0 %4247, %v3154
    %v4249 = vpop.permute.xlu0 %4248
    %4251 = vset.pattern.permute.xlu0 9
    %4252 = vperm.xlu0 %4251, %v3159
    %v4253 = vpop.permute.xlu0 %4252
    %v4255 = vsub.f32 %v4225, %v3206
    %v4256 = vsub.f32 %v4229, %v3206
    %v4257 = vsub.f32 %v4233, %v3206
    %v4258 = vsub.f32 %v4237, %v3206
    %v4259 = vsub.f32 %v4241, %v3206
    %v4260 = vsub.f32 %v4245, %v3206
    %v4261 = vsub.f32 %v4249, %v3206
    %v4262 = vsub.f32 %v4253, %v3206
    %v4263 = vmul.f32 %v4255, 1.070149
    %v4264 = vmul.f32 %v4256, 1.070149
    %v4265 = vmul.f32 %v4257, 1.070149
    %v4266 = vmul.f32 %v4258, 1.070149
    %v4267 = vmul.f32 %v4259, 1.070149
    %v4268 = vmul.f32 %v4260, 1.070149
    %v4269 = vmul.f32 %v4261, 1.070149
    %v4270 = vmul.f32 %v4262, 1.070149
    %v4271 = vmul.f32 %v4263, %v4263
    %v4272 = vmul.f32 %v4264, %v4264
    %v4273 = vmul.f32 %v4265, %v4265
    %v4274 = vmul.f32 %v4266, %v4266
    %v4275 = vmul.f32 %v4267, %v4267
    %v4276 = vmul.f32 %v4268, %v4268
    %v4277 = vmul.f32 %v4269, %v4269
    %v4278 = vmul.f32 %v4270, %v4270
    %v4279 = vsub.f32 0.0, %v4271
    %v4280 = vsub.f32 0.0, %v4272
    %v4281 = vsub.f32 0.0, %v4273
    %v4282 = vsub.f32 0.0, %v4274
    %v4283 = vsub.f32 0.0, %v4275
    %v4284 = vsub.f32 0.0, %v4276
    %v4285 = vsub.f32 0.0, %v4277
    %v4286 = vsub.f32 0.0, %v4278
    %v4287 = vmul.f32 %v4279, 1.442695
    %v4288 = vpow.pop %v4287
    %v4289 = vmul.f32 %v4280, 1.442695
    %v4290 = vpow.pop %v4289
    %v4291 = vmul.f32 %v4281, 1.442695
    %v4292 = vpow.pop %v4291
    %v4293 = vmul.f32 %v4282, 1.442695
    %v4294 = vpow.pop %v4293
    %v4295 = vmul.f32 %v4283, 1.442695
    %v4296 = vpow.pop %v4295
    %v4297 = vmul.f32 %v4284, 1.442695
    %v4298 = vpow.pop %v4297
    %v4299 = vmul.f32 %v4285, 1.442695
    %v4300 = vpow.pop %v4299
    %v4301 = vmul.f32 %v4286, 1.442695
    %v4302 = vpow.pop %v4301
    %4311 = vrot.lane.b32.xlu0 %v4288, 72
    %v4312 = vpop.permute.xlu0 %4311
    %4313 = vrot.lane.b32.xlu0 %v4290, 72
    %v4314 = vpop.permute.xlu0 %4313
    %4315 = vrot.lane.b32.xlu0 %v4292, 72
    %v4316 = vpop.permute.xlu0 %4315
    %4317 = vrot.lane.b32.xlu0 %v4294, 72
    %v4318 = vpop.permute.xlu0 %4317
    %4319 = vrot.lane.b32.xlu0 %v4296, 72
    %v4320 = vpop.permute.xlu0 %4319
    %4321 = vrot.lane.b32.xlu0 %v4298, 72
    %v4322 = vpop.permute.xlu0 %4321
    %4323 = vrot.lane.b32.xlu0 %v4300, 72
    %v4324 = vpop.permute.xlu0 %4323
    %4325 = vrot.lane.b32.xlu0 %v4302, 72
    %v4326 = vpop.permute.xlu0 %4325
    %4335 = vst.msk [vmem:[#allocation2] sm:$0xff] %vm2298, %v4312
    %4336 = vst.msk [vmem:[#allocation2 + $0x8] sm:$0xff] %vm2298, %v4314
    %4337 = vst.msk [vmem:[#allocation2 + $0x10] sm:$0xff] %vm2298, %v4316
    %4338 = vst.msk [vmem:[#allocation2 + $0x18] sm:$0xff] %vm2298, %v4318
    %4339 = vst.msk [vmem:[#allocation2 + $0x20] sm:$0xff] %vm2298, %v4320
    %4340 = vst.msk [vmem:[#allocation2 + $0x28] sm:$0xff] %vm2298, %v4322
    %4341 = vst.msk [vmem:[#allocation2 + $0x30] sm:$0xff] %vm2298, %v4324
    %4342 = vst.msk [vmem:[#allocation2 + $0x38] sm:$0xff] %vm2298, %v4326
    %4343 = vset.pattern.permute.xlu0 10
    %4344 = vperm.xlu0 %4343, %v3124
    %v4345 = vpop.permute.xlu0 %4344
    %4347 = vset.pattern.permute.xlu0 10
    %4348 = vperm.xlu0 %4347, %v3129
    %v4349 = vpop.permute.xlu0 %4348
    %4351 = vset.pattern.permute.xlu0 10
    %4352 = vperm.xlu0 %4351, %v3134
    %v4353 = vpop.permute.xlu0 %4352
    %4355 = vset.pattern.permute.xlu0 10
    %4356 = vperm.xlu0 %4355, %v3139
    %v4357 = vpop.permute.xlu0 %4356
    %4359 = vset.pattern.permute.xlu0 10
    %4360 = vperm.xlu0 %4359, %v3144
    %v4361 = vpop.permute.xlu0 %4360
    %4363 = vset.pattern.permute.xlu0 10
    %4364 = vperm.xlu0 %4363, %v3149
    %v4365 = vpop.permute.xlu0 %4364
    %4367 = vset.pattern.permute.xlu0 10
    %4368 = vperm.xlu0 %4367, %v3154
    %v4369 = vpop.permute.xlu0 %4368
    %4371 = vset.pattern.permute.xlu0 10
    %4372 = vperm.xlu0 %4371, %v3159
    %v4373 = vpop.permute.xlu0 %4372
    %v4375 = vsub.f32 %v4345, %v3206
    %v4376 = vsub.f32 %v4349, %v3206
    %v4377 = vsub.f32 %v4353, %v3206
    %v4378 = vsub.f32 %v4357, %v3206
    %v4379 = vsub.f32 %v4361, %v3206
    %v4380 = vsub.f32 %v4365, %v3206
    %v4381 = vsub.f32 %v4369, %v3206
    %v4382 = vsub.f32 %v4373, %v3206
    %v4383 = vmul.f32 %v4375, 1.070149
    %v4384 = vmul.f32 %v4376, 1.070149
    %v4385 = vmul.f32 %v4377, 1.070149
    %v4386 = vmul.f32 %v4378, 1.070149
    %v4387 = vmul.f32 %v4379, 1.070149
    %v4388 = vmul.f32 %v4380, 1.070149
    %v4389 = vmul.f32 %v4381, 1.070149
    %v4390 = vmul.f32 %v4382, 1.070149
    %v4391 = vmul.f32 %v4383, %v4383
    %v4392 = vmul.f32 %v4384, %v4384
    %v4393 = vmul.f32 %v4385, %v4385
    %v4394 = vmul.f32 %v4386, %v4386
    %v4395 = vmul.f32 %v4387, %v4387
    %v4396 = vmul.f32 %v4388, %v4388
    %v4397 = vmul.f32 %v4389, %v4389
    %v4398 = vmul.f32 %v4390, %v4390
    %v4399 = vsub.f32 0.0, %v4391
    %v4400 = vsub.f32 0.0, %v4392
    %v4401 = vsub.f32 0.0, %v4393
    %v4402 = vsub.f32 0.0, %v4394
    %v4403 = vsub.f32 0.0, %v4395
    %v4404 = vsub.f32 0.0, %v4396
    %v4405 = vsub.f32 0.0, %v4397
    %v4406 = vsub.f32 0.0, %v4398
    %v4407 = vmul.f32 %v4399, 1.442695
    %v4408 = vpow.pop %v4407
    %v4409 = vmul.f32 %v4400, 1.442695
    %v4410 = vpow.pop %v4409
    %v4411 = vmul.f32 %v4401, 1.442695
    %v4412 = vpow.pop %v4411
    %v4413 = vmul.f32 %v4402, 1.442695
    %v4414 = vpow.pop %v4413
    %v4415 = vmul.f32 %v4403, 1.442695
    %v4416 = vpow.pop %v4415
    %v4417 = vmul.f32 %v4404, 1.442695
    %v4418 = vpow.pop %v4417
    %v4419 = vmul.f32 %v4405, 1.442695
    %v4420 = vpow.pop %v4419
    %v4421 = vmul.f32 %v4406, 1.442695
    %v4422 = vpow.pop %v4421
    %4431 = vrot.lane.b32.xlu0 %v4408, 80
    %v4432 = vpop.permute.xlu0 %4431
    %4433 = vrot.lane.b32.xlu0 %v4410, 80
    %v4434 = vpop.permute.xlu0 %4433
    %4435 = vrot.lane.b32.xlu0 %v4412, 80
    %v4436 = vpop.permute.xlu0 %4435
    %4437 = vrot.lane.b32.xlu0 %v4414, 80
    %v4438 = vpop.permute.xlu0 %4437
    %4439 = vrot.lane.b32.xlu0 %v4416, 80
    %v4440 = vpop.permute.xlu0 %4439
    %4441 = vrot.lane.b32.xlu0 %v4418, 80
    %v4442 = vpop.permute.xlu0 %4441
    %4443 = vrot.lane.b32.xlu0 %v4420, 80
    %v4444 = vpop.permute.xlu0 %4443
    %4445 = vrot.lane.b32.xlu0 %v4422, 80
    %v4446 = vpop.permute.xlu0 %4445
    %4455 = vst.msk [vmem:[#allocation2] sm:$0xff] %vm2419, %v4432
    %4456 = vst.msk [vmem:[#allocation2 + $0x8] sm:$0xff] %vm2419, %v4434
    %4457 = vst.msk [vmem:[#allocation2 + $0x10] sm:$0xff] %vm2419, %v4436
    %4458 = vst.msk [vmem:[#allocation2 + $0x18] sm:$0xff] %vm2419, %v4438
    %4459 = vst.msk [vmem:[#allocation2 + $0x20] sm:$0xff] %vm2419, %v4440
    %4460 = vst.msk [vmem:[#allocation2 + $0x28] sm:$0xff] %vm2419, %v4442
    %4461 = vst.msk [vmem:[#allocation2 + $0x30] sm:$0xff] %vm2419, %v4444
    %4462 = vst.msk [vmem:[#allocation2 + $0x38] sm:$0xff] %vm2419, %v4446
    %4463 = vset.pattern.permute.xlu0 11
    %4464 = vperm.xlu0 %4463, %v3124
    %v4465 = vpop.permute.xlu0 %4464
    %4467 = vset.pattern.permute.xlu0 11
    %4468 = vperm.xlu0 %4467, %v3129
    %v4469 = vpop.permute.xlu0 %4468
    %4471 = vset.pattern.permute.xlu0 11
    %4472 = vperm.xlu0 %4471, %v3134
    %v4473 = vpop.permute.xlu0 %4472
    %4475 = vset.pattern.permute.xlu0 11
    %4476 = vperm.xlu0 %4475, %v3139
    %v4477 = vpop.permute.xlu0 %4476
    %4479 = vset.pattern.permute.xlu0 11
    %4480 = vperm.xlu0 %4479, %v3144
    %v4481 = vpop.permute.xlu0 %4480
    %4483 = vset.pattern.permute.xlu0 11
    %4484 = vperm.xlu0 %4483, %v3149
    %v4485 = vpop.permute.xlu0 %4484
    %4487 = vset.pattern.permute.xlu0 11
    %4488 = vperm.xlu0 %4487, %v3154
    %v4489 = vpop.permute.xlu0 %4488
    %4491 = vset.pattern.permute.xlu0 11
    %4492 = vperm.xlu0 %4491, %v3159
    %v4493 = vpop.permute.xlu0 %4492
    %v4495 = vsub.f32 %v4465, %v3206
    %v4496 = vsub.f32 %v4469, %v3206
    %v4497 = vsub.f32 %v4473, %v3206
    %v4498 = vsub.f32 %v4477, %v3206
    %v4499 = vsub.f32 %v4481, %v3206
    %v4500 = vsub.f32 %v4485, %v3206
    %v4501 = vsub.f32 %v4489, %v3206
    %v4502 = vsub.f32 %v4493, %v3206
    %v4503 = vmul.f32 %v4495, 1.070149
    %v4504 = vmul.f32 %v4496, 1.070149
    %v4505 = vmul.f32 %v4497, 1.070149
    %v4506 = vmul.f32 %v4498, 1.070149
    %v4507 = vmul.f32 %v4499, 1.070149
    %v4508 = vmul.f32 %v4500, 1.070149
    %v4509 = vmul.f32 %v4501, 1.070149
    %v4510 = vmul.f32 %v4502, 1.070149
    %v4511 = vmul.f32 %v4503, %v4503
    %v4512 = vmul.f32 %v4504, %v4504
    %v4513 = vmul.f32 %v4505, %v4505
    %v4514 = vmul.f32 %v4506, %v4506
    %v4515 = vmul.f32 %v4507, %v4507
    %v4516 = vmul.f32 %v4508, %v4508
    %v4517 = vmul.f32 %v4509, %v4509
    %v4518 = vmul.f32 %v4510, %v4510
    %v4519 = vsub.f32 0.0, %v4511
    %v4520 = vsub.f32 0.0, %v4512
    %v4521 = vsub.f32 0.0, %v4513
    %v4522 = vsub.f32 0.0, %v4514
    %v4523 = vsub.f32 0.0, %v4515
    %v4524 = vsub.f32 0.0, %v4516
    %v4525 = vsub.f32 0.0, %v4517
    %v4526 = vsub.f32 0.0, %v4518
    %v4527 = vmul.f32 %v4519, 1.442695
    %v4528 = vpow.pop %v4527
    %v4529 = vmul.f32 %v4520, 1.442695
    %v4530 = vpow.pop %v4529
    %v4531 = vmul.f32 %v4521, 1.442695
    %v4532 = vpow.pop %v4531
    %v4533 = vmul.f32 %v4522, 1.442695
    %v4534 = vpow.pop %v4533
    %v4535 = vmul.f32 %v4523, 1.442695
    %v4536 = vpow.pop %v4535
    %v4537 = vmul.f32 %v4524, 1.442695
    %v4538 = vpow.pop %v4537
    %v4539 = vmul.f32 %v4525, 1.442695
    %v4540 = vpow.pop %v4539
    %v4541 = vmul.f32 %v4526, 1.442695
    %v4542 = vpow.pop %v4541
    %4551 = vrot.lane.b32.xlu0 %v4528, 88
    %v4552 = vpop.permute.xlu0 %4551
    %4553 = vrot.lane.b32.xlu0 %v4530, 88
    %v4554 = vpop.permute.xlu0 %4553
    %4555 = vrot.lane.b32.xlu0 %v4532, 88
    %v4556 = vpop.permute.xlu0 %4555
    %4557 = vrot.lane.b32.xlu0 %v4534, 88
    %v4558 = vpop.permute.xlu0 %4557
    %4559 = vrot.lane.b32.xlu0 %v4536, 88
    %v4560 = vpop.permute.xlu0 %4559
    %4561 = vrot.lane.b32.xlu0 %v4538, 88
    %v4562 = vpop.permute.xlu0 %4561
    %4563 = vrot.lane.b32.xlu0 %v4540, 88
    %v4564 = vpop.permute.xlu0 %4563
    %4565 = vrot.lane.b32.xlu0 %v4542, 88
    %v4566 = vpop.permute.xlu0 %4565
    %4575 = vst.msk [vmem:[#allocation2] sm:$0xff] %vm2540, %v4552
    %4576 = vst.msk [vmem:[#allocation2 + $0x8] sm:$0xff] %vm2540, %v4554
    %4577 = vst.msk [vmem:[#allocation2 + $0x10] sm:$0xff] %vm2540, %v4556
    %4578 = vst.msk [vmem:[#allocation2 + $0x18] sm:$0xff] %vm2540, %v4558
    %4579 = vst.msk [vmem:[#allocation2 + $0x20] sm:$0xff] %vm2540, %v4560
    %4580 = vst.msk [vmem:[#allocation2 + $0x28] sm:$0xff] %vm2540, %v4562
    %4581 = vst.msk [vmem:[#allocation2 + $0x30] sm:$0xff] %vm2540, %v4564
    %4582 = vst.msk [vmem:[#allocation2 + $0x38] sm:$0xff] %vm2540, %v4566
    %4583 = vset.pattern.permute.xlu0 12
    %4584 = vperm.xlu0 %4583, %v3124
    %v4585 = vpop.permute.xlu0 %4584
    %4587 = vset.pattern.permute.xlu0 12
    %4588 = vperm.xlu0 %4587, %v3129
    %v4589 = vpop.permute.xlu0 %4588
    %4591 = vset.pattern.permute.xlu0 12
    %4592 = vperm.xlu0 %4591, %v3134
    %v4593 = vpop.permute.xlu0 %4592
    %4595 = vset.pattern.permute.xlu0 12
    %4596 = vperm.xlu0 %4595, %v3139
    %v4597 = vpop.permute.xlu0 %4596
    %4599 = vset.pattern.permute.xlu0 12
    %4600 = vperm.xlu0 %4599, %v3144
    %v4601 = vpop.permute.xlu0 %4600
    %4603 = vset.pattern.permute.xlu0 12
    %4604 = vperm.xlu0 %4603, %v3149
    %v4605 = vpop.permute.xlu0 %4604
    %4607 = vset.pattern.permute.xlu0 12
    %4608 = vperm.xlu0 %4607, %v3154
    %v4609 = vpop.permute.xlu0 %4608
    %4611 = vset.pattern.permute.xlu0 12
    %4612 = vperm.xlu0 %4611, %v3159
    %v4613 = vpop.permute.xlu0 %4612
    %v4615 = vsub.f32 %v4585, %v3206
    %v4616 = vsub.f32 %v4589, %v3206
    %v4617 = vsub.f32 %v4593, %v3206
    %v4618 = vsub.f32 %v4597, %v3206
    %v4619 = vsub.f32 %v4601, %v3206
    %v4620 = vsub.f32 %v4605, %v3206
    %v4621 = vsub.f32 %v4609, %v3206
    %v4622 = vsub.f32 %v4613, %v3206
    %v4623 = vmul.f32 %v4615, 1.070149
    %v4624 = vmul.f32 %v4616, 1.070149
    %v4625 = vmul.f32 %v4617, 1.070149
    %v4626 = vmul.f32 %v4618, 1.070149
    %v4627 = vmul.f32 %v4619, 1.070149
    %v4628 = vmul.f32 %v4620, 1.070149
    %v4629 = vmul.f32 %v4621, 1.070149
    %v4630 = vmul.f32 %v4622, 1.070149
    %v4631 = vmul.f32 %v4623, %v4623
    %v4632 = vmul.f32 %v4624, %v4624
    %v4633 = vmul.f32 %v4625, %v4625
    %v4634 = vmul.f32 %v4626, %v4626
    %v4635 = vmul.f32 %v4627, %v4627
    %v4636 = vmul.f32 %v4628, %v4628
    %v4637 = vmul.f32 %v4629, %v4629
    %v4638 = vmul.f32 %v4630, %v4630
    %v4639 = vsub.f32 0.0, %v4631
    %v4640 = vsub.f32 0.0, %v4632
    %v4641 = vsub.f32 0.0, %v4633
    %v4642 = vsub.f32 0.0, %v4634
    %v4643 = vsub.f32 0.0, %v4635
    %v4644 = vsub.f32 0.0, %v4636
    %v4645 = vsub.f32 0.0, %v4637
    %v4646 = vsub.f32 0.0, %v4638
    %v4647 = vmul.f32 %v4639, 1.442695
    %v4648 = vpow.pop %v4647
    %v4649 = vmul.f32 %v4640, 1.442695
    %v4650 = vpow.pop %v4649
    %v4651 = vmul.f32 %v4641, 1.442695
    %v4652 = vpow.pop %v4651
    %v4653 = vmul.f32 %v4642, 1.442695
    %v4654 = vpow.pop %v4653
    %v4655 = vmul.f32 %v4643, 1.442695
    %v4656 = vpow.pop %v4655
    %v4657 = vmul.f32 %v4644, 1.442695
    %v4658 = vpow.pop %v4657
    %v4659 = vmul.f32 %v4645, 1.442695
    %v4660 = vpow.pop %v4659
    %v4661 = vmul.f32 %v4646, 1.442695
    %v4662 = vpow.pop %v4661
    %4671 = vrot.lane.b32.xlu0 %v4648, 96
    %v4672 = vpop.permute.xlu0 %4671
    %4673 = vrot.lane.b32.xlu0 %v4650, 96
    %v4674 = vpop.permute.xlu0 %4673
    %4675 = vrot.lane.b32.xlu0 %v4652, 96
    %v4676 = vpop.permute.xlu0 %4675
    %4677 = vrot.lane.b32.xlu0 %v4654, 96
    %v4678 = vpop.permute.xlu0 %4677
    %4679 = vrot.lane.b32.xlu0 %v4656, 96
    %v4680 = vpop.permute.xlu0 %4679
    %4681 = vrot.lane.b32.xlu0 %v4658, 96
    %v4682 = vpop.permute.xlu0 %4681
    %4683 = vrot.lane.b32.xlu0 %v4660, 96
    %v4684 = vpop.permute.xlu0 %4683
    %4685 = vrot.lane.b32.xlu0 %v4662, 96
    %v4686 = vpop.permute.xlu0 %4685
    %4695 = vst.msk [vmem:[#allocation2] sm:$0xff] %vm2661, %v4672
    %4696 = vst.msk [vmem:[#allocation2 + $0x8] sm:$0xff] %vm2661, %v4674
    %4697 = vst.msk [vmem:[#allocation2 + $0x10] sm:$0xff] %vm2661, %v4676
    %4698 = vst.msk [vmem:[#allocation2 + $0x18] sm:$0xff] %vm2661, %v4678
    %4699 = vst.msk [vmem:[#allocation2 + $0x20] sm:$0xff] %vm2661, %v4680
    %4700 = vst.msk [vmem:[#allocation2 + $0x28] sm:$0xff] %vm2661, %v4682
    %4701 = vst.msk [vmem:[#allocation2 + $0x30] sm:$0xff] %vm2661, %v4684
    %4702 = vst.msk [vmem:[#allocation2 + $0x38] sm:$0xff] %vm2661, %v4686
    %4703 = vset.pattern.permute.xlu0 13
    %4704 = vperm.xlu0 %4703, %v3124
    %v4705 = vpop.permute.xlu0 %4704
    %4707 = vset.pattern.permute.xlu0 13
    %4708 = vperm.xlu0 %4707, %v3129
    %v4709 = vpop.permute.xlu0 %4708
    %4711 = vset.pattern.permute.xlu0 13
    %4712 = vperm.xlu0 %4711, %v3134
    %v4713 = vpop.permute.xlu0 %4712
    %4715 = vset.pattern.permute.xlu0 13
    %4716 = vperm.xlu0 %4715, %v3139
    %v4717 = vpop.permute.xlu0 %4716
    %4719 = vset.pattern.permute.xlu0 13
    %4720 = vperm.xlu0 %4719, %v3144
    %v4721 = vpop.permute.xlu0 %4720
    %4723 = vset.pattern.permute.xlu0 13
    %4724 = vperm.xlu0 %4723, %v3149
    %v4725 = vpop.permute.xlu0 %4724
    %4727 = vset.pattern.permute.xlu0 13
    %4728 = vperm.xlu0 %4727, %v3154
    %v4729 = vpop.permute.xlu0 %4728
    %4731 = vset.pattern.permute.xlu0 13
    %4732 = vperm.xlu0 %4731, %v3159
    %v4733 = vpop.permute.xlu0 %4732
    %v4735 = vsub.f32 %v4705, %v3206
    %v4736 = vsub.f32 %v4709, %v3206
    %v4737 = vsub.f32 %v4713, %v3206
    %v4738 = vsub.f32 %v4717, %v3206
    %v4739 = vsub.f32 %v4721, %v3206
    %v4740 = vsub.f32 %v4725, %v3206
    %v4741 = vsub.f32 %v4729, %v3206
    %v4742 = vsub.f32 %v4733, %v3206
    %v4743 = vmul.f32 %v4735, 1.070149
    %v4744 = vmul.f32 %v4736, 1.070149
    %v4745 = vmul.f32 %v4737, 1.070149
    %v4746 = vmul.f32 %v4738, 1.070149
    %v4747 = vmul.f32 %v4739, 1.070149
    %v4748 = vmul.f32 %v4740, 1.070149
    %v4749 = vmul.f32 %v4741, 1.070149
    %v4750 = vmul.f32 %v4742, 1.070149
    %v4751 = vmul.f32 %v4743, %v4743
    %v4752 = vmul.f32 %v4744, %v4744
    %v4753 = vmul.f32 %v4745, %v4745
    %v4754 = vmul.f32 %v4746, %v4746
    %v4755 = vmul.f32 %v4747, %v4747
    %v4756 = vmul.f32 %v4748, %v4748
    %v4757 = vmul.f32 %v4749, %v4749
    %v4758 = vmul.f32 %v4750, %v4750
    %v4759 = vsub.f32 0.0, %v4751
    %v4760 = vsub.f32 0.0, %v4752
    %v4761 = vsub.f32 0.0, %v4753
    %v4762 = vsub.f32 0.0, %v4754
    %v4763 = vsub.f32 0.0, %v4755
    %v4764 = vsub.f32 0.0, %v4756
    %v4765 = vsub.f32 0.0, %v4757
    %v4766 = vsub.f32 0.0, %v4758
    %v4767 = vmul.f32 %v4759, 1.442695
    %v4768 = vpow.pop %v4767
    %v4769 = vmul.f32 %v4760, 1.442695
    %v4770 = vpow.pop %v4769
    %v4771 = vmul.f32 %v4761, 1.442695
    %v4772 = vpow.pop %v4771
    %v4773 = vmul.f32 %v4762, 1.442695
    %v4774 = vpow.pop %v4773
    %v4775 = vmul.f32 %v4763, 1.442695
    %v4776 = vpow.pop %v4775
    %v4777 = vmul.f32 %v4764, 1.442695
    %v4778 = vpow.pop %v4777
    %v4779 = vmul.f32 %v4765, 1.442695
    %v4780 = vpow.pop %v4779
    %v4781 = vmul.f32 %v4766, 1.442695
    %v4782 = vpow.pop %v4781
    %4791 = vrot.lane.b32.xlu0 %v4768, 104
    %v4792 = vpop.permute.xlu0 %4791
    %4793 = vrot.lane.b32.xlu0 %v4770, 104
    %v4794 = vpop.permute.xlu0 %4793
    %4795 = vrot.lane.b32.xlu0 %v4772, 104
    %v4796 = vpop.permute.xlu0 %4795
    %4797 = vrot.lane.b32.xlu0 %v4774, 104
    %v4798 = vpop.permute.xlu0 %4797
    %4799 = vrot.lane.b32.xlu0 %v4776, 104
    %v4800 = vpop.permute.xlu0 %4799
    %4801 = vrot.lane.b32.xlu0 %v4778, 104
    %v4802 = vpop.permute.xlu0 %4801
    %4803 = vrot.lane.b32.xlu0 %v4780, 104
    %v4804 = vpop.permute.xlu0 %4803
    %4805 = vrot.lane.b32.xlu0 %v4782, 104
    %v4806 = vpop.permute.xlu0 %4805
    %4815 = vst.msk [vmem:[#allocation2] sm:$0xff] %vm2782, %v4792
    %4816 = vst.msk [vmem:[#allocation2 + $0x8] sm:$0xff] %vm2782, %v4794
    %4817 = vst.msk [vmem:[#allocation2 + $0x10] sm:$0xff] %vm2782, %v4796
    %4818 = vst.msk [vmem:[#allocation2 + $0x18] sm:$0xff] %vm2782, %v4798
    %4819 = vst.msk [vmem:[#allocation2 + $0x20] sm:$0xff] %vm2782, %v4800
    %4820 = vst.msk [vmem:[#allocation2 + $0x28] sm:$0xff] %vm2782, %v4802
    %4821 = vst.msk [vmem:[#allocation2 + $0x30] sm:$0xff] %vm2782, %v4804
    %4822 = vst.msk [vmem:[#allocation2 + $0x38] sm:$0xff] %vm2782, %v4806
    %4823 = vset.pattern.permute.xlu0 14
    %4824 = vperm.xlu0 %4823, %v3124
    %v4825 = vpop.permute.xlu0 %4824
    %4827 = vset.pattern.permute.xlu0 14
    %4828 = vperm.xlu0 %4827, %v3129
    %v4829 = vpop.permute.xlu0 %4828
    %4831 = vset.pattern.permute.xlu0 14
    %4832 = vperm.xlu0 %4831, %v3134
    %v4833 = vpop.permute.xlu0 %4832
    %4835 = vset.pattern.permute.xlu0 14
    %4836 = vperm.xlu0 %4835, %v3139
    %v4837 = vpop.permute.xlu0 %4836
    %4839 = vset.pattern.permute.xlu0 14
    %4840 = vperm.xlu0 %4839, %v3144
    %v4841 = vpop.permute.xlu0 %4840
    %4843 = vset.pattern.permute.xlu0 14
    %4844 = vperm.xlu0 %4843, %v3149
    %v4845 = vpop.permute.xlu0 %4844
    %4847 = vset.pattern.permute.xlu0 14
    %4848 = vperm.xlu0 %4847, %v3154
    %v4849 = vpop.permute.xlu0 %4848
    %4851 = vset.pattern.permute.xlu0 14
    %4852 = vperm.xlu0 %4851, %v3159
    %v4853 = vpop.permute.xlu0 %4852
    %v4855 = vsub.f32 %v4825, %v3206
    %v4856 = vsub.f32 %v4829, %v3206
    %v4857 = vsub.f32 %v4833, %v3206
    %v4858 = vsub.f32 %v4837, %v3206
    %v4859 = vsub.f32 %v4841, %v3206
    %v4860 = vsub.f32 %v4845, %v3206
    %v4861 = vsub.f32 %v4849, %v3206
    %v4862 = vsub.f32 %v4853, %v3206
    %v4863 = vmul.f32 %v4855, 1.070149
    %v4864 = vmul.f32 %v4856, 1.070149
    %v4865 = vmul.f32 %v4857, 1.070149
    %v4866 = vmul.f32 %v4858, 1.070149
    %v4867 = vmul.f32 %v4859, 1.070149
    %v4868 = vmul.f32 %v4860, 1.070149
    %v4869 = vmul.f32 %v4861, 1.070149
    %v4870 = vmul.f32 %v4862, 1.070149
    %v4871 = vmul.f32 %v4863, %v4863
    %v4872 = vmul.f32 %v4864, %v4864
    %v4873 = vmul.f32 %v4865, %v4865
    %v4874 = vmul.f32 %v4866, %v4866
    %v4875 = vmul.f32 %v4867, %v4867
    %v4876 = vmul.f32 %v4868, %v4868
    %v4877 = vmul.f32 %v4869, %v4869
    %v4878 = vmul.f32 %v4870, %v4870
    %v4879 = vsub.f32 0.0, %v4871
    %v4880 = vsub.f32 0.0, %v4872
    %v4881 = vsub.f32 0.0, %v4873
    %v4882 = vsub.f32 0.0, %v4874
    %v4883 = vsub.f32 0.0, %v4875
    %v4884 = vsub.f32 0.0, %v4876
    %v4885 = vsub.f32 0.0, %v4877
    %v4886 = vsub.f32 0.0, %v4878
    %v4887 = vmul.f32 %v4879, 1.442695
    %v4888 = vpow.pop %v4887
    %v4889 = vmul.f32 %v4880, 1.442695
    %v4890 = vpow.pop %v4889
    %v4891 = vmul.f32 %v4881, 1.442695
    %v4892 = vpow.pop %v4891
    %v4893 = vmul.f32 %v4882, 1.442695
    %v4894 = vpow.pop %v4893
    %v4895 = vmul.f32 %v4883, 1.442695
    %v4896 = vpow.pop %v4895
    %v4897 = vmul.f32 %v4884, 1.442695
    %v4898 = vpow.pop %v4897
    %v4899 = vmul.f32 %v4885, 1.442695
    %v4900 = vpow.pop %v4899
    %v4901 = vmul.f32 %v4886, 1.442695
    %v4902 = vpow.pop %v4901
    %4911 = vrot.lane.b32.xlu0 %v4888, 112
    %v4912 = vpop.permute.xlu0 %4911
    %4913 = vrot.lane.b32.xlu0 %v4890, 112
    %v4914 = vpop.permute.xlu0 %4913
    %4915 = vrot.lane.b32.xlu0 %v4892, 112
    %v4916 = vpop.permute.xlu0 %4915
    %4917 = vrot.lane.b32.xlu0 %v4894, 112
    %v4918 = vpop.permute.xlu0 %4917
    %4919 = vrot.lane.b32.xlu0 %v4896, 112
    %v4920 = vpop.permute.xlu0 %4919
    %4921 = vrot.lane.b32.xlu0 %v4898, 112
    %v4922 = vpop.permute.xlu0 %4921
    %4923 = vrot.lane.b32.xlu0 %v4900, 112
    %v4924 = vpop.permute.xlu0 %4923
    %4925 = vrot.lane.b32.xlu0 %v4902, 112
    %v4926 = vpop.permute.xlu0 %4925
    %4935 = vst.msk [vmem:[#allocation2] sm:$0xff] %vm2903, %v4912
    %4936 = vst.msk [vmem:[#allocation2 + $0x8] sm:$0xff] %vm2903, %v4914
    %4937 = vst.msk [vmem:[#allocation2 + $0x10] sm:$0xff] %vm2903, %v4916
    %4938 = vst.msk [vmem:[#allocation2 + $0x18] sm:$0xff] %vm2903, %v4918
    %4939 = vst.msk [vmem:[#allocation2 + $0x20] sm:$0xff] %vm2903, %v4920
    %4940 = vst.msk [vmem:[#allocation2 + $0x28] sm:$0xff] %vm2903, %v4922
    %4941 = vst.msk [vmem:[#allocation2 + $0x30] sm:$0xff] %vm2903, %v4924
    %4942 = vst.msk [vmem:[#allocation2 + $0x38] sm:$0xff] %vm2903, %v4926
    %4943 = vset.pattern.permute.xlu0 15
    %4944 = vperm.xlu0 %4943, %v3124
    %v4945 = vpop.permute.xlu0 %4944
    %4947 = vset.pattern.permute.xlu0 15
    %4948 = vperm.xlu0 %4947, %v3129
    %v4949 = vpop.permute.xlu0 %4948
    %4951 = vset.pattern.permute.xlu0 15
    %4952 = vperm.xlu0 %4951, %v3134
    %v4953 = vpop.permute.xlu0 %4952
    %4955 = vset.pattern.permute.xlu0 15
    %4956 = vperm.xlu0 %4955, %v3139
    %v4957 = vpop.permute.xlu0 %4956
    %4959 = vset.pattern.permute.xlu0 15
    %4960 = vperm.xlu0 %4959, %v3144
    %v4961 = vpop.permute.xlu0 %4960
    %4963 = vset.pattern.permute.xlu0 15
    %4964 = vperm.xlu0 %4963, %v3149
    %v4965 = vpop.permute.xlu0 %4964
    %4967 = vset.pattern.permute.xlu0 15
    %4968 = vperm.xlu0 %4967, %v3154
    %v4969 = vpop.permute.xlu0 %4968
    %4971 = vset.pattern.permute.xlu0 15
    %4972 = vperm.xlu0 %4971, %v3159
    %v4973 = vpop.permute.xlu0 %4972
    %v4975 = vsub.f32 %v4945, %v3206
    %v4976 = vsub.f32 %v4949, %v3206
    %v4977 = vsub.f32 %v4953, %v3206
    %v4978 = vsub.f32 %v4957, %v3206
    %v4979 = vsub.f32 %v4961, %v3206
    %v4980 = vsub.f32 %v4965, %v3206
    %v4981 = vsub.f32 %v4969, %v3206
    %v4982 = vsub.f32 %v4973, %v3206
    %v4983 = vmul.f32 %v4975, 1.070149
    %v4984 = vmul.f32 %v4976, 1.070149
    %v4985 = vmul.f32 %v4977, 1.070149
    %v4986 = vmul.f32 %v4978, 1.070149
    %v4987 = vmul.f32 %v4979, 1.070149
    %v4988 = vmul.f32 %v4980, 1.070149
    %v4989 = vmul.f32 %v4981, 1.070149
    %v4990 = vmul.f32 %v4982, 1.070149
    %v4991 = vmul.f32 %v4983, %v4983
    %v4992 = vmul.f32 %v4984, %v4984
    %v4993 = vmul.f32 %v4985, %v4985
    %v4994 = vmul.f32 %v4986, %v4986
    %v4995 = vmul.f32 %v4987, %v4987
    %v4996 = vmul.f32 %v4988, %v4988
    %v4997 = vmul.f32 %v4989, %v4989
    %v4998 = vmul.f32 %v4990, %v4990
    %v4999 = vsub.f32 0.0, %v4991
    %v5000 = vsub.f32 0.0, %v4992
    %v5001 = vsub.f32 0.0, %v4993
    %v5002 = vsub.f32 0.0, %v4994
    %v5003 = vsub.f32 0.0, %v4995
    %v5004 = vsub.f32 0.0, %v4996
    %v5005 = vsub.f32 0.0, %v4997
    %v5006 = vsub.f32 0.0, %v4998
    %v5007 = vmul.f32 %v4999, 1.442695
    %v5008 = vpow.pop %v5007
    %v5009 = vmul.f32 %v5000, 1.442695
    %v5010 = vpow.pop %v5009
    %v5011 = vmul.f32 %v5001, 1.442695
    %v5012 = vpow.pop %v5011
    %v5013 = vmul.f32 %v5002, 1.442695
    %v5014 = vpow.pop %v5013
    %v5015 = vmul.f32 %v5003, 1.442695
    %v5016 = vpow.pop %v5015
    %v5017 = vmul.f32 %v5004, 1.442695
    %v5018 = vpow.pop %v5017
    %v5019 = vmul.f32 %v5005, 1.442695
    %v5020 = vpow.pop %v5019
    %v5021 = vmul.f32 %v5006, 1.442695
    %v5022 = vpow.pop %v5021
    %5031 = vrot.lane.b32.xlu0 %v5008, 120
    %v5032 = vpop.permute.xlu0 %5031
    %5033 = vrot.lane.b32.xlu0 %v5010, 120
    %v5034 = vpop.permute.xlu0 %5033
    %5035 = vrot.lane.b32.xlu0 %v5012, 120
    %v5036 = vpop.permute.xlu0 %5035
    %5037 = vrot.lane.b32.xlu0 %v5014, 120
    %v5038 = vpop.permute.xlu0 %5037
    %5039 = vrot.lane.b32.xlu0 %v5016, 120
    %v5040 = vpop.permute.xlu0 %5039
    %5041 = vrot.lane.b32.xlu0 %v5018, 120
    %v5042 = vpop.permute.xlu0 %5041
    %5043 = vrot.lane.b32.xlu0 %v5020, 120
    %v5044 = vpop.permute.xlu0 %5043
    %5045 = vrot.lane.b32.xlu0 %v5022, 120
    %v5046 = vpop.permute.xlu0 %5045
    %5055 = vst.msk [vmem:[#allocation2] sm:$0xff] %vm3024, %v5032
    %5056 = vst.msk [vmem:[#allocation2 + $0x8] sm:$0xff] %vm3024, %v5034
    %5057 = vst.msk [vmem:[#allocation2 + $0x10] sm:$0xff] %vm3024, %v5036
    %5058 = vst.msk [vmem:[#allocation2 + $0x18] sm:$0xff] %vm3024, %v5038
    %5059 = vst.msk [vmem:[#allocation2 + $0x20] sm:$0xff] %vm3024, %v5040
    %5060 = vst.msk [vmem:[#allocation2 + $0x28] sm:$0xff] %vm3024, %v5042
    %5061 = vst.msk [vmem:[#allocation2 + $0x30] sm:$0xff] %vm3024, %v5044
    %5062 = vst.msk [vmem:[#allocation2 + $0x38] sm:$0xff] %vm3024, %v5046
    %v5063 = vld [vmem:[#allocation2] sm:$0xff]
    %v5064 = vld [vmem:[#allocation2 + $0x8] sm:$0xff]
    %v5065 = vld [vmem:[#allocation2 + $0x10] sm:$0xff]
    %v5066 = vld [vmem:[#allocation2 + $0x18] sm:$0xff]
    %v5067 = vld [vmem:[#allocation2 + $0x20] sm:$0xff]
    %v5068 = vld [vmem:[#allocation2 + $0x28] sm:$0xff]
    %v5069 = vld [vmem:[#allocation2 + $0x30] sm:$0xff]
    %v5070 = vld [vmem:[#allocation2 + $0x38] sm:$0xff]
    %v5071 = vld [vmem:[%s4] sm:$0xff]
    %v5072 = vld [vmem:[%s4 + $0x8] sm:$0xff]
    %v5073 = vld [vmem:[%s4 + $0x10] sm:$0xff]
    %v5074 = vld [vmem:[%s4 + $0x18] sm:$0xff]
    %v5075 = vld [vmem:[%s4 + $0x20] sm:$0xff]
    %v5076 = vld [vmem:[%s4 + $0x28] sm:$0xff]
    %v5077 = vld [vmem:[%s4 + $0x30] sm:$0xff]
    %v5078 = vld [vmem:[%s4 + $0x38] sm:$0xff]
    %v5079 = vld [vmem:[%s4 + $0x40] sm:$0xff]
    %v5080 = vld [vmem:[%s4 + $0x48] sm:$0xff]
    %v5081 = vld [vmem:[%s4 + $0x50] sm:$0xff]
    %v5082 = vld [vmem:[%s4 + $0x58] sm:$0xff]
    %v5083 = vld [vmem:[%s4 + $0x60] sm:$0xff]
    %v5084 = vld [vmem:[%s4 + $0x68] sm:$0xff]
    %v5085 = vld [vmem:[%s4 + $0x70] sm:$0xff]
    %v5086 = vld [vmem:[%s4 + $0x78] sm:$0xff]
    %5087 = vmatprep.subr.mxu0 0.0
    %5088 = vmatpush1.msra.mxu0 %v5071
    %5089 = vmatprep.subr.mxu0 0.0
    %5090 = vmatpush1.msra.mxu0 %v5072
    %5091 = vmatprep.subr.mxu0 0.0
    %5092 = vmatpush1.msra.mxu0 %v5073
    %5093 = vmatprep.subr.mxu0 0.0
    %5094 = vmatpush1.msra.mxu0 %v5074
    %5095 = vmatprep.subr.mxu0 0.0
    %5096 = vmatpush1.msra.mxu0 %v5075
    %5097 = vmatprep.subr.mxu0 0.0
    %5098 = vmatpush1.msra.mxu0 %v5076
    %5099 = vmatprep.subr.mxu0 0.0
    %5100 = vmatpush1.msra.mxu0 %v5077
    %5101 = vmatprep.subr.mxu0 0.0
    %5102 = vmatpush1.msra.mxu0 %v5078
    %5103 = vmatprep.subr.mxu0 0.0
    %5104 = vmatpush1.msra.mxu0 %v5079
    %5105 = vmatprep.subr.mxu0 0.0
    %5106 = vmatpush1.msra.mxu0 %v5080
    %5107 = vmatprep.subr.mxu0 0.0
    %5108 = vmatpush1.msra.mxu0 %v5081
    %5109 = vmatprep.subr.mxu0 0.0
    %5110 = vmatpush1.msra.mxu0 %v5082
    %5111 = vmatprep.subr.mxu0 0.0
    %5112 = vmatpush1.msra.mxu0 %v5083
    %5113 = vmatprep.subr.mxu0 0.0
    %5114 = vmatpush1.msra.mxu0 %v5084
    %5115 = vmatprep.subr.mxu0 0.0
    %5116 = vmatpush1.msra.mxu0 %v5085
    %5117 = vmatprep.subr.mxu0 0.0
    %5118 = vmatpush1.msra.mxu0 %v5086
    %5119 = vmatprep.subr.mxu0 0.0
    %5120 = vmatpush1.msra.mxu0 0.0
    %5121 = vmatprep.subr.mxu0 0.0
    %5122 = vmatpush1.msra.mxu0 0.0
    %5123 = vmatprep.subr.mxu0 0.0
    %5124 = vmatpush1.msra.mxu0 0.0
    %5125 = vmatprep.subr.mxu0 0.0
    %5126 = vmatpush1.msra.mxu0 0.0
    %5127 = vmatprep.subr.mxu0 0.0
    %5128 = vmatpush1.msra.mxu0 0.0
    %5129 = vmatprep.subr.mxu0 0.0
    %5130 = vmatpush1.msra.mxu0 0.0
    %5131 = vmatprep.subr.mxu0 0.0
    %5132 = vmatpush1.msra.mxu0 0.0
    %5133 = vmatprep.subr.mxu0 0.0
    %5134 = vmatpush1.msra.mxu0 0.0
    %5135 = vmatprep.subr.mxu0 0.0
    %5136 = vmatpush1.msra.mxu0 0.0
    %5137 = vmatprep.subr.mxu0 0.0
    %5138 = vmatpush1.msra.mxu0 0.0
    %5139 = vmatprep.subr.mxu0 0.0
    %5140 = vmatpush1.msra.mxu0 0.0
    %5141 = vmatprep.subr.mxu0 0.0
    %5142 = vmatpush1.msra.mxu0 0.0
    %5143 = vmatprep.subr.mxu0 0.0
    %5144 = vmatpush1.msra.mxu0 0.0
    %5145 = vmatprep.subr.mxu0 0.0
    %5146 = vmatpush1.msra.mxu0 0.0
    %5147 = vmatprep.subr.mxu0 0.0
    %5148 = vmatpush1.msra.mxu0 0.0
    %5149 = vmatprep.subr.mxu0 0.0
    %5150 = vmatpush1.msra.mxu0 0.0
    %5151 = vmatprep.mubr.f32.mxu0 0.0
    %5152 = vmatmul.mubr.f32.gmra.mrb[0].mxu0 %v5063
    %v5153 = vpop.f32.mrb[0].mxu0
    %v5154 = vadd.f32 0.0, %v5153
    %v5155 = vpop.f32.mrb[0].mxu0
    %5156 = vmatprep.mubr.f32.mxu0 0.0
    %5157 = vmatmul.mubr.f32.gmra.mrb[0].mxu0 %v5064
    %v5158 = vpop.f32.mrb[0].mxu0
    %v5159 = vadd.f32 0.0, %v5158
    %v5160 = vpop.f32.mrb[0].mxu0
    %5161 = vmatprep.mubr.f32.mxu0 0.0
    %5162 = vmatmul.mubr.f32.gmra.mrb[0].mxu0 %v5065
    %v5163 = vpop.f32.mrb[0].mxu0
    %v5164 = vadd.f32 0.0, %v5163
    %v5165 = vpop.f32.mrb[0].mxu0
    %5166 = vmatprep.mubr.f32.mxu0 0.0
    %5167 = vmatmul.mubr.f32.gmra.mrb[0].mxu0 %v5066
    %v5168 = vpop.f32.mrb[0].mxu0
    %v5169 = vadd.f32 0.0, %v5168
    %v5170 = vpop.f32.mrb[0].mxu0
    %5171 = vmatprep.mubr.f32.mxu0 0.0
    %5172 = vmatmul.mubr.f32.gmra.mrb[0].mxu0 %v5067
    %v5173 = vpop.f32.mrb[0].mxu0
    %v5174 = vadd.f32 0.0, %v5173
    %v5175 = vpop.f32.mrb[0].mxu0
    %5176 = vmatprep.mubr.f32.mxu0 0.0
    %5177 = vmatmul.mubr.f32.gmra.mrb[0].mxu0 %v5068
    %v5178 = vpop.f32.mrb[0].mxu0
    %v5179 = vadd.f32 0.0, %v5178
    %v5180 = vpop.f32.mrb[0].mxu0
    %5181 = vmatprep.mubr.f32.mxu0 0.0
    %5182 = vmatmul.mubr.f32.gmra.mrb[0].mxu0 %v5069
    %v5183 = vpop.f32.mrb[0].mxu0
    %v5184 = vadd.f32 0.0, %v5183
    %v5185 = vpop.f32.mrb[0].mxu0
    %5186 = vmatprep.mubr.f32.mxu0 0.0
    %5187 = vmatmul.mubr.f32.gmra.mrb[0].mxu0 %v5070
    %v5188 = vpop.f32.mrb[0].mxu0
    %v5189 = vadd.f32 0.0, %v5188
    %v5190 = vpop.f32.mrb[0].mxu0
    %5191 = vdwg.mxu0
    %5192 = vst [vmem:[#allocation3] sm:$0xff] %v5154
    %5193 = vst [vmem:[#allocation3 + $0x8] sm:$0xff] %v5159
    %5194 = vst [vmem:[#allocation3 + $0x10] sm:$0xff] %v5164
    %5195 = vst [vmem:[#allocation3 + $0x18] sm:$0xff] %v5169
    %5196 = vst [vmem:[#allocation3 + $0x20] sm:$0xff] %v5174
    %5197 = vst [vmem:[#allocation3 + $0x28] sm:$0xff] %v5179
    %5198 = vst [vmem:[#allocation3 + $0x30] sm:$0xff] %v5184
    %5199 = vst [vmem:[#allocation3 + $0x38] sm:$0xff] %v5189
    // Predicated region
    $region22: #{tpu_custom_call.1} parent=1 // pred_check
      _
    $region23: #{tpu_custom_call.1} parent=1 // pred_check_branch
      %5201 = sbr.rel (0) target = $region25
    $region24: #{tpu_custom_call.1} parent=1 // pred_region
      %s5203 = ssub.s32 1024, 1024
      %5204 = vsyncadd [#allocation4], %s5203
      %s5205 = sshll.u32 [#allocation3], 4
      %s5206 = int_to_ptr.vmem [resolvable:$true] %s5205
      %5211 = dma.vmem_to_hbm [thread:$0]  %s5206, 1024, %s5, [#allocation4], 128, 128, 8
    $region25: #{tpu_custom_call.1} parent=1 // pred_fallthru
      _
    // Predicated region
    $region26: #{tpu_custom_call.1} parent=1 // pred_check
      _
    $region27: #{tpu_custom_call.1} parent=1 // pred_check_branch
      %5213 = sbr.rel (0) target = $region29
    $region28: #{tpu_custom_call.1} parent=1 // pred_region
      %5214 = dma.done [#allocation4], 1024
    $region29: #{tpu_custom_call.1} parent=1 // pred_fallthru
      _
    %5215 = vsyncpa [#allocation4], 1

</llo_original>
